<compile_context>
chip_gen: v7x
topology: tpu7x:2x2x1
jax: 0.10.0
libtpu: 0.0.40
codegen_flags: <defaults>
</compile_context>

<pallas_src>
import functools

import jax
import jax.numpy as jnp
from jax.experimental import pallas as pl
from jax.experimental.pallas import tpu as pltpu


# --------------------------- fused forward kernel ---------------------------
def _make_fused_kernel(num_layers, B, T, H):
    """Build a kernel closed over static sizes (num_layers, B, T, H)."""

    def kernel(*refs):
        # refs = [x, (w_ih_t, w_hh_t, bias) * num_layers, w_fc_t, b_fc, out]
        x_ref = refs[0]
        layer_refs = refs[1:1 + 3 * num_layers]
        w_fc_ref = refs[1 + 3 * num_layers]
        b_fc_ref = refs[2 + 3 * num_layers]
        out_ref = refs[3 + 3 * num_layers]

        cur = x_ref[...].astype(jnp.float32)          # (B, T, D_in), batch-first

        for layer in range(num_layers):
            w_ih = layer_refs[3 * layer + 0][...]     # (D_l, 4H)
            w_hh = layer_refs[3 * layer + 1][...]     # (H, 4H)
            bias = layer_refs[3 * layer + 2][...]     # (1, 4H)
            d_in = cur.shape[-1]

            # Hoisted input projection for ALL timesteps: one well-shaped MXU
            # matmul, bias added once (off the recurrent critical path).
            gx = jnp.dot(cur.reshape(B * T, d_in), w_ih,
                         preferred_element_type=jnp.float32) + bias
            gx = gx.reshape(B, T, 4 * H)              # (B, T, 4H)

            h = jnp.zeros((B, H), jnp.float32)
            c = jnp.zeros((B, H), jnp.float32)
            hs = []
            # T is static and small -> fully unrolled (LLO scheduler visibility,
            # all slice offsets static). Only the (B,H)x(H,4H) recurrent matmul
            # remains in the serial loop.
            for t in range(T):
                gates = gx[:, t, :] + jnp.dot(
                    h, w_hh, preferred_element_type=jnp.float32)
                # NOTE: for realistic hidden sizes keep H a multiple of 128 so
                # these static gate slices land on lane-tile boundaries.
                i_g = jax.nn.sigmoid(gates[:, 0 * H:1 * H])
                f_g = jax.nn.sigmoid(gates[:, 1 * H:2 * H])
                g_g = jnp.tanh(gates[:, 2 * H:3 * H])
                o_g = jax.nn.sigmoid(gates[:, 3 * H:4 * H])
                c = f_g * c + i_g * g_g
                h = o_g * jnp.tanh(c)
                hs.append(h)
            cur = jnp.stack(hs, axis=1)               # (B, T, H), stays in VMEM
            # dropout between layers is identity in eval mode (p=0.1 ignored)

        # Fused FC head on the final layer's hidden states: one MXU matmul.
        y = jnp.dot(cur.reshape(B * T, H), w_fc_ref[...],
                    preferred_element_type=jnp.float32) + b_fc_ref[...]
        out_ref[...] = y.reshape(B, T, -1).astype(out_ref.dtype)

    return kernel


def fused_lstm_fc(x_btd, lstm_params, w_fc_t, b_fc):
    """x_btd: (B, T, D_in) batch-first.  Returns (B, T, O) = FC(LSTM(x))."""
    B, T, Din = x_btd.shape
    H = lstm_params[0]["w_hh_t"].shape[0]
    O = w_fc_t.shape[1]
    num_layers = len(lstm_params)

    weight_args = []
    in_specs = [pl.BlockSpec((B, T, Din), lambda i: (0, 0, 0))]
    for p in lstm_params:
        weight_args += [p["w_ih_t"], p["w_hh_t"], p["bias"]]
        in_specs += [
            pl.BlockSpec(p["w_ih_t"].shape, lambda i: (0, 0)),
            pl.BlockSpec(p["w_hh_t"].shape, lambda i: (0, 0)),
            pl.BlockSpec(p["bias"].shape, lambda i: (0, 0)),
        ]
    weight_args += [w_fc_t, b_fc]
    in_specs += [
        pl.BlockSpec(w_fc_t.shape, lambda i: (0, 0)),
        pl.BlockSpec(b_fc.shape, lambda i: (0, 0)),
    ]

    kernel = _make_fused_kernel(num_layers, B, T, H)

    return pl.pallas_call(
        kernel,
        out_shape=jax.ShapeDtypeStruct((B, T, O), x_btd.dtype),
        grid_spec=pltpu.PrefetchScalarGridSpec(
            num_scalar_prefetch=0,
            grid=(1,),  # whole problem resident in VMEM; no per-step overhead
            in_specs=in_specs,
            out_specs=pl.BlockSpec((B, T, O), lambda i: (0, 0, 0)),
        ),
        compiler_params=pltpu.CompilerParams(
            dimension_semantics=("arbitrary",),
            vmem_limit_bytes=32 * 1024 * 1024,
        ),
    )(x_btd, *weight_args)


# ------------------------------- parameters ----------------------------------
def init_rnn_params(key, num_layers, hidden_size, input_size, dtype=jnp.float32):
    """PyTorch-style init: U(-1/sqrt(H), 1/sqrt(H)); weights stored pre-transposed."""
    params = {"lstm": [], "fc": {}}
    bound = 1.0 / jnp.sqrt(jnp.array(hidden_size, dtype=jnp.float32))
    for layer in range(num_layers):
        in_dim = input_size if layer == 0 else hidden_size
        key, k1, k2, k3, k4 = jax.random.split(key, 5)
        w_ih = jax.random.uniform(k1, (4 * hidden_size, in_dim), dtype, -bound, bound)
        w_hh = jax.random.uniform(k2, (4 * hidden_size, hidden_size), dtype, -bound, bound)
        b_ih = jax.random.uniform(k3, (4 * hidden_size,), dtype, -bound, bound)
        b_hh = jax.random.uniform(k4, (4 * hidden_size,), dtype, -bound, bound)
        params["lstm"].append(
            {
                "w_ih_t": w_ih.T,                       # (in_dim, 4H)
                "w_hh_t": w_hh.T,                       # (H, 4H)
                "bias": (b_ih + b_hh).reshape(1, -1),   # (1, 4H)
            }
        )
    key, k1, k2 = jax.random.split(key, 3)
    w_fc = jax.random.uniform(k1, (input_size, hidden_size), dtype, -bound, bound)
    b_fc = jax.random.uniform(k2, (input_size,), dtype, -bound, bound)
    params["fc"]["w_t"] = w_fc.T                # (H, input_size)
    params["fc"]["bias"] = b_fc.reshape(1, -1)  # (1, input_size)
    return params


@functools.partial(jax.jit, static_argnames=("encode_length",))
def rnn_forward(params, x_btd, encode_length=0):
    """x_btd: (B, T, input_size) batch-first.  Returns (B, T - encode_length, input_size)."""
    out = fused_lstm_fc(x_btd, params["lstm"], params["fc"]["w_t"], params["fc"]["bias"])
    # FC is per-timestep, so slicing after the fused head == PyTorch's slice-then-FC.
    return out[:, encode_length:, :]


# ------------------------------ pure-JAX reference ----------------------------
def _reference_forward(params, x):
    h_seq = x.astype(jnp.float32)
    for lp in params["lstm"]:
        B, T, _ = h_seq.shape
        H = lp["w_hh_t"].shape[0]
        h = jnp.zeros((B, H), jnp.float32)
        c = jnp.zeros((B, H), jnp.float32)
        outs = []
        for t in range(T):
            gates = h_seq[:, t, :] @ lp["w_ih_t"] + h @ lp["w_hh_t"] + lp["bias"]
            i_g = jax.nn.sigmoid(gates[:, :H])
            f_g = jax.nn.sigmoid(gates[:, H:2 * H])
            g_g = jnp.tanh(gates[:, 2 * H:3 * H])
            o_g = jax.nn.sigmoid(gates[:, 3 * H:])
            c = f_g * c + i_g * g_g
            h = o_g * jnp.tanh(c)
            outs.append(h)
        h_seq = jnp.stack(outs, axis=1)
    return h_seq @ params["fc"]["w_t"] + params["fc"]["bias"]


if __name__ == "__main__":
    num_layers = 2
    hidden_size = 32
    input_size = 16
    batch = 2
    seq = 8

    key = jax.random.PRNGKey(0)
    key, pkey, xkey = jax.random.split(key, 3)
    params = init_rnn_params(pkey, num_layers, hidden_size, input_size)
    x = jax.random.normal(xkey, (batch, seq, input_size), dtype=jnp.float32)

    y = rnn_forward(params, x)
    jax.block_until_ready(y)
    assert y.shape == (batch, seq, input_size), y.shape

    y_ref = _reference_forward(params, x)
    assert jnp.allclose(y, y_ref, atol=1e-3, rtol=1e-3), float(jnp.max(jnp.abs(y - y_ref)))

    print("KERNEL_OK")
</pallas_src>

<mosaic_0001>
module attributes {stable_mosaic.version = 11 : i64} {
  func.func @kernel(%arg0: i32, %arg1: memref<2x8x16xf32, #tpu.memory_space<vmem>>, %arg2: memref<16x128xf32, #tpu.memory_space<vmem>>, %arg3: memref<32x128xf32, #tpu.memory_space<vmem>>, %arg4: memref<1x128xf32, #tpu.memory_space<vmem>>, %arg5: memref<32x128xf32, #tpu.memory_space<vmem>>, %arg6: memref<32x128xf32, #tpu.memory_space<vmem>>, %arg7: memref<1x128xf32, #tpu.memory_space<vmem>>, %arg8: memref<32x16xf32, #tpu.memory_space<vmem>>, %arg9: memref<1x16xf32, #tpu.memory_space<vmem>>, %arg10: memref<2x8x16xf32, #tpu.memory_space<vmem>>) attributes {dimension_semantics = [#tpu.dimension_semantics<arbitrary>], iteration_bounds = array<i64: 1>, scalar_prefetch = 0 : i64, scratch_operands = 0 : i64, tpu.core_type = #tpu.core_type<tc>, window_params = [{pipeline_mode = #tpu.pipeline_mode<synchronous>, transform_indices = @transform_0, window_bounds = array<i64: 2, 8, 16>}, {pipeline_mode = #tpu.pipeline_mode<synchronous>, transform_indices = @transform_1, window_bounds = array<i64: 16, 128>}, {pipeline_mode = #tpu.pipeline_mode<synchronous>, transform_indices = @transform_2, window_bounds = array<i64: 32, 128>}, {pipeline_mode = #tpu.pipeline_mode<synchronous>, transform_indices = @transform_3, window_bounds = array<i64: 1, 128>}, {pipeline_mode = #tpu.pipeline_mode<synchronous>, transform_indices = @transform_4, window_bounds = array<i64: 32, 128>}, {pipeline_mode = #tpu.pipeline_mode<synchronous>, transform_indices = @transform_5, window_bounds = array<i64: 32, 128>}, {pipeline_mode = #tpu.pipeline_mode<synchronous>, transform_indices = @transform_6, window_bounds = array<i64: 1, 128>}, {pipeline_mode = #tpu.pipeline_mode<synchronous>, transform_indices = @transform_7, window_bounds = array<i64: 32, 16>}, {pipeline_mode = #tpu.pipeline_mode<synchronous>, transform_indices = @transform_8, window_bounds = array<i64: 1, 16>}, {pipeline_mode = #tpu.pipeline_mode<synchronous>, transform_indices = @transform_9, window_bounds = array<i64: 2, 8, 16>}]} {
    %c0 = arith.constant 0 : index
    %c0_0 = arith.constant 0 : index
    %c0_1 = arith.constant 0 : index
    %0 = vector.load %arg1[%c0, %c0_0, %c0_1] : memref<2x8x16xf32, #tpu.memory_space<vmem>>, vector<2x8x16xf32>
    %c0_2 = arith.constant 0 : index
    %c0_3 = arith.constant 0 : index
    %1 = vector.load %arg2[%c0_2, %c0_3] : memref<16x128xf32, #tpu.memory_space<vmem>>, vector<16x128xf32>
    %c0_4 = arith.constant 0 : index
    %c0_5 = arith.constant 0 : index
    %2 = vector.load %arg3[%c0_4, %c0_5] : memref<32x128xf32, #tpu.memory_space<vmem>>, vector<32x128xf32>
    %c0_6 = arith.constant 0 : index
    %c0_7 = arith.constant 0 : index
    %3 = vector.load %arg4[%c0_6, %c0_7] : memref<1x128xf32, #tpu.memory_space<vmem>>, vector<1x128xf32>
    %4 = vector.shape_cast %0 : vector<2x8x16xf32> to vector<16x16xf32>
    %cst = arith.constant dense<0.000000e+00> : vector<16x128xf32>
    %5 = tpu.matmul %4, %1, %cst {dimension_numbers = #tpu.dot_dimension_numbers<[1], [0], [0], [1], [0, 0, 1, 1], [], []>} : vector<16x16xf32>, vector<16x128xf32>, vector<16x128xf32> -> vector<16x128xf32>
    %6 = vector.broadcast %3 : vector<1x128xf32> to vector<16x128xf32>
    %7 = arith.addf %5, %6 : vector<16x128xf32>
    %8 = vector.shape_cast %7 : vector<16x128xf32> to vector<2x8x128xf32>
    %cst_8 = arith.constant 0.000000e+00 : f32
    %9 = vector.broadcast %cst_8 : f32 to vector<2x32xf32>
    %cst_9 = arith.constant 0.000000e+00 : f32
    %10 = vector.broadcast %cst_9 : f32 to vector<2x32xf32>
    %11 = vector.extract_strided_slice %8 {offsets = [0, 0, 0], sizes = [2, 1, 128], strides = [1, 1, 1]} : vector<2x8x128xf32> to vector<2x1x128xf32>
    %12 = vector.shape_cast %11 : vector<2x1x128xf32> to vector<2x128xf32>
    %cst_10 = arith.constant dense<0.000000e+00> : vector<2x128xf32>
    %13 = tpu.matmul %9, %2, %cst_10 {dimension_numbers = #tpu.dot_dimension_numbers<[1], [0], [0], [1], [0, 0, 1, 1], [], []>} : vector<2x32xf32>, vector<32x128xf32>, vector<2x128xf32> -> vector<2x128xf32>
    %14 = arith.addf %12, %13 : vector<2x128xf32>
    %15 = vector.extract_strided_slice %14 {offsets = [0, 0], sizes = [2, 32], strides = [1, 1]} : vector<2x128xf32> to vector<2x32xf32>
    %16 = arith.negf %15 : vector<2x32xf32>
    %17 = math.exp %16 : vector<2x32xf32>
    %cst_11 = arith.constant 1.000000e+00 : f32
    %18 = vector.broadcast %cst_11 : f32 to vector<2x32xf32>
    %19 = arith.addf %18, %17 : vector<2x32xf32>
    %20 = arith.divf %18, %19 : vector<2x32xf32>
    %21 = vector.extract_strided_slice %14 {offsets = [0, 32], sizes = [2, 32], strides = [1, 1]} : vector<2x128xf32> to vector<2x32xf32>
    %22 = arith.negf %21 : vector<2x32xf32>
    %23 = math.exp %22 : vector<2x32xf32>
    %cst_12 = arith.constant 1.000000e+00 : f32
    %24 = vector.broadcast %cst_12 : f32 to vector<2x32xf32>
    %25 = arith.addf %24, %23 : vector<2x32xf32>
    %26 = arith.divf %24, %25 : vector<2x32xf32>
    %27 = vector.extract_strided_slice %14 {offsets = [0, 64], sizes = [2, 32], strides = [1, 1]} : vector<2x128xf32> to vector<2x32xf32>
    %28 = math.tanh %27 : vector<2x32xf32>
    %29 = vector.extract_strided_slice %14 {offsets = [0, 96], sizes = [2, 32], strides = [1, 1]} : vector<2x128xf32> to vector<2x32xf32>
    %30 = arith.negf %29 : vector<2x32xf32>
    %31 = math.exp %30 : vector<2x32xf32>
    %cst_13 = arith.constant 1.000000e+00 : f32
    %32 = vector.broadcast %cst_13 : f32 to vector<2x32xf32>
    %33 = arith.addf %32, %31 : vector<2x32xf32>
    %34 = arith.divf %32, %33 : vector<2x32xf32>
    %35 = arith.mulf %26, %10 : vector<2x32xf32>
    %36 = arith.mulf %20, %28 : vector<2x32xf32>
    %37 = arith.addf %35, %36 : vector<2x32xf32>
    %38 = math.tanh %37 : vector<2x32xf32>
    %39 = arith.mulf %34, %38 : vector<2x32xf32>
    %40 = vector.extract_strided_slice %8 {offsets = [0, 1, 0], sizes = [2, 1, 128], strides = [1, 1, 1]} : vector<2x8x128xf32> to vector<2x1x128xf32>
    %41 = vector.shape_cast %40 : vector<2x1x128xf32> to vector<2x128xf32>
    %cst_14 = arith.constant dense<0.000000e+00> : vector<2x128xf32>
    %42 = tpu.matmul %39, %2, %cst_14 {dimension_numbers = #tpu.dot_dimension_numbers<[1], [0], [0], [1], [0, 0, 1, 1], [], []>} : vector<2x32xf32>, vector<32x128xf32>, vector<2x128xf32> -> vector<2x128xf32>
    %43 = arith.addf %41, %42 : vector<2x128xf32>
    %44 = vector.extract_strided_slice %43 {offsets = [0, 0], sizes = [2, 32], strides = [1, 1]} : vector<2x128xf32> to vector<2x32xf32>
    %45 = arith.negf %44 : vector<2x32xf32>
    %46 = math.exp %45 : vector<2x32xf32>
    %cst_15 = arith.constant 1.000000e+00 : f32
    %47 = vector.broadcast %cst_15 : f32 to vector<2x32xf32>
    %48 = arith.addf %47, %46 : vector<2x32xf32>
    %49 = arith.divf %47, %48 : vector<2x32xf32>
    %50 = vector.extract_strided_slice %43 {offsets = [0, 32], sizes = [2, 32], strides = [1, 1]} : vector<2x128xf32> to vector<2x32xf32>
    %51 = arith.negf %50 : vector<2x32xf32>
    %52 = math.exp %51 : vector<2x32xf32>
    %cst_16 = arith.constant 1.000000e+00 : f32
    %53 = vector.broadcast %cst_16 : f32 to vector<2x32xf32>
    %54 = arith.addf %53, %52 : vector<2x32xf32>
    %55 = arith.divf %53, %54 : vector<2x32xf32>
    %56 = vector.extract_strided_slice %43 {offsets = [0, 64], sizes = [2, 32], strides = [1, 1]} : vector<2x128xf32> to vector<2x32xf32>
    %57 = math.tanh %56 : vector<2x32xf32>
    %58 = vector.extract_strided_slice %43 {offsets = [0, 96], sizes = [2, 32], strides = [1, 1]} : vector<2x128xf32> to vector<2x32xf32>
    %59 = arith.negf %58 : vector<2x32xf32>
    %60 = math.exp %59 : vector<2x32xf32>
    %cst_17 = arith.constant 1.000000e+00 : f32
    %61 = vector.broadcast %cst_17 : f32 to vector<2x32xf32>
    %62 = arith.addf %61, %60 : vector<2x32xf32>
    %63 = arith.divf %61, %62 : vector<2x32xf32>
    %64 = arith.mulf %55, %37 : vector<2x32xf32>
    %65 = arith.mulf %49, %57 : vector<2x32xf32>
    %66 = arith.addf %64, %65 : vector<2x32xf32>
    %67 = math.tanh %66 : vector<2x32xf32>
    %68 = arith.mulf %63, %67 : vector<2x32xf32>
    %69 = vector.extract_strided_slice %8 {offsets = [0, 2, 0], sizes = [2, 1, 128], strides = [1, 1, 1]} : vector<2x8x128xf32> to vector<2x1x128xf32>
    %70 = vector.shape_cast %69 : vector<2x1x128xf32> to vector<2x128xf32>
    %cst_18 = arith.constant dense<0.000000e+00> : vector<2x128xf32>
    %71 = tpu.matmul %68, %2, %cst_18 {dimension_numbers = #tpu.dot_dimension_numbers<[1], [0], [0], [1], [0, 0, 1, 1], [], []>} : vector<2x32xf32>, vector<32x128xf32>, vector<2x128xf32> -> vector<2x128xf32>
    %72 = arith.addf %70, %71 : vector<2x128xf32>
    %73 = vector.extract_strided_slice %72 {offsets = [0, 0], sizes = [2, 32], strides = [1, 1]} : vector<2x128xf32> to vector<2x32xf32>
    %74 = arith.negf %73 : vector<2x32xf32>
    %75 = math.exp %74 : vector<2x32xf32>
    %cst_19 = arith.constant 1.000000e+00 : f32
    %76 = vector.broadcast %cst_19 : f32 to vector<2x32xf32>
    %77 = arith.addf %76, %75 : vector<2x32xf32>
    %78 = arith.divf %76, %77 : vector<2x32xf32>
    %79 = vector.extract_strided_slice %72 {offsets = [0, 32], sizes = [2, 32], strides = [1, 1]} : vector<2x128xf32> to vector<2x32xf32>
    %80 = arith.negf %79 : vector<2x32xf32>
    %81 = math.exp %80 : vector<2x32xf32>
    %cst_20 = arith.constant 1.000000e+00 : f32
    %82 = vector.broadcast %cst_20 : f32 to vector<2x32xf32>
    %83 = arith.addf %82, %81 : vector<2x32xf32>
    %84 = arith.divf %82, %83 : vector<2x32xf32>
    %85 = vector.extract_strided_slice %72 {offsets = [0, 64], sizes = [2, 32], strides = [1, 1]} : vector<2x128xf32> to vector<2x32xf32>
    %86 = math.tanh %85 : vector<2x32xf32>
    %87 = vector.extract_strided_slice %72 {offsets = [0, 96], sizes = [2, 32], strides = [1, 1]} : vector<2x128xf32> to vector<2x32xf32>
    %88 = arith.negf %87 : vector<2x32xf32>
    %89 = math.exp %88 : vector<2x32xf32>
    %cst_21 = arith.constant 1.000000e+00 : f32
    %90 = vector.broadcast %cst_21 : f32 to vector<2x32xf32>
    %91 = arith.addf %90, %89 : vector<2x32xf32>
    %92 = arith.divf %90, %91 : vector<2x32xf32>
    %93 = arith.mulf %84, %66 : vector<2x32xf32>
    %94 = arith.mulf %78, %86 : vector<2x32xf32>
    %95 = arith.addf %93, %94 : vector<2x32xf32>
    %96 = math.tanh %95 : vector<2x32xf32>
    %97 = arith.mulf %92, %96 : vector<2x32xf32>
    %98 = vector.extract_strided_slice %8 {offsets = [0, 3, 0], sizes = [2, 1, 128], strides = [1, 1, 1]} : vector<2x8x128xf32> to vector<2x1x128xf32>
    %99 = vector.shape_cast %98 : vector<2x1x128xf32> to vector<2x128xf32>
    %cst_22 = arith.constant dense<0.000000e+00> : vector<2x128xf32>
    %100 = tpu.matmul %97, %2, %cst_22 {dimension_numbers = #tpu.dot_dimension_numbers<[1], [0], [0], [1], [0, 0, 1, 1], [], []>} : vector<2x32xf32>, vector<32x128xf32>, vector<2x128xf32> -> vector<2x128xf32>
    %101 = arith.addf %99, %100 : vector<2x128xf32>
    %102 = vector.extract_strided_slice %101 {offsets = [0, 0], sizes = [2, 32], strides = [1, 1]} : vector<2x128xf32> to vector<2x32xf32>
    %103 = arith.negf %102 : vector<2x32xf32>
    %104 = math.exp %103 : vector<2x32xf32>
    %cst_23 = arith.constant 1.000000e+00 : f32
    %105 = vector.broadcast %cst_23 : f32 to vector<2x32xf32>
    %106 = arith.addf %105, %104 : vector<2x32xf32>
    %107 = arith.divf %105, %106 : vector<2x32xf32>
    %108 = vector.extract_strided_slice %101 {offsets = [0, 32], sizes = [2, 32], strides = [1, 1]} : vector<2x128xf32> to vector<2x32xf32>
    %109 = arith.negf %108 : vector<2x32xf32>
    %110 = math.exp %109 : vector<2x32xf32>
    %cst_24 = arith.constant 1.000000e+00 : f32
    %111 = vector.broadcast %cst_24 : f32 to vector<2x32xf32>
    %112 = arith.addf %111, %110 : vector<2x32xf32>
    %113 = arith.divf %111, %112 : vector<2x32xf32>
    %114 = vector.extract_strided_slice %101 {offsets = [0, 64], sizes = [2, 32], strides = [1, 1]} : vector<2x128xf32> to vector<2x32xf32>
    %115 = math.tanh %114 : vector<2x32xf32>
    %116 = vector.extract_strided_slice %101 {offsets = [0, 96], sizes = [2, 32], strides = [1, 1]} : vector<2x128xf32> to vector<2x32xf32>
    %117 = arith.negf %116 : vector<2x32xf32>
    %118 = math.exp %117 : vector<2x32xf32>
    %cst_25 = arith.constant 1.000000e+00 : f32
    %119 = vector.broadcast %cst_25 : f32 to vector<2x32xf32>
    %120 = arith.addf %119, %118 : vector<2x32xf32>
    %121 = arith.divf %119, %120 : vector<2x32xf32>
    %122 = arith.mulf %113, %95 : vector<2x32xf32>
    %123 = arith.mulf %107, %115 : vector<2x32xf32>
    %124 = arith.addf %122, %123 : vector<2x32xf32>
    %125 = math.tanh %124 : vector<2x32xf32>
    %126 = arith.mulf %121, %125 : vector<2x32xf32>
    %127 = vector.extract_strided_slice %8 {offsets = [0, 4, 0], sizes = [2, 1, 128], strides = [1, 1, 1]} : vector<2x8x128xf32> to vector<2x1x128xf32>
    %128 = vector.shape_cast %127 : vector<2x1x128xf32> to vector<2x128xf32>
    %cst_26 = arith.constant dense<0.000000e+00> : vector<2x128xf32>
    %129 = tpu.matmul %126, %2, %cst_26 {dimension_numbers = #tpu.dot_dimension_numbers<[1], [0], [0], [1], [0, 0, 1, 1], [], []>} : vector<2x32xf32>, vector<32x128xf32>, vector<2x128xf32> -> vector<2x128xf32>
    %130 = arith.addf %128, %129 : vector<2x128xf32>
    %131 = vector.extract_strided_slice %130 {offsets = [0, 0], sizes = [2, 32], strides = [1, 1]} : vector<2x128xf32> to vector<2x32xf32>
    %132 = arith.negf %131 : vector<2x32xf32>
    %133 = math.exp %132 : vector<2x32xf32>
    %cst_27 = arith.constant 1.000000e+00 : f32
    %134 = vector.broadcast %cst_27 : f32 to vector<2x32xf32>
    %135 = arith.addf %134, %133 : vector<2x32xf32>
    %136 = arith.divf %134, %135 : vector<2x32xf32>
    %137 = vector.extract_strided_slice %130 {offsets = [0, 32], sizes = [2, 32], strides = [1, 1]} : vector<2x128xf32> to vector<2x32xf32>
    %138 = arith.negf %137 : vector<2x32xf32>
    %139 = math.exp %138 : vector<2x32xf32>
    %cst_28 = arith.constant 1.000000e+00 : f32
    %140 = vector.broadcast %cst_28 : f32 to vector<2x32xf32>
    %141 = arith.addf %140, %139 : vector<2x32xf32>
    %142 = arith.divf %140, %141 : vector<2x32xf32>
    %143 = vector.extract_strided_slice %130 {offsets = [0, 64], sizes = [2, 32], strides = [1, 1]} : vector<2x128xf32> to vector<2x32xf32>
    %144 = math.tanh %143 : vector<2x32xf32>
    %145 = vector.extract_strided_slice %130 {offsets = [0, 96], sizes = [2, 32], strides = [1, 1]} : vector<2x128xf32> to vector<2x32xf32>
    %146 = arith.negf %145 : vector<2x32xf32>
    %147 = math.exp %146 : vector<2x32xf32>
    %cst_29 = arith.constant 1.000000e+00 : f32
    %148 = vector.broadcast %cst_29 : f32 to vector<2x32xf32>
    %149 = arith.addf %148, %147 : vector<2x32xf32>
    %150 = arith.divf %148, %149 : vector<2x32xf32>
    %151 = arith.mulf %142, %124 : vector<2x32xf32>
    %152 = arith.mulf %136, %144 : vector<2x32xf32>
    %153 = arith.addf %151, %152 : vector<2x32xf32>
    %154 = math.tanh %153 : vector<2x32xf32>
    %155 = arith.mulf %150, %154 : vector<2x32xf32>
    %156 = vector.extract_strided_slice %8 {offsets = [0, 5, 0], sizes = [2, 1, 128], strides = [1, 1, 1]} : vector<2x8x128xf32> to vector<2x1x128xf32>
    %157 = vector.shape_cast %156 : vector<2x1x128xf32> to vector<2x128xf32>
    %cst_30 = arith.constant dense<0.000000e+00> : vector<2x128xf32>
    %158 = tpu.matmul %155, %2, %cst_30 {dimension_numbers = #tpu.dot_dimension_numbers<[1], [0], [0], [1], [0, 0, 1, 1], [], []>} : vector<2x32xf32>, vector<32x128xf32>, vector<2x128xf32> -> vector<2x128xf32>
    %159 = arith.addf %157, %158 : vector<2x128xf32>
    %160 = vector.extract_strided_slice %159 {offsets = [0, 0], sizes = [2, 32], strides = [1, 1]} : vector<2x128xf32> to vector<2x32xf32>
    %161 = arith.negf %160 : vector<2x32xf32>
    %162 = math.exp %161 : vector<2x32xf32>
    %cst_31 = arith.constant 1.000000e+00 : f32
    %163 = vector.broadcast %cst_31 : f32 to vector<2x32xf32>
    %164 = arith.addf %163, %162 : vector<2x32xf32>
    %165 = arith.divf %163, %164 : vector<2x32xf32>
    %166 = vector.extract_strided_slice %159 {offsets = [0, 32], sizes = [2, 32], strides = [1, 1]} : vector<2x128xf32> to vector<2x32xf32>
    %167 = arith.negf %166 : vector<2x32xf32>
    %168 = math.exp %167 : vector<2x32xf32>
    %cst_32 = arith.constant 1.000000e+00 : f32
    %169 = vector.broadcast %cst_32 : f32 to vector<2x32xf32>
    %170 = arith.addf %169, %168 : vector<2x32xf32>
    %171 = arith.divf %169, %170 : vector<2x32xf32>
    %172 = vector.extract_strided_slice %159 {offsets = [0, 64], sizes = [2, 32], strides = [1, 1]} : vector<2x128xf32> to vector<2x32xf32>
    %173 = math.tanh %172 : vector<2x32xf32>
    %174 = vector.extract_strided_slice %159 {offsets = [0, 96], sizes = [2, 32], strides = [1, 1]} : vector<2x128xf32> to vector<2x32xf32>
    %175 = arith.negf %174 : vector<2x32xf32>
    %176 = math.exp %175 : vector<2x32xf32>
    %cst_33 = arith.constant 1.000000e+00 : f32
    %177 = vector.broadcast %cst_33 : f32 to vector<2x32xf32>
    %178 = arith.addf %177, %176 : vector<2x32xf32>
    %179 = arith.divf %177, %178 : vector<2x32xf32>
    %180 = arith.mulf %171, %153 : vector<2x32xf32>
    %181 = arith.mulf %165, %173 : vector<2x32xf32>
    %182 = arith.addf %180, %181 : vector<2x32xf32>
    %183 = math.tanh %182 : vector<2x32xf32>
    %184 = arith.mulf %179, %183 : vector<2x32xf32>
    %185 = vector.extract_strided_slice %8 {offsets = [0, 6, 0], sizes = [2, 1, 128], strides = [1, 1, 1]} : vector<2x8x128xf32> to vector<2x1x128xf32>
    %186 = vector.shape_cast %185 : vector<2x1x128xf32> to vector<2x128xf32>
    %cst_34 = arith.constant dense<0.000000e+00> : vector<2x128xf32>
    %187 = tpu.matmul %184, %2, %cst_34 {dimension_numbers = #tpu.dot_dimension_numbers<[1], [0], [0], [1], [0, 0, 1, 1], [], []>} : vector<2x32xf32>, vector<32x128xf32>, vector<2x128xf32> -> vector<2x128xf32>
    %188 = arith.addf %186, %187 : vector<2x128xf32>
    %189 = vector.extract_strided_slice %188 {offsets = [0, 0], sizes = [2, 32], strides = [1, 1]} : vector<2x128xf32> to vector<2x32xf32>
    %190 = arith.negf %189 : vector<2x32xf32>
    %191 = math.exp %190 : vector<2x32xf32>
    %cst_35 = arith.constant 1.000000e+00 : f32
    %192 = vector.broadcast %cst_35 : f32 to vector<2x32xf32>
    %193 = arith.addf %192, %191 : vector<2x32xf32>
    %194 = arith.divf %192, %193 : vector<2x32xf32>
    %195 = vector.extract_strided_slice %188 {offsets = [0, 32], sizes = [2, 32], strides = [1, 1]} : vector<2x128xf32> to vector<2x32xf32>
    %196 = arith.negf %195 : vector<2x32xf32>
    %197 = math.exp %196 : vector<2x32xf32>
    %cst_36 = arith.constant 1.000000e+00 : f32
    %198 = vector.broadcast %cst_36 : f32 to vector<2x32xf32>
    %199 = arith.addf %198, %197 : vector<2x32xf32>
    %200 = arith.divf %198, %199 : vector<2x32xf32>
    %201 = vector.extract_strided_slice %188 {offsets = [0, 64], sizes = [2, 32], strides = [1, 1]} : vector<2x128xf32> to vector<2x32xf32>
    %202 = math.tanh %201 : vector<2x32xf32>
    %203 = vector.extract_strided_slice %188 {offsets = [0, 96], sizes = [2, 32], strides = [1, 1]} : vector<2x128xf32> to vector<2x32xf32>
    %204 = arith.negf %203 : vector<2x32xf32>
    %205 = math.exp %204 : vector<2x32xf32>
    %cst_37 = arith.constant 1.000000e+00 : f32
    %206 = vector.broadcast %cst_37 : f32 to vector<2x32xf32>
    %207 = arith.addf %206, %205 : vector<2x32xf32>
    %208 = arith.divf %206, %207 : vector<2x32xf32>
    %209 = arith.mulf %200, %182 : vector<2x32xf32>
    %210 = arith.mulf %194, %202 : vector<2x32xf32>
    %211 = arith.addf %209, %210 : vector<2x32xf32>
    %212 = math.tanh %211 : vector<2x32xf32>
    %213 = arith.mulf %208, %212 : vector<2x32xf32>
    %214 = vector.extract_strided_slice %8 {offsets = [0, 7, 0], sizes = [2, 1, 128], strides = [1, 1, 1]} : vector<2x8x128xf32> to vector<2x1x128xf32>
    %215 = vector.shape_cast %214 : vector<2x1x128xf32> to vector<2x128xf32>
    %cst_38 = arith.constant dense<0.000000e+00> : vector<2x128xf32>
    %216 = tpu.matmul %213, %2, %cst_38 {dimension_numbers = #tpu.dot_dimension_numbers<[1], [0], [0], [1], [0, 0, 1, 1], [], []>} : vector<2x32xf32>, vector<32x128xf32>, vector<2x128xf32> -> vector<2x128xf32>
    %217 = arith.addf %215, %216 : vector<2x128xf32>
    %218 = vector.extract_strided_slice %217 {offsets = [0, 0], sizes = [2, 32], strides = [1, 1]} : vector<2x128xf32> to vector<2x32xf32>
    %219 = arith.negf %218 : vector<2x32xf32>
    %220 = math.exp %219 : vector<2x32xf32>
    %cst_39 = arith.constant 1.000000e+00 : f32
    %221 = vector.broadcast %cst_39 : f32 to vector<2x32xf32>
    %222 = arith.addf %221, %220 : vector<2x32xf32>
    %223 = arith.divf %221, %222 : vector<2x32xf32>
    %224 = vector.extract_strided_slice %217 {offsets = [0, 32], sizes = [2, 32], strides = [1, 1]} : vector<2x128xf32> to vector<2x32xf32>
    %225 = arith.negf %224 : vector<2x32xf32>
    %226 = math.exp %225 : vector<2x32xf32>
    %cst_40 = arith.constant 1.000000e+00 : f32
    %227 = vector.broadcast %cst_40 : f32 to vector<2x32xf32>
    %228 = arith.addf %227, %226 : vector<2x32xf32>
    %229 = arith.divf %227, %228 : vector<2x32xf32>
    %230 = vector.extract_strided_slice %217 {offsets = [0, 64], sizes = [2, 32], strides = [1, 1]} : vector<2x128xf32> to vector<2x32xf32>
    %231 = math.tanh %230 : vector<2x32xf32>
    %232 = vector.extract_strided_slice %217 {offsets = [0, 96], sizes = [2, 32], strides = [1, 1]} : vector<2x128xf32> to vector<2x32xf32>
    %233 = arith.negf %232 : vector<2x32xf32>
    %234 = math.exp %233 : vector<2x32xf32>
    %cst_41 = arith.constant 1.000000e+00 : f32
    %235 = vector.broadcast %cst_41 : f32 to vector<2x32xf32>
    %236 = arith.addf %235, %234 : vector<2x32xf32>
    %237 = arith.divf %235, %236 : vector<2x32xf32>
    %238 = arith.mulf %229, %211 : vector<2x32xf32>
    %239 = arith.mulf %223, %231 : vector<2x32xf32>
    %240 = arith.addf %238, %239 : vector<2x32xf32>
    %241 = math.tanh %240 : vector<2x32xf32>
    %242 = arith.mulf %237, %241 : vector<2x32xf32>
    %243 = vector.shape_cast %39 : vector<2x32xf32> to vector<2x1x32xf32>
    %244 = vector.shape_cast %68 : vector<2x32xf32> to vector<2x1x32xf32>
    %245 = vector.shape_cast %97 : vector<2x32xf32> to vector<2x1x32xf32>
    %246 = vector.shape_cast %126 : vector<2x32xf32> to vector<2x1x32xf32>
    %247 = vector.shape_cast %155 : vector<2x32xf32> to vector<2x1x32xf32>
    %248 = vector.shape_cast %184 : vector<2x32xf32> to vector<2x1x32xf32>
    %249 = vector.shape_cast %213 : vector<2x32xf32> to vector<2x1x32xf32>
    %250 = vector.shape_cast %242 : vector<2x32xf32> to vector<2x1x32xf32>
    %251 = tpu.concatenate %243, %244, %245, %246, %247, %248, %249, %250 in 1 : vector<2x1x32xf32>, vector<2x1x32xf32>, vector<2x1x32xf32>, vector<2x1x32xf32>, vector<2x1x32xf32>, vector<2x1x32xf32>, vector<2x1x32xf32>, vector<2x1x32xf32> -> vector<2x8x32xf32>
    %c0_42 = arith.constant 0 : index
    %c0_43 = arith.constant 0 : index
    %252 = vector.load %arg5[%c0_42, %c0_43] : memref<32x128xf32, #tpu.memory_space<vmem>>, vector<32x128xf32>
    %c0_44 = arith.constant 0 : index
    %c0_45 = arith.constant 0 : index
    %253 = vector.load %arg6[%c0_44, %c0_45] : memref<32x128xf32, #tpu.memory_space<vmem>>, vector<32x128xf32>
    %c0_46 = arith.constant 0 : index
    %c0_47 = arith.constant 0 : index
    %254 = vector.load %arg7[%c0_46, %c0_47] : memref<1x128xf32, #tpu.memory_space<vmem>>, vector<1x128xf32>
    %255 = vector.shape_cast %251 : vector<2x8x32xf32> to vector<16x32xf32>
    %cst_48 = arith.constant dense<0.000000e+00> : vector<16x128xf32>
    %256 = tpu.matmul %255, %252, %cst_48 {dimension_numbers = #tpu.dot_dimension_numbers<[1], [0], [0], [1], [0, 0, 1, 1], [], []>} : vector<16x32xf32>, vector<32x128xf32>, vector<16x128xf32> -> vector<16x128xf32>
    %257 = vector.broadcast %254 : vector<1x128xf32> to vector<16x128xf32>
    %258 = arith.addf %256, %257 : vector<16x128xf32>
    %259 = vector.shape_cast %258 : vector<16x128xf32> to vector<2x8x128xf32>
    %cst_49 = arith.constant 0.000000e+00 : f32
    %260 = vector.broadcast %cst_49 : f32 to vector<2x32xf32>
    %cst_50 = arith.constant 0.000000e+00 : f32
    %261 = vector.broadcast %cst_50 : f32 to vector<2x32xf32>
    %262 = vector.extract_strided_slice %259 {offsets = [0, 0, 0], sizes = [2, 1, 128], strides = [1, 1, 1]} : vector<2x8x128xf32> to vector<2x1x128xf32>
    %263 = vector.shape_cast %262 : vector<2x1x128xf32> to vector<2x128xf32>
    %cst_51 = arith.constant dense<0.000000e+00> : vector<2x128xf32>
    %264 = tpu.matmul %260, %253, %cst_51 {dimension_numbers = #tpu.dot_dimension_numbers<[1], [0], [0], [1], [0, 0, 1, 1], [], []>} : vector<2x32xf32>, vector<32x128xf32>, vector<2x128xf32> -> vector<2x128xf32>
    %265 = arith.addf %263, %264 : vector<2x128xf32>
    %266 = vector.extract_strided_slice %265 {offsets = [0, 0], sizes = [2, 32], strides = [1, 1]} : vector<2x128xf32> to vector<2x32xf32>
    %267 = arith.negf %266 : vector<2x32xf32>
    %268 = math.exp %267 : vector<2x32xf32>
    %cst_52 = arith.constant 1.000000e+00 : f32
    %269 = vector.broadcast %cst_52 : f32 to vector<2x32xf32>
    %270 = arith.addf %269, %268 : vector<2x32xf32>
    %271 = arith.divf %269, %270 : vector<2x32xf32>
    %272 = vector.extract_strided_slice %265 {offsets = [0, 32], sizes = [2, 32], strides = [1, 1]} : vector<2x128xf32> to vector<2x32xf32>
    %273 = arith.negf %272 : vector<2x32xf32>
    %274 = math.exp %273 : vector<2x32xf32>
    %cst_53 = arith.constant 1.000000e+00 : f32
    %275 = vector.broadcast %cst_53 : f32 to vector<2x32xf32>
    %276 = arith.addf %275, %274 : vector<2x32xf32>
    %277 = arith.divf %275, %276 : vector<2x32xf32>
    %278 = vector.extract_strided_slice %265 {offsets = [0, 64], sizes = [2, 32], strides = [1, 1]} : vector<2x128xf32> to vector<2x32xf32>
    %279 = math.tanh %278 : vector<2x32xf32>
    %280 = vector.extract_strided_slice %265 {offsets = [0, 96], sizes = [2, 32], strides = [1, 1]} : vector<2x128xf32> to vector<2x32xf32>
    %281 = arith.negf %280 : vector<2x32xf32>
    %282 = math.exp %281 : vector<2x32xf32>
    %cst_54 = arith.constant 1.000000e+00 : f32
    %283 = vector.broadcast %cst_54 : f32 to vector<2x32xf32>
    %284 = arith.addf %283, %282 : vector<2x32xf32>
    %285 = arith.divf %283, %284 : vector<2x32xf32>
    %286 = arith.mulf %277, %261 : vector<2x32xf32>
    %287 = arith.mulf %271, %279 : vector<2x32xf32>
    %288 = arith.addf %286, %287 : vector<2x32xf32>
    %289 = math.tanh %288 : vector<2x32xf32>
    %290 = arith.mulf %285, %289 : vector<2x32xf32>
    %291 = vector.extract_strided_slice %259 {offsets = [0, 1, 0], sizes = [2, 1, 128], strides = [1, 1, 1]} : vector<2x8x128xf32> to vector<2x1x128xf32>
    %292 = vector.shape_cast %291 : vector<2x1x128xf32> to vector<2x128xf32>
    %cst_55 = arith.constant dense<0.000000e+00> : vector<2x128xf32>
    %293 = tpu.matmul %290, %253, %cst_55 {dimension_numbers = #tpu.dot_dimension_numbers<[1], [0], [0], [1], [0, 0, 1, 1], [], []>} : vector<2x32xf32>, vector<32x128xf32>, vector<2x128xf32> -> vector<2x128xf32>
    %294 = arith.addf %292, %293 : vector<2x128xf32>
    %295 = vector.extract_strided_slice %294 {offsets = [0, 0], sizes = [2, 32], strides = [1, 1]} : vector<2x128xf32> to vector<2x32xf32>
    %296 = arith.negf %295 : vector<2x32xf32>
    %297 = math.exp %296 : vector<2x32xf32>
    %cst_56 = arith.constant 1.000000e+00 : f32
    %298 = vector.broadcast %cst_56 : f32 to vector<2x32xf32>
    %299 = arith.addf %298, %297 : vector<2x32xf32>
    %300 = arith.divf %298, %299 : vector<2x32xf32>
    %301 = vector.extract_strided_slice %294 {offsets = [0, 32], sizes = [2, 32], strides = [1, 1]} : vector<2x128xf32> to vector<2x32xf32>
    %302 = arith.negf %301 : vector<2x32xf32>
    %303 = math.exp %302 : vector<2x32xf32>
    %cst_57 = arith.constant 1.000000e+00 : f32
    %304 = vector.broadcast %cst_57 : f32 to vector<2x32xf32>
    %305 = arith.addf %304, %303 : vector<2x32xf32>
    %306 = arith.divf %304, %305 : vector<2x32xf32>
    %307 = vector.extract_strided_slice %294 {offsets = [0, 64], sizes = [2, 32], strides = [1, 1]} : vector<2x128xf32> to vector<2x32xf32>
    %308 = math.tanh %307 : vector<2x32xf32>
    %309 = vector.extract_strided_slice %294 {offsets = [0, 96], sizes = [2, 32], strides = [1, 1]} : vector<2x128xf32> to vector<2x32xf32>
    %310 = arith.negf %309 : vector<2x32xf32>
    %311 = math.exp %310 : vector<2x32xf32>
    %cst_58 = arith.constant 1.000000e+00 : f32
    %312 = vector.broadcast %cst_58 : f32 to vector<2x32xf32>
    %313 = arith.addf %312, %311 : vector<2x32xf32>
    %314 = arith.divf %312, %313 : vector<2x32xf32>
    %315 = arith.mulf %306, %288 : vector<2x32xf32>
    %316 = arith.mulf %300, %308 : vector<2x32xf32>
    %317 = arith.addf %315, %316 : vector<2x32xf32>
    %318 = math.tanh %317 : vector<2x32xf32>
    %319 = arith.mulf %314, %318 : vector<2x32xf32>
    %320 = vector.extract_strided_slice %259 {offsets = [0, 2, 0], sizes = [2, 1, 128], strides = [1, 1, 1]} : vector<2x8x128xf32> to vector<2x1x128xf32>
    %321 = vector.shape_cast %320 : vector<2x1x128xf32> to vector<2x128xf32>
    %cst_59 = arith.constant dense<0.000000e+00> : vector<2x128xf32>
    %322 = tpu.matmul %319, %253, %cst_59 {dimension_numbers = #tpu.dot_dimension_numbers<[1], [0], [0], [1], [0, 0, 1, 1], [], []>} : vector<2x32xf32>, vector<32x128xf32>, vector<2x128xf32> -> vector<2x128xf32>
    %323 = arith.addf %321, %322 : vector<2x128xf32>
    %324 = vector.extract_strided_slice %323 {offsets = [0, 0], sizes = [2, 32], strides = [1, 1]} : vector<2x128xf32> to vector<2x32xf32>
    %325 = arith.negf %324 : vector<2x32xf32>
    %326 = math.exp %325 : vector<2x32xf32>
    %cst_60 = arith.constant 1.000000e+00 : f32
    %327 = vector.broadcast %cst_60 : f32 to vector<2x32xf32>
    %328 = arith.addf %327, %326 : vector<2x32xf32>
    %329 = arith.divf %327, %328 : vector<2x32xf32>
    %330 = vector.extract_strided_slice %323 {offsets = [0, 32], sizes = [2, 32], strides = [1, 1]} : vector<2x128xf32> to vector<2x32xf32>
    %331 = arith.negf %330 : vector<2x32xf32>
    %332 = math.exp %331 : vector<2x32xf32>
    %cst_61 = arith.constant 1.000000e+00 : f32
    %333 = vector.broadcast %cst_61 : f32 to vector<2x32xf32>
    %334 = arith.addf %333, %332 : vector<2x32xf32>
    %335 = arith.divf %333, %334 : vector<2x32xf32>
    %336 = vector.extract_strided_slice %323 {offsets = [0, 64], sizes = [2, 32], strides = [1, 1]} : vector<2x128xf32> to vector<2x32xf32>
    %337 = math.tanh %336 : vector<2x32xf32>
    %338 = vector.extract_strided_slice %323 {offsets = [0, 96], sizes = [2, 32], strides = [1, 1]} : vector<2x128xf32> to vector<2x32xf32>
    %339 = arith.negf %338 : vector<2x32xf32>
    %340 = math.exp %339 : vector<2x32xf32>
    %cst_62 = arith.constant 1.000000e+00 : f32
    %341 = vector.broadcast %cst_62 : f32 to vector<2x32xf32>
    %342 = arith.addf %341, %340 : vector<2x32xf32>
    %343 = arith.divf %341, %342 : vector<2x32xf32>
    %344 = arith.mulf %335, %317 : vector<2x32xf32>
    %345 = arith.mulf %329, %337 : vector<2x32xf32>
    %346 = arith.addf %344, %345 : vector<2x32xf32>
    %347 = math.tanh %346 : vector<2x32xf32>
    %348 = arith.mulf %343, %347 : vector<2x32xf32>
    %349 = vector.extract_strided_slice %259 {offsets = [0, 3, 0], sizes = [2, 1, 128], strides = [1, 1, 1]} : vector<2x8x128xf32> to vector<2x1x128xf32>
    %350 = vector.shape_cast %349 : vector<2x1x128xf32> to vector<2x128xf32>
    %cst_63 = arith.constant dense<0.000000e+00> : vector<2x128xf32>
    %351 = tpu.matmul %348, %253, %cst_63 {dimension_numbers = #tpu.dot_dimension_numbers<[1], [0], [0], [1], [0, 0, 1, 1], [], []>} : vector<2x32xf32>, vector<32x128xf32>, vector<2x128xf32> -> vector<2x128xf32>
    %352 = arith.addf %350, %351 : vector<2x128xf32>
    %353 = vector.extract_strided_slice %352 {offsets = [0, 0], sizes = [2, 32], strides = [1, 1]} : vector<2x128xf32> to vector<2x32xf32>
    %354 = arith.negf %353 : vector<2x32xf32>
    %355 = math.exp %354 : vector<2x32xf32>
    %cst_64 = arith.constant 1.000000e+00 : f32
    %356 = vector.broadcast %cst_64 : f32 to vector<2x32xf32>
    %357 = arith.addf %356, %355 : vector<2x32xf32>
    %358 = arith.divf %356, %357 : vector<2x32xf32>
    %359 = vector.extract_strided_slice %352 {offsets = [0, 32], sizes = [2, 32], strides = [1, 1]} : vector<2x128xf32> to vector<2x32xf32>
    %360 = arith.negf %359 : vector<2x32xf32>
    %361 = math.exp %360 : vector<2x32xf32>
    %cst_65 = arith.constant 1.000000e+00 : f32
    %362 = vector.broadcast %cst_65 : f32 to vector<2x32xf32>
    %363 = arith.addf %362, %361 : vector<2x32xf32>
    %364 = arith.divf %362, %363 : vector<2x32xf32>
    %365 = vector.extract_strided_slice %352 {offsets = [0, 64], sizes = [2, 32], strides = [1, 1]} : vector<2x128xf32> to vector<2x32xf32>
    %366 = math.tanh %365 : vector<2x32xf32>
    %367 = vector.extract_strided_slice %352 {offsets = [0, 96], sizes = [2, 32], strides = [1, 1]} : vector<2x128xf32> to vector<2x32xf32>
    %368 = arith.negf %367 : vector<2x32xf32>
    %369 = math.exp %368 : vector<2x32xf32>
    %cst_66 = arith.constant 1.000000e+00 : f32
    %370 = vector.broadcast %cst_66 : f32 to vector<2x32xf32>
    %371 = arith.addf %370, %369 : vector<2x32xf32>
    %372 = arith.divf %370, %371 : vector<2x32xf32>
    %373 = arith.mulf %364, %346 : vector<2x32xf32>
    %374 = arith.mulf %358, %366 : vector<2x32xf32>
    %375 = arith.addf %373, %374 : vector<2x32xf32>
    %376 = math.tanh %375 : vector<2x32xf32>
    %377 = arith.mulf %372, %376 : vector<2x32xf32>
    %378 = vector.extract_strided_slice %259 {offsets = [0, 4, 0], sizes = [2, 1, 128], strides = [1, 1, 1]} : vector<2x8x128xf32> to vector<2x1x128xf32>
    %379 = vector.shape_cast %378 : vector<2x1x128xf32> to vector<2x128xf32>
    %cst_67 = arith.constant dense<0.000000e+00> : vector<2x128xf32>
    %380 = tpu.matmul %377, %253, %cst_67 {dimension_numbers = #tpu.dot_dimension_numbers<[1], [0], [0], [1], [0, 0, 1, 1], [], []>} : vector<2x32xf32>, vector<32x128xf32>, vector<2x128xf32> -> vector<2x128xf32>
    %381 = arith.addf %379, %380 : vector<2x128xf32>
    %382 = vector.extract_strided_slice %381 {offsets = [0, 0], sizes = [2, 32], strides = [1, 1]} : vector<2x128xf32> to vector<2x32xf32>
    %383 = arith.negf %382 : vector<2x32xf32>
    %384 = math.exp %383 : vector<2x32xf32>
    %cst_68 = arith.constant 1.000000e+00 : f32
    %385 = vector.broadcast %cst_68 : f32 to vector<2x32xf32>
    %386 = arith.addf %385, %384 : vector<2x32xf32>
    %387 = arith.divf %385, %386 : vector<2x32xf32>
    %388 = vector.extract_strided_slice %381 {offsets = [0, 32], sizes = [2, 32], strides = [1, 1]} : vector<2x128xf32> to vector<2x32xf32>
    %389 = arith.negf %388 : vector<2x32xf32>
    %390 = math.exp %389 : vector<2x32xf32>
    %cst_69 = arith.constant 1.000000e+00 : f32
    %391 = vector.broadcast %cst_69 : f32 to vector<2x32xf32>
    %392 = arith.addf %391, %390 : vector<2x32xf32>
    %393 = arith.divf %391, %392 : vector<2x32xf32>
    %394 = vector.extract_strided_slice %381 {offsets = [0, 64], sizes = [2, 32], strides = [1, 1]} : vector<2x128xf32> to vector<2x32xf32>
    %395 = math.tanh %394 : vector<2x32xf32>
    %396 = vector.extract_strided_slice %381 {offsets = [0, 96], sizes = [2, 32], strides = [1, 1]} : vector<2x128xf32> to vector<2x32xf32>
    %397 = arith.negf %396 : vector<2x32xf32>
    %398 = math.exp %397 : vector<2x32xf32>
    %cst_70 = arith.constant 1.000000e+00 : f32
    %399 = vector.broadcast %cst_70 : f32 to vector<2x32xf32>
    %400 = arith.addf %399, %398 : vector<2x32xf32>
    %401 = arith.divf %399, %400 : vector<2x32xf32>
    %402 = arith.mulf %393, %375 : vector<2x32xf32>
    %403 = arith.mulf %387, %395 : vector<2x32xf32>
    %404 = arith.addf %402, %403 : vector<2x32xf32>
    %405 = math.tanh %404 : vector<2x32xf32>
    %406 = arith.mulf %401, %405 : vector<2x32xf32>
    %407 = vector.extract_strided_slice %259 {offsets = [0, 5, 0], sizes = [2, 1, 128], strides = [1, 1, 1]} : vector<2x8x128xf32> to vector<2x1x128xf32>
    %408 = vector.shape_cast %407 : vector<2x1x128xf32> to vector<2x128xf32>
    %cst_71 = arith.constant dense<0.000000e+00> : vector<2x128xf32>
    %409 = tpu.matmul %406, %253, %cst_71 {dimension_numbers = #tpu.dot_dimension_numbers<[1], [0], [0], [1], [0, 0, 1, 1], [], []>} : vector<2x32xf32>, vector<32x128xf32>, vector<2x128xf32> -> vector<2x128xf32>
    %410 = arith.addf %408, %409 : vector<2x128xf32>
    %411 = vector.extract_strided_slice %410 {offsets = [0, 0], sizes = [2, 32], strides = [1, 1]} : vector<2x128xf32> to vector<2x32xf32>
    %412 = arith.negf %411 : vector<2x32xf32>
    %413 = math.exp %412 : vector<2x32xf32>
    %cst_72 = arith.constant 1.000000e+00 : f32
    %414 = vector.broadcast %cst_72 : f32 to vector<2x32xf32>
    %415 = arith.addf %414, %413 : vector<2x32xf32>
    %416 = arith.divf %414, %415 : vector<2x32xf32>
    %417 = vector.extract_strided_slice %410 {offsets = [0, 32], sizes = [2, 32], strides = [1, 1]} : vector<2x128xf32> to vector<2x32xf32>
    %418 = arith.negf %417 : vector<2x32xf32>
    %419 = math.exp %418 : vector<2x32xf32>
    %cst_73 = arith.constant 1.000000e+00 : f32
    %420 = vector.broadcast %cst_73 : f32 to vector<2x32xf32>
    %421 = arith.addf %420, %419 : vector<2x32xf32>
    %422 = arith.divf %420, %421 : vector<2x32xf32>
    %423 = vector.extract_strided_slice %410 {offsets = [0, 64], sizes = [2, 32], strides = [1, 1]} : vector<2x128xf32> to vector<2x32xf32>
    %424 = math.tanh %423 : vector<2x32xf32>
    %425 = vector.extract_strided_slice %410 {offsets = [0, 96], sizes = [2, 32], strides = [1, 1]} : vector<2x128xf32> to vector<2x32xf32>
    %426 = arith.negf %425 : vector<2x32xf32>
    %427 = math.exp %426 : vector<2x32xf32>
    %cst_74 = arith.constant 1.000000e+00 : f32
    %428 = vector.broadcast %cst_74 : f32 to vector<2x32xf32>
    %429 = arith.addf %428, %427 : vector<2x32xf32>
    %430 = arith.divf %428, %429 : vector<2x32xf32>
    %431 = arith.mulf %422, %404 : vector<2x32xf32>
    %432 = arith.mulf %416, %424 : vector<2x32xf32>
    %433 = arith.addf %431, %432 : vector<2x32xf32>
    %434 = math.tanh %433 : vector<2x32xf32>
    %435 = arith.mulf %430, %434 : vector<2x32xf32>
    %436 = vector.extract_strided_slice %259 {offsets = [0, 6, 0], sizes = [2, 1, 128], strides = [1, 1, 1]} : vector<2x8x128xf32> to vector<2x1x128xf32>
    %437 = vector.shape_cast %436 : vector<2x1x128xf32> to vector<2x128xf32>
    %cst_75 = arith.constant dense<0.000000e+00> : vector<2x128xf32>
    %438 = tpu.matmul %435, %253, %cst_75 {dimension_numbers = #tpu.dot_dimension_numbers<[1], [0], [0], [1], [0, 0, 1, 1], [], []>} : vector<2x32xf32>, vector<32x128xf32>, vector<2x128xf32> -> vector<2x128xf32>
    %439 = arith.addf %437, %438 : vector<2x128xf32>
    %440 = vector.extract_strided_slice %439 {offsets = [0, 0], sizes = [2, 32], strides = [1, 1]} : vector<2x128xf32> to vector<2x32xf32>
    %441 = arith.negf %440 : vector<2x32xf32>
    %442 = math.exp %441 : vector<2x32xf32>
    %cst_76 = arith.constant 1.000000e+00 : f32
    %443 = vector.broadcast %cst_76 : f32 to vector<2x32xf32>
    %444 = arith.addf %443, %442 : vector<2x32xf32>
    %445 = arith.divf %443, %444 : vector<2x32xf32>
    %446 = vector.extract_strided_slice %439 {offsets = [0, 32], sizes = [2, 32], strides = [1, 1]} : vector<2x128xf32> to vector<2x32xf32>
    %447 = arith.negf %446 : vector<2x32xf32>
    %448 = math.exp %447 : vector<2x32xf32>
    %cst_77 = arith.constant 1.000000e+00 : f32
    %449 = vector.broadcast %cst_77 : f32 to vector<2x32xf32>
    %450 = arith.addf %449, %448 : vector<2x32xf32>
    %451 = arith.divf %449, %450 : vector<2x32xf32>
    %452 = vector.extract_strided_slice %439 {offsets = [0, 64], sizes = [2, 32], strides = [1, 1]} : vector<2x128xf32> to vector<2x32xf32>
    %453 = math.tanh %452 : vector<2x32xf32>
    %454 = vector.extract_strided_slice %439 {offsets = [0, 96], sizes = [2, 32], strides = [1, 1]} : vector<2x128xf32> to vector<2x32xf32>
    %455 = arith.negf %454 : vector<2x32xf32>
    %456 = math.exp %455 : vector<2x32xf32>
    %cst_78 = arith.constant 1.000000e+00 : f32
    %457 = vector.broadcast %cst_78 : f32 to vector<2x32xf32>
    %458 = arith.addf %457, %456 : vector<2x32xf32>
    %459 = arith.divf %457, %458 : vector<2x32xf32>
    %460 = arith.mulf %451, %433 : vector<2x32xf32>
    %461 = arith.mulf %445, %453 : vector<2x32xf32>
    %462 = arith.addf %460, %461 : vector<2x32xf32>
    %463 = math.tanh %462 : vector<2x32xf32>
    %464 = arith.mulf %459, %463 : vector<2x32xf32>
    %465 = vector.extract_strided_slice %259 {offsets = [0, 7, 0], sizes = [2, 1, 128], strides = [1, 1, 1]} : vector<2x8x128xf32> to vector<2x1x128xf32>
    %466 = vector.shape_cast %465 : vector<2x1x128xf32> to vector<2x128xf32>
    %cst_79 = arith.constant dense<0.000000e+00> : vector<2x128xf32>
    %467 = tpu.matmul %464, %253, %cst_79 {dimension_numbers = #tpu.dot_dimension_numbers<[1], [0], [0], [1], [0, 0, 1, 1], [], []>} : vector<2x32xf32>, vector<32x128xf32>, vector<2x128xf32> -> vector<2x128xf32>
    %468 = arith.addf %466, %467 : vector<2x128xf32>
    %469 = vector.extract_strided_slice %468 {offsets = [0, 0], sizes = [2, 32], strides = [1, 1]} : vector<2x128xf32> to vector<2x32xf32>
    %470 = arith.negf %469 : vector<2x32xf32>
    %471 = math.exp %470 : vector<2x32xf32>
    %cst_80 = arith.constant 1.000000e+00 : f32
    %472 = vector.broadcast %cst_80 : f32 to vector<2x32xf32>
    %473 = arith.addf %472, %471 : vector<2x32xf32>
    %474 = arith.divf %472, %473 : vector<2x32xf32>
    %475 = vector.extract_strided_slice %468 {offsets = [0, 32], sizes = [2, 32], strides = [1, 1]} : vector<2x128xf32> to vector<2x32xf32>
    %476 = arith.negf %475 : vector<2x32xf32>
    %477 = math.exp %476 : vector<2x32xf32>
    %cst_81 = arith.constant 1.000000e+00 : f32
    %478 = vector.broadcast %cst_81 : f32 to vector<2x32xf32>
    %479 = arith.addf %478, %477 : vector<2x32xf32>
    %480 = arith.divf %478, %479 : vector<2x32xf32>
    %481 = vector.extract_strided_slice %468 {offsets = [0, 64], sizes = [2, 32], strides = [1, 1]} : vector<2x128xf32> to vector<2x32xf32>
    %482 = math.tanh %481 : vector<2x32xf32>
    %483 = vector.extract_strided_slice %468 {offsets = [0, 96], sizes = [2, 32], strides = [1, 1]} : vector<2x128xf32> to vector<2x32xf32>
    %484 = arith.negf %483 : vector<2x32xf32>
    %485 = math.exp %484 : vector<2x32xf32>
    %cst_82 = arith.constant 1.000000e+00 : f32
    %486 = vector.broadcast %cst_82 : f32 to vector<2x32xf32>
    %487 = arith.addf %486, %485 : vector<2x32xf32>
    %488 = arith.divf %486, %487 : vector<2x32xf32>
    %489 = arith.mulf %480, %462 : vector<2x32xf32>
    %490 = arith.mulf %474, %482 : vector<2x32xf32>
    %491 = arith.addf %489, %490 : vector<2x32xf32>
    %492 = math.tanh %491 : vector<2x32xf32>
    %493 = arith.mulf %488, %492 : vector<2x32xf32>
    %494 = vector.shape_cast %290 : vector<2x32xf32> to vector<2x1x32xf32>
    %495 = vector.shape_cast %319 : vector<2x32xf32> to vector<2x1x32xf32>
    %496 = vector.shape_cast %348 : vector<2x32xf32> to vector<2x1x32xf32>
    %497 = vector.shape_cast %377 : vector<2x32xf32> to vector<2x1x32xf32>
    %498 = vector.shape_cast %406 : vector<2x32xf32> to vector<2x1x32xf32>
    %499 = vector.shape_cast %435 : vector<2x32xf32> to vector<2x1x32xf32>
    %500 = vector.shape_cast %464 : vector<2x32xf32> to vector<2x1x32xf32>
    %501 = vector.shape_cast %493 : vector<2x32xf32> to vector<2x1x32xf32>
    %502 = tpu.concatenate %494, %495, %496, %497, %498, %499, %500, %501 in 1 : vector<2x1x32xf32>, vector<2x1x32xf32>, vector<2x1x32xf32>, vector<2x1x32xf32>, vector<2x1x32xf32>, vector<2x1x32xf32>, vector<2x1x32xf32>, vector<2x1x32xf32> -> vector<2x8x32xf32>
    %503 = vector.shape_cast %502 : vector<2x8x32xf32> to vector<16x32xf32>
    %c0_83 = arith.constant 0 : index
    %c0_84 = arith.constant 0 : index
    %504 = vector.load %arg8[%c0_83, %c0_84] : memref<32x16xf32, #tpu.memory_space<vmem>>, vector<32x16xf32>
    %cst_85 = arith.constant dense<0.000000e+00> : vector<16x16xf32>
    %505 = tpu.matmul %503, %504, %cst_85 {dimension_numbers = #tpu.dot_dimension_numbers<[1], [0], [0], [1], [0, 0, 1, 1], [], []>} : vector<16x32xf32>, vector<32x16xf32>, vector<16x16xf32> -> vector<16x16xf32>
    %c0_86 = arith.constant 0 : index
    %c0_87 = arith.constant 0 : index
    %506 = vector.load %arg9[%c0_86, %c0_87] : memref<1x16xf32, #tpu.memory_space<vmem>>, vector<1x16xf32>
    %507 = vector.broadcast %506 : vector<1x16xf32> to vector<16x16xf32>
    %508 = arith.addf %505, %507 : vector<16x16xf32>
    %509 = vector.shape_cast %508 : vector<16x16xf32> to vector<2x8x16xf32>
    %c0_88 = arith.constant 0 : index
    %c0_89 = arith.constant 0 : index
    %c0_90 = arith.constant 0 : index
    %510 = vector.load %arg10[%c0_88, %c0_89, %c0_90] : memref<2x8x16xf32, #tpu.memory_space<vmem>>, vector<2x8x16xf32>
    tpu.vector_store %arg10[%c0_88, %c0_89, %c0_90], %509 {strides = array<i32>} : memref<2x8x16xf32, #tpu.memory_space<vmem>>, vector<2x8x16xf32>,
    return
  }
  func.func @transform_0(%arg0: i32) -> (i32, i32, i32) {
    %c0_i32 = arith.constant 0 : i32
    %c0_i32_0 = arith.constant 0 : i32
    %c0_i32_1 = arith.constant 0 : i32
    %c0_i32_2 = arith.constant 0 : i32
    return %c0_i32, %c0_i32_0, %c0_i32_1 : i32, i32, i32
  }
  func.func @transform_1(%arg0: i32) -> (i32, i32) {
    %c0_i32 = arith.constant 0 : i32
    %c0_i32_0 = arith.constant 0 : i32
    %c0_i32_1 = arith.constant 0 : i32
    return %c0_i32, %c0_i32_0 : i32, i32
  }
  func.func @transform_2(%arg0: i32) -> (i32, i32) {
    %c0_i32 = arith.constant 0 : i32
    %c0_i32_0 = arith.constant 0 : i32
    %c0_i32_1 = arith.constant 0 : i32
    return %c0_i32, %c0_i32_0 : i32, i32
  }
  func.func @transform_3(%arg0: i32) -> (i32, i32) {
    %c0_i32 = arith.constant 0 : i32
    %c0_i32_0 = arith.constant 0 : i32
    %c0_i32_1 = arith.constant 0 : i32
    return %c0_i32, %c0_i32_0 : i32, i32
  }
  func.func @transform_4(%arg0: i32) -> (i32, i32) {
    %c0_i32 = arith.constant 0 : i32
    %c0_i32_0 = arith.constant 0 : i32
    %c0_i32_1 = arith.constant 0 : i32
    return %c0_i32, %c0_i32_0 : i32, i32
  }
  func.func @transform_5(%arg0: i32) -> (i32, i32) {
    %c0_i32 = arith.constant 0 : i32
    %c0_i32_0 = arith.constant 0 : i32
    %c0_i32_1 = arith.constant 0 : i32
    return %c0_i32, %c0_i32_0 : i32, i32
  }
  func.func @transform_6(%arg0: i32) -> (i32, i32) {
    %c0_i32 = arith.constant 0 : i32
    %c0_i32_0 = arith.constant 0 : i32
    %c0_i32_1 = arith.constant 0 : i32
    return %c0_i32, %c0_i32_0 : i32, i32
  }
  func.func @transform_7(%arg0: i32) -> (i32, i32) {
    %c0_i32 = arith.constant 0 : i32
    %c0_i32_0 = arith.constant 0 : i32
    %c0_i32_1 = arith.constant 0 : i32
    return %c0_i32, %c0_i32_0 : i32, i32
  }
  func.func @transform_8(%arg0: i32) -> (i32, i32) {
    %c0_i32 = arith.constant 0 : i32
    %c0_i32_0 = arith.constant 0 : i32
    %c0_i32_1 = arith.constant 0 : i32
    return %c0_i32, %c0_i32_0 : i32, i32
  }
  func.func @transform_9(%arg0: i32) -> (i32, i32, i32) {
    %c0_i32 = arith.constant 0 : i32
    %c0_i32_0 = arith.constant 0 : i32
    %c0_i32_1 = arith.constant 0 : i32
    %c0_i32_2 = arith.constant 0 : i32
    return %c0_i32, %c0_i32_0, %c0_i32_1 : i32, i32, i32
  }
}

</mosaic_0001>

<llo_original>
// kernel: rnn_forward.1
$region0: #{rnn_forward.1}
  #allocation0 [shape = 'u32[]', space=smem, size = 0x4, offset = 0x4, fixed_abs, tag = 'smem constant byte address 0x4 - core index']
  #allocation1 [shape = 'u32[144,128]{1,0:T(1,128)}', space=vmem, size = 0x12000, scoped, tag = 'internal scratch']
  %s0 = inlined_call_operand.hbm [shape: f32[2,8,16], index: 0, kind: input, shape index: {}]
  %s1 = inlined_call_operand.hbm [shape: f32[16,128], index: 1, kind: input, shape index: {}]
  %s2 = inlined_call_operand.vmem [shape: f32[32,128], index: 2, kind: input, shape index: {}]
  %s3 = inlined_call_operand.vmem [shape: f32[1,128], index: 3, kind: input, shape index: {}]
  %s4 = inlined_call_operand.vmem [shape: f32[32,128], index: 4, kind: input, shape index: {}]
  %s5 = inlined_call_operand.hbm [shape: f32[32,128], index: 5, kind: input, shape index: {}]
  %s6 = inlined_call_operand.vmem [shape: f32[1,128], index: 6, kind: input, shape index: {}]
  %s7 = inlined_call_operand.vmem [shape: f32[32,16], index: 7, kind: input, shape index: {}]
  %s8 = inlined_call_operand.hbm [shape: f32[1,16], index: 8, kind: input, shape index: {}]
  %s9 = inlined_call_operand.hbm [shape: f32[2,8,16], index: 9, kind: output, shape index: {}]
  %s10 = sld [smem:[#allocation0]]
  $region62: #{rnn_forward.1} parent=0
    _
  %s12 = ssub.s32 1, %s10
  %s13 = scalar_select 0, %s12, %s10
  $region1: #{rnn_forward.1} parent=0
    #allocation2 [shape = 'u8[8192]{0}', space=vmem, size = 0x2000, scoped, tag = 'input window, operand 0, single buffered']
    #allocation3 [shape = 's32[1]{0}', space=sflag, size = 0x4, scoped, tag = 'scoped memory for rnn_forward.1']
    #allocation4 [shape = 's32[1]{0}', space=sflag, size = 0x4, scoped, tag = 'scoped memory for rnn_forward.1']
    #allocation5 [shape = 'u8[8192]{0}', space=vmem, size = 0x2000, scoped, tag = 'input window, operand 1, single buffered']
    #allocation6 [shape = 's32[1]{0}', space=sflag, size = 0x4, scoped, tag = 'scoped memory for rnn_forward.1']
    #allocation7 [shape = 'u8[16384]{0}', space=vmem, size = 0x4000, scoped, tag = 'input window, operand 5, single buffered']
    #allocation8 [shape = 'u8[512]{0}', space=vmem, size = 0x400, scoped, tag = 'input window, operand 8, single buffered']
    #allocation9 [shape = 's32[1]{0}', space=sflag, size = 0x4, scoped, tag = 'scoped memory for rnn_forward.1']
    #allocation10 [shape = 'u8[8192]{0}', space=vmem, size = 0x2000, scoped, tag = 'output window, operand 0, single buffered']
    %14 = vsyncpa [#allocation3], 0
    %15 = vsyncpa [#allocation6], 0
    %16 = vsyncpa [#allocation9], 0
    %17 = vsyncpa [#allocation4], 0
    // Predicated region
    $region2: #{rnn_forward.1} parent=1 // pred_check
      _
    $region3: #{rnn_forward.1} parent=1 // pred_check_branch
      %19 = sbr.rel (0) target = $region5
    $region4: #{rnn_forward.1} parent=1 // pred_region
      %s21 = ssub.s32 256, 256
      %22 = vsyncadd [#allocation3], %s21
      %s23 = sshll.u32 [#allocation2], 4
      %s24 = int_to_ptr.vmem [resolvable:$true] %s23
      %29 = dma.hbm_to_vmem [thread:$0]  %s0, 256, %s24, [#allocation3], 128, 128, 8
    $region5: #{rnn_forward.1} parent=1 // pred_fallthru
      _
    // Predicated region
    $region6: #{rnn_forward.1} parent=1 // pred_check
      _
    $region7: #{rnn_forward.1} parent=1 // pred_check_branch
      %31 = sbr.rel (0) target = $region9
    $region8: #{rnn_forward.1} parent=1 // pred_region
      %s33 = ssub.s32 256, 256
      %34 = vsyncadd [#allocation6], %s33
      %s35 = sshll.u32 [#allocation5], 4
      %s36 = int_to_ptr.vmem [resolvable:$true] %s35
      %41 = dma.hbm_to_vmem [thread:$0]  %s1, 256, %s36, [#allocation6], 128, 128, 8
    $region9: #{rnn_forward.1} parent=1 // pred_fallthru
      _
    // Predicated region
    $region10: #{rnn_forward.1} parent=1 // pred_check
      _
    $region11: #{rnn_forward.1} parent=1 // pred_check_branch
      %43 = sbr.rel (0) target = $region13
    $region12: #{rnn_forward.1} parent=1 // pred_region
      _
    $region13: #{rnn_forward.1} parent=1 // pred_fallthru
      _
    // Predicated region
    $region14: #{rnn_forward.1} parent=1 // pred_check
      _
    $region15: #{rnn_forward.1} parent=1 // pred_check_branch
      %45 = sbr.rel (0) target = $region17
    $region16: #{rnn_forward.1} parent=1 // pred_region
      _
    $region17: #{rnn_forward.1} parent=1 // pred_fallthru
      _
    // Predicated region
    $region18: #{rnn_forward.1} parent=1 // pred_check
      _
    $region19: #{rnn_forward.1} parent=1 // pred_check_branch
      %47 = sbr.rel (0) target = $region21
    $region20: #{rnn_forward.1} parent=1 // pred_region
      _
    $region21: #{rnn_forward.1} parent=1 // pred_fallthru
      _
    // Predicated region
    $region22: #{rnn_forward.1} parent=1 // pred_check
      _
    $region23: #{rnn_forward.1} parent=1 // pred_check_branch
      %49 = sbr.rel (0) target = $region25
    $region24: #{rnn_forward.1} parent=1 // pred_region
      %s51 = ssub.s32 512, 512
      %52 = vsyncadd [#allocation6], %s51
      %s53 = sshll.u32 [#allocation7], 4
      %s54 = int_to_ptr.vmem [resolvable:$true] %s53
      %59 = dma.hbm_to_vmem [thread:$0]  %s5, 512, %s54, [#allocation6], 128, 128, 8
    $region25: #{rnn_forward.1} parent=1 // pred_fallthru
      _
    // Predicated region
    $region26: #{rnn_forward.1} parent=1 // pred_check
      _
    $region27: #{rnn_forward.1} parent=1 // pred_check_branch
      %61 = sbr.rel (0) target = $region29
    $region28: #{rnn_forward.1} parent=1 // pred_region
      _
    $region29: #{rnn_forward.1} parent=1 // pred_fallthru
      _
    // Predicated region
    $region30: #{rnn_forward.1} parent=1 // pred_check
      _
    $region31: #{rnn_forward.1} parent=1 // pred_check_branch
      %63 = sbr.rel (0) target = $region33
    $region32: #{rnn_forward.1} parent=1 // pred_region
      _
    $region33: #{rnn_forward.1} parent=1 // pred_fallthru
      _
    // Predicated region
    $region34: #{rnn_forward.1} parent=1 // pred_check
      _
    $region35: #{rnn_forward.1} parent=1 // pred_check_branch
      %65 = sbr.rel (0) target = $region37
    $region36: #{rnn_forward.1} parent=1 // pred_region
      %s67 = ssub.s32 16, 16
      %68 = vsyncadd [#allocation9], %s67
      %s70 = sshll.u32 [#allocation8], 4
      %s71 = int_to_ptr.vmem [resolvable:$true] %s70
      %73 = dma.hbm_to_vmem [thread:$0]  %s8, 16, %s71, [#allocation9]
    $region37: #{rnn_forward.1} parent=1 // pred_fallthru
      _
    // Predicated region
    $region38: #{rnn_forward.1} parent=1 // pred_check
      _
    $region39: #{rnn_forward.1} parent=1 // pred_check_branch
      %75 = sbr.rel (0) target = $region41
    $region40: #{rnn_forward.1} parent=1 // pred_region
      %76 = dma.done [#allocation3], 256
    $region41: #{rnn_forward.1} parent=1 // pred_fallthru
      _
    // Predicated region
    $region42: #{rnn_forward.1} parent=1 // pred_check
      _
    $region43: #{rnn_forward.1} parent=1 // pred_check_branch
      %78 = sbr.rel (0) target = $region45
    $region44: #{rnn_forward.1} parent=1 // pred_region
      %79 = dma.done [#allocation6], 256
    $region45: #{rnn_forward.1} parent=1 // pred_fallthru
      _
    // Predicated region
    $region46: #{rnn_forward.1} parent=1 // pred_check
      _
    $region47: #{rnn_forward.1} parent=1 // pred_check_branch
      %81 = sbr.rel (0) target = $region49
    $region48: #{rnn_forward.1} parent=1 // pred_region
      %82 = dma.done [#allocation6], 512
    $region49: #{rnn_forward.1} parent=1 // pred_fallthru
      _
    // Predicated region
    $region50: #{rnn_forward.1} parent=1 // pred_check
      _
    $region51: #{rnn_forward.1} parent=1 // pred_check_branch
      %84 = sbr.rel (0) target = $region53
    $region52: #{rnn_forward.1} parent=1 // pred_region
      %85 = dma.done [#allocation9], 16
    $region53: #{rnn_forward.1} parent=1 // pred_fallthru
      _
    %v86 = vld [vmem:[#allocation2] sm:$0xff]
    %v87 = vld [vmem:[#allocation2 + $0x8] sm:$0xff]
    %v88 = vld [vmem:[#allocation5] sm:$0xff]
    %v89 = vld [vmem:[#allocation5 + $0x8] sm:$0xff]
    %v90 = vld [vmem:[%s2] sm:$0xff]
    %v91 = vld [vmem:[%s2 + $0x8] sm:$0xff]
    %v92 = vld [vmem:[%s2 + $0x10] sm:$0xff]
    %v93 = vld [vmem:[%s2 + $0x18] sm:$0xff]
    %v94 = vld [vmem:[%s3] sm:$0x1]
    %v96 = vlaneseq
    %v97 = vshrl.u32 %v96, 7
    %v98 = vsub.s32 0, %v97
    %v99 = vrot.slane %v94, %v98
    %vm101 = vcmask 130048
    %v103 = vsel %vm101, %v86, 0
    %v106 = vsel %vm101, %v87, 0
    %108 = vmatprep.subr.mxu0 0.0
    %109 = vmatpush1.msra.mxu0 %v88
    %110 = vmatprep.subr.mxu0 0.0
    %111 = vmatpush1.msra.mxu0 %v89
    %112 = vmatprep.subr.mxu0 0.0
    %113 = vmatpush1.msra.mxu0 0.0
    %114 = vmatprep.subr.mxu0 0.0
    %115 = vmatpush1.msra.mxu0 0.0
    %116 = vmatprep.subr.mxu0 0.0
    %117 = vmatpush1.msra.mxu0 0.0
    %118 = vmatprep.subr.mxu0 0.0
    %119 = vmatpush1.msra.mxu0 0.0
    %120 = vmatprep.subr.mxu0 0.0
    %121 = vmatpush1.msra.mxu0 0.0
    %122 = vmatprep.subr.mxu0 0.0
    %123 = vmatpush1.msra.mxu0 0.0
    %124 = vmatprep.subr.mxu0 0.0
    %125 = vmatpush1.msra.mxu0 0.0
    %126 = vmatprep.subr.mxu0 0.0
    %127 = vmatpush1.msra.mxu0 0.0
    %128 = vmatprep.subr.mxu0 0.0
    %129 = vmatpush1.msra.mxu0 0.0
    %130 = vmatprep.subr.mxu0 0.0
    %131 = vmatpush1.msra.mxu0 0.0
    %132 = vmatprep.subr.mxu0 0.0
    %133 = vmatpush1.msra.mxu0 0.0
    %134 = vmatprep.subr.mxu0 0.0
    %135 = vmatpush1.msra.mxu0 0.0
    %136 = vmatprep.subr.mxu0 0.0
    %137 = vmatpush1.msra.mxu0 0.0
    %138 = vmatprep.subr.mxu0 0.0
    %139 = vmatpush1.msra.mxu0 0.0
    %140 = vmatprep.subr.mxu0 0.0
    %141 = vmatpush1.msra.mxu0 0.0
    %142 = vmatprep.subr.mxu0 0.0
    %143 = vmatpush1.msra.mxu0 0.0
    %144 = vmatprep.subr.mxu0 0.0
    %145 = vmatpush1.msra.mxu0 0.0
    %146 = vmatprep.subr.mxu0 0.0
    %147 = vmatpush1.msra.mxu0 0.0
    %148 = vmatprep.subr.mxu0 0.0
    %149 = vmatpush1.msra.mxu0 0.0
    %150 = vmatprep.subr.mxu0 0.0
    %151 = vmatpush1.msra.mxu0 0.0
    %152 = vmatprep.subr.mxu0 0.0
    %153 = vmatpush1.msra.mxu0 0.0
    %154 = vmatprep.subr.mxu0 0.0
    %155 = vmatpush1.msra.mxu0 0.0
    %156 = vmatprep.subr.mxu0 0.0
    %157 = vmatpush1.msra.mxu0 0.0
    %158 = vmatprep.subr.mxu0 0.0
    %159 = vmatpush1.msra.mxu0 0.0
    %160 = vmatprep.subr.mxu0 0.0
    %161 = vmatpush1.msra.mxu0 0.0
    %162 = vmatprep.subr.mxu0 0.0
    %163 = vmatpush1.msra.mxu0 0.0
    %164 = vmatprep.subr.mxu0 0.0
    %165 = vmatpush1.msra.mxu0 0.0
    %166 = vmatprep.subr.mxu0 0.0
    %167 = vmatpush1.msra.mxu0 0.0
    %168 = vmatprep.subr.mxu0 0.0
    %169 = vmatpush1.msra.mxu0 0.0
    %170 = vmatprep.subr.mxu0 0.0
    %171 = vmatpush1.msra.mxu0 0.0
    %172 = vmatprep.mubr.f32.mxu0 0.0
    %173 = vmatmul.mubr.f32.gmra.mrb[0].mxu0 %v103
    %v174 = vpop.f32.mrb[0].mxu0
    %v175 = vadd.f32 %v99, %v174
    %v176 = vpop.f32.mrb[0].mxu0
    %177 = vmatprep.mubr.f32.mxu0 0.0
    %178 = vmatmul.mubr.f32.gmra.mrb[0].mxu0 %v106
    %v179 = vpop.f32.mrb[0].mxu0
    %v180 = vadd.f32 %v99, %v179
    %v181 = vpop.f32.mrb[0].mxu0
    %182 = vdwg.mxu0
    %vm183 = vcmask 261120
    %v185 = vsel %vm183, 0.0, 0
    %187 = vmatprep.subr.mxu0 0.0
    %188 = vmatpush1.msra.mxu0 %v90
    %189 = vmatprep.subr.mxu0 0.0
    %190 = vmatpush1.msra.mxu0 %v91
    %191 = vmatprep.subr.mxu0 0.0
    %192 = vmatpush1.msra.mxu0 %v92
    %193 = vmatprep.subr.mxu0 0.0
    %194 = vmatpush1.msra.mxu0 %v93
    %195 = vmatprep.subr.mxu0 0.0
    %196 = vmatpush1.msra.mxu0 0.0
    %197 = vmatprep.subr.mxu0 0.0
    %198 = vmatpush1.msra.mxu0 0.0
    %199 = vmatprep.subr.mxu0 0.0
    %200 = vmatpush1.msra.mxu0 0.0
    %201 = vmatprep.subr.mxu0 0.0
    %202 = vmatpush1.msra.mxu0 0.0
    %203 = vmatprep.subr.mxu0 0.0
    %204 = vmatpush1.msra.mxu0 0.0
    %205 = vmatprep.subr.mxu0 0.0
    %206 = vmatpush1.msra.mxu0 0.0
    %207 = vmatprep.subr.mxu0 0.0
    %208 = vmatpush1.msra.mxu0 0.0
    %209 = vmatprep.subr.mxu0 0.0
    %210 = vmatpush1.msra.mxu0 0.0
    %211 = vmatprep.subr.mxu0 0.0
    %212 = vmatpush1.msra.mxu0 0.0
    %213 = vmatprep.subr.mxu0 0.0
    %214 = vmatpush1.msra.mxu0 0.0
    %215 = vmatprep.subr.mxu0 0.0
    %216 = vmatpush1.msra.mxu0 0.0
    %217 = vmatprep.subr.mxu0 0.0
    %218 = vmatpush1.msra.mxu0 0.0
    %219 = vmatprep.subr.mxu0 0.0
    %220 = vmatpush1.msra.mxu0 0.0
    %221 = vmatprep.subr.mxu0 0.0
    %222 = vmatpush1.msra.mxu0 0.0
    %223 = vmatprep.subr.mxu0 0.0
    %224 = vmatpush1.msra.mxu0 0.0
    %225 = vmatprep.subr.mxu0 0.0
    %226 = vmatpush1.msra.mxu0 0.0
    %227 = vmatprep.subr.mxu0 0.0
    %228 = vmatpush1.msra.mxu0 0.0
    %229 = vmatprep.subr.mxu0 0.0
    %230 = vmatpush1.msra.mxu0 0.0
    %231 = vmatprep.subr.mxu0 0.0
    %232 = vmatpush1.msra.mxu0 0.0
    %233 = vmatprep.subr.mxu0 0.0
    %234 = vmatpush1.msra.mxu0 0.0
    %235 = vmatprep.subr.mxu0 0.0
    %236 = vmatpush1.msra.mxu0 0.0
    %237 = vmatprep.subr.mxu0 0.0
    %238 = vmatpush1.msra.mxu0 0.0
    %239 = vmatprep.subr.mxu0 0.0
    %240 = vmatpush1.msra.mxu0 0.0
    %241 = vmatprep.subr.mxu0 0.0
    %242 = vmatpush1.msra.mxu0 0.0
    %243 = vmatprep.subr.mxu0 0.0
    %244 = vmatpush1.msra.mxu0 0.0
    %245 = vmatprep.subr.mxu0 0.0
    %246 = vmatpush1.msra.mxu0 0.0
    %247 = vmatprep.subr.mxu0 0.0
    %248 = vmatpush1.msra.mxu0 0.0
    %249 = vmatprep.subr.mxu0 0.0
    %250 = vmatpush1.msra.mxu0 0.0
    %251 = vmatprep.mubr.f32.mxu0 0.0
    %252 = vmatmul.mubr.f32.gmra.mrb[0].mxu0 %v185
    %v253 = vpop.f32.mrb[0].mxu0
    %v254 = vadd.f32 0.0, %v253
    %v255 = vpop.f32.mrb[0].mxu0
    %256 = vdwg.mxu0
    %v258 = vrot.slane %v254, 1
    %v261 = vadd.f32 %v175, %v254
    %v262 = vadd.f32 %v180, %v258
    %v263 = vxor.u32 %v261, 2147483648
    %v264 = vxor.u32 %v262, 2147483648
    %v265 = vmul.f32 %v263, 1.442695
    %v266 = vpow.pop %v265
    %v267 = vmul.f32 %v264, 1.442695
    %v268 = vpow.pop %v267
    %v269 = vadd.f32 %v266, 1.0
    %v270 = vadd.f32 %v268, 1.0
    %v271 = vrcp.pop %v269
    %v272 = vmul.f32 1.0, %v271
    %v273 = vrcp.pop %v270
    %v274 = vmul.f32 1.0, %v273
    %v275 = vtanh.pop %v261
    %v276 = vtanh.pop %v262
    %v277 = vmul.f32 %v272, 0.0
    %v278 = vmul.f32 %v274, 0.0
    %281 = vrot.lane.b32.xlu0 %v275, 64
    %v282 = vpop.permute.xlu0 %281
    %283 = vrot.lane.b32.xlu0 %v276, 64
    %v284 = vpop.permute.xlu0 %283
    %v287 = vmul.f32 %v272, %v282
    %v288 = vmul.f32 %v274, %v284
    %291 = vrot.lane.b32.xlu0 %v287, 32
    %v292 = vpop.permute.xlu0 %291
    %293 = vrot.lane.b32.xlu0 %v288, 32
    %v294 = vpop.permute.xlu0 %293
    %v297 = vadd.f32 %v277, %v292
    %v298 = vadd.f32 %v278, %v294
    %v299 = vtanh.pop %v297
    %v300 = vtanh.pop %v298
    %303 = vrot.lane.b32.xlu0 %v299, 64
    %v304 = vpop.permute.xlu0 %303
    %305 = vrot.lane.b32.xlu0 %v300, 64
    %v306 = vpop.permute.xlu0 %305
    %v309 = vmul.f32 %v272, %v304
    %v310 = vmul.f32 %v274, %v306
    %v313 = vrot.slane %v310, 7
    %vm314 = vcmask 1041409
    %v315 = vsel %vm314, %v313, %v309
    %316 = vrot.lane.b32.xlu0 %v315, 32
    %v317 = vpop.permute.xlu0 %316
    %v318 = vsel %vm183, %v317, 0
    %320 = vmatprep.subr.mxu0 0.0
    %321 = vmatpush1.msra.mxu0 %v90
    %322 = vmatprep.subr.mxu0 0.0
    %323 = vmatpush1.msra.mxu0 %v91
    %324 = vmatprep.subr.mxu0 0.0
    %325 = vmatpush1.msra.mxu0 %v92
    %326 = vmatprep.subr.mxu0 0.0
    %327 = vmatpush1.msra.mxu0 %v93
    %328 = vmatprep.subr.mxu0 0.0
    %329 = vmatpush1.msra.mxu0 0.0
    %330 = vmatprep.subr.mxu0 0.0
    %331 = vmatpush1.msra.mxu0 0.0
    %332 = vmatprep.subr.mxu0 0.0
    %333 = vmatpush1.msra.mxu0 0.0
    %334 = vmatprep.subr.mxu0 0.0
    %335 = vmatpush1.msra.mxu0 0.0
    %336 = vmatprep.subr.mxu0 0.0
    %337 = vmatpush1.msra.mxu0 0.0
    %338 = vmatprep.subr.mxu0 0.0
    %339 = vmatpush1.msra.mxu0 0.0
    %340 = vmatprep.subr.mxu0 0.0
    %341 = vmatpush1.msra.mxu0 0.0
    %342 = vmatprep.subr.mxu0 0.0
    %343 = vmatpush1.msra.mxu0 0.0
    %344 = vmatprep.subr.mxu0 0.0
    %345 = vmatpush1.msra.mxu0 0.0
    %346 = vmatprep.subr.mxu0 0.0
    %347 = vmatpush1.msra.mxu0 0.0
    %348 = vmatprep.subr.mxu0 0.0
    %349 = vmatpush1.msra.mxu0 0.0
    %350 = vmatprep.subr.mxu0 0.0
    %351 = vmatpush1.msra.mxu0 0.0
    %352 = vmatprep.subr.mxu0 0.0
    %353 = vmatpush1.msra.mxu0 0.0
    %354 = vmatprep.subr.mxu0 0.0
    %355 = vmatpush1.msra.mxu0 0.0
    %356 = vmatprep.subr.mxu0 0.0
    %357 = vmatpush1.msra.mxu0 0.0
    %358 = vmatprep.subr.mxu0 0.0
    %359 = vmatpush1.msra.mxu0 0.0
    %360 = vmatprep.subr.mxu0 0.0
    %361 = vmatpush1.msra.mxu0 0.0
    %362 = vmatprep.subr.mxu0 0.0
    %363 = vmatpush1.msra.mxu0 0.0
    %364 = vmatprep.subr.mxu0 0.0
    %365 = vmatpush1.msra.mxu0 0.0
    %366 = vmatprep.subr.mxu0 0.0
    %367 = vmatpush1.msra.mxu0 0.0
    %368 = vmatprep.subr.mxu0 0.0
    %369 = vmatpush1.msra.mxu0 0.0
    %370 = vmatprep.subr.mxu0 0.0
    %371 = vmatpush1.msra.mxu0 0.0
    %372 = vmatprep.subr.mxu0 0.0
    %373 = vmatpush1.msra.mxu0 0.0
    %374 = vmatprep.subr.mxu0 0.0
    %375 = vmatpush1.msra.mxu0 0.0
    %376 = vmatprep.subr.mxu0 0.0
    %377 = vmatpush1.msra.mxu0 0.0
    %378 = vmatprep.subr.mxu0 0.0
    %379 = vmatpush1.msra.mxu0 0.0
    %380 = vmatprep.subr.mxu0 0.0
    %381 = vmatpush1.msra.mxu0 0.0
    %382 = vmatprep.subr.mxu0 0.0
    %383 = vmatpush1.msra.mxu0 0.0
    %384 = vmatprep.mubr.f32.mxu0 0.0
    %385 = vmatmul.mubr.f32.gmra.mrb[0].mxu0 %v318
    %v386 = vpop.f32.mrb[0].mxu0
    %v387 = vadd.f32 0.0, %v386
    %v388 = vpop.f32.mrb[0].mxu0
    %389 = vdwg.mxu0
    %v391 = vrot.slane %v387, 7
    %v394 = vadd.f32 %v175, %v391
    %v395 = vadd.f32 %v180, %v387
    %v396 = vxor.u32 %v394, 2147483648
    %v397 = vxor.u32 %v395, 2147483648
    %v398 = vmul.f32 %v396, 1.442695
    %v399 = vpow.pop %v398
    %v400 = vmul.f32 %v397, 1.442695
    %v401 = vpow.pop %v400
    %v402 = vadd.f32 %v399, 1.0
    %v403 = vadd.f32 %v401, 1.0
    %v404 = vrcp.pop %v402
    %v405 = vmul.f32 1.0, %v404
    %v406 = vrcp.pop %v403
    %v407 = vmul.f32 1.0, %v406
    %v408 = vtanh.pop %v394
    %v409 = vtanh.pop %v395
    %v412 = vrot.slane %v297, 7
    %v413 = vrot.slane %v298, 7
    %v416 = vmul.f32 %v405, %v412
    %v417 = vmul.f32 %v407, %v413
    %420 = vrot.lane.b32.xlu0 %v408, 64
    %v421 = vpop.permute.xlu0 %420
    %422 = vrot.lane.b32.xlu0 %v409, 64
    %v423 = vpop.permute.xlu0 %422
    %v426 = vmul.f32 %v405, %v421
    %v427 = vmul.f32 %v407, %v423
    %430 = vrot.lane.b32.xlu0 %v426, 32
    %v431 = vpop.permute.xlu0 %430
    %432 = vrot.lane.b32.xlu0 %v427, 32
    %v433 = vpop.permute.xlu0 %432
    %v436 = vadd.f32 %v416, %v431
    %v437 = vadd.f32 %v417, %v433
    %v438 = vtanh.pop %v436
    %v439 = vtanh.pop %v437
    %442 = vrot.lane.b32.xlu0 %v438, 64
    %v443 = vpop.permute.xlu0 %442
    %444 = vrot.lane.b32.xlu0 %v439, 64
    %v445 = vpop.permute.xlu0 %444
    %v448 = vmul.f32 %v405, %v443
    %v449 = vmul.f32 %v407, %v445
    %v452 = vrot.slane %v448, 1
    %v453 = vsel %vm314, %v449, %v452
    %454 = vrot.lane.b32.xlu0 %v453, 32
    %v455 = vpop.permute.xlu0 %454
    %v456 = vsel %vm183, %v455, 0
    %458 = vmatprep.subr.mxu0 0.0
    %459 = vmatpush1.msra.mxu0 %v90
    %460 = vmatprep.subr.mxu0 0.0
    %461 = vmatpush1.msra.mxu0 %v91
    %462 = vmatprep.subr.mxu0 0.0
    %463 = vmatpush1.msra.mxu0 %v92
    %464 = vmatprep.subr.mxu0 0.0
    %465 = vmatpush1.msra.mxu0 %v93
    %466 = vmatprep.subr.mxu0 0.0
    %467 = vmatpush1.msra.mxu0 0.0
    %468 = vmatprep.subr.mxu0 0.0
    %469 = vmatpush1.msra.mxu0 0.0
    %470 = vmatprep.subr.mxu0 0.0
    %471 = vmatpush1.msra.mxu0 0.0
    %472 = vmatprep.subr.mxu0 0.0
    %473 = vmatpush1.msra.mxu0 0.0
    %474 = vmatprep.subr.mxu0 0.0
    %475 = vmatpush1.msra.mxu0 0.0
    %476 = vmatprep.subr.mxu0 0.0
    %477 = vmatpush1.msra.mxu0 0.0
    %478 = vmatprep.subr.mxu0 0.0
    %479 = vmatpush1.msra.mxu0 0.0
    %480 = vmatprep.subr.mxu0 0.0
    %481 = vmatpush1.msra.mxu0 0.0
    %482 = vmatprep.subr.mxu0 0.0
    %483 = vmatpush1.msra.mxu0 0.0
    %484 = vmatprep.subr.mxu0 0.0
    %485 = vmatpush1.msra.mxu0 0.0
    %486 = vmatprep.subr.mxu0 0.0
    %487 = vmatpush1.msra.mxu0 0.0
    %488 = vmatprep.subr.mxu0 0.0
    %489 = vmatpush1.msra.mxu0 0.0
    %490 = vmatprep.subr.mxu0 0.0
    %491 = vmatpush1.msra.mxu0 0.0
    %492 = vmatprep.subr.mxu0 0.0
    %493 = vmatpush1.msra.mxu0 0.0
    %494 = vmatprep.subr.mxu0 0.0
    %495 = vmatpush1.msra.mxu0 0.0
    %496 = vmatprep.subr.mxu0 0.0
    %497 = vmatpush1.msra.mxu0 0.0
    %498 = vmatprep.subr.mxu0 0.0
    %499 = vmatpush1.msra.mxu0 0.0
    %500 = vmatprep.subr.mxu0 0.0
    %501 = vmatpush1.msra.mxu0 0.0
    %502 = vmatprep.subr.mxu0 0.0
    %503 = vmatpush1.msra.mxu0 0.0
    %504 = vmatprep.subr.mxu0 0.0
    %505 = vmatpush1.msra.mxu0 0.0
    %506 = vmatprep.subr.mxu0 0.0
    %507 = vmatpush1.msra.mxu0 0.0
    %508 = vmatprep.subr.mxu0 0.0
    %509 = vmatpush1.msra.mxu0 0.0
    %510 = vmatprep.subr.mxu0 0.0
    %511 = vmatpush1.msra.mxu0 0.0
    %512 = vmatprep.subr.mxu0 0.0
    %513 = vmatpush1.msra.mxu0 0.0
    %514 = vmatprep.subr.mxu0 0.0
    %515 = vmatpush1.msra.mxu0 0.0
    %516 = vmatprep.subr.mxu0 0.0
    %517 = vmatpush1.msra.mxu0 0.0
    %518 = vmatprep.subr.mxu0 0.0
    %519 = vmatpush1.msra.mxu0 0.0
    %520 = vmatprep.subr.mxu0 0.0
    %521 = vmatpush1.msra.mxu0 0.0
    %522 = vmatprep.mubr.f32.mxu0 0.0
    %523 = vmatmul.mubr.f32.gmra.mrb[0].mxu0 %v456
    %v524 = vpop.f32.mrb[0].mxu0
    %v525 = vadd.f32 0.0, %v524
    %v526 = vpop.f32.mrb[0].mxu0
    %527 = vdwg.mxu0
    %v529 = vrot.slane %v525, 6
    %v530 = vrot.slane %v525, 7
    %v533 = vadd.f32 %v175, %v529
    %v534 = vadd.f32 %v180, %v530
    %v535 = vxor.u32 %v533, 2147483648
    %v536 = vxor.u32 %v534, 2147483648
    %v537 = vmul.f32 %v535, 1.442695
    %v538 = vpow.pop %v537
    %v539 = vmul.f32 %v536, 1.442695
    %v540 = vpow.pop %v539
    %v541 = vadd.f32 %v538, 1.0
    %v542 = vadd.f32 %v540, 1.0
    %v543 = vrcp.pop %v541
    %v544 = vmul.f32 1.0, %v543
    %v545 = vrcp.pop %v542
    %v546 = vmul.f32 1.0, %v545
    %v547 = vtanh.pop %v533
    %v548 = vtanh.pop %v534
    %v551 = vrot.slane %v436, 7
    %v552 = vrot.slane %v437, 7
    %v555 = vmul.f32 %v544, %v551
    %v556 = vmul.f32 %v546, %v552
    %559 = vrot.lane.b32.xlu0 %v547, 64
    %v560 = vpop.permute.xlu0 %559
    %561 = vrot.lane.b32.xlu0 %v548, 64
    %v562 = vpop.permute.xlu0 %561
    %v565 = vmul.f32 %v544, %v560
    %v566 = vmul.f32 %v546, %v562
    %569 = vrot.lane.b32.xlu0 %v565, 32
    %v570 = vpop.permute.xlu0 %569
    %571 = vrot.lane.b32.xlu0 %v566, 32
    %v572 = vpop.permute.xlu0 %571
    %v575 = vadd.f32 %v555, %v570
    %v576 = vadd.f32 %v556, %v572
    %v577 = vtanh.pop %v575
    %v578 = vtanh.pop %v576
    %581 = vrot.lane.b32.xlu0 %v577, 64
    %v582 = vpop.permute.xlu0 %581
    %583 = vrot.lane.b32.xlu0 %v578, 64
    %v584 = vpop.permute.xlu0 %583
    %v587 = vmul.f32 %v544, %v582
    %v588 = vmul.f32 %v546, %v584
    %v591 = vrot.slane %v587, 2
    %v592 = vrot.slane %v588, 1
    %v593 = vsel %vm314, %v592, %v591
    %594 = vrot.lane.b32.xlu0 %v593, 32
    %v595 = vpop.permute.xlu0 %594
    %v596 = vsel %vm183, %v595, 0
    %598 = vmatprep.subr.mxu0 0.0
    %599 = vmatpush1.msra.mxu0 %v90
    %600 = vmatprep.subr.mxu0 0.0
    %601 = vmatpush1.msra.mxu0 %v91
    %602 = vmatprep.subr.mxu0 0.0
    %603 = vmatpush1.msra.mxu0 %v92
    %604 = vmatprep.subr.mxu0 0.0
    %605 = vmatpush1.msra.mxu0 %v93
    %606 = vmatprep.subr.mxu0 0.0
    %607 = vmatpush1.msra.mxu0 0.0
    %608 = vmatprep.subr.mxu0 0.0
    %609 = vmatpush1.msra.mxu0 0.0
    %610 = vmatprep.subr.mxu0 0.0
    %611 = vmatpush1.msra.mxu0 0.0
    %612 = vmatprep.subr.mxu0 0.0
    %613 = vmatpush1.msra.mxu0 0.0
    %614 = vmatprep.subr.mxu0 0.0
    %615 = vmatpush1.msra.mxu0 0.0
    %616 = vmatprep.subr.mxu0 0.0
    %617 = vmatpush1.msra.mxu0 0.0
    %618 = vmatprep.subr.mxu0 0.0
    %619 = vmatpush1.msra.mxu0 0.0
    %620 = vmatprep.subr.mxu0 0.0
    %621 = vmatpush1.msra.mxu0 0.0
    %622 = vmatprep.subr.mxu0 0.0
    %623 = vmatpush1.msra.mxu0 0.0
    %624 = vmatprep.subr.mxu0 0.0
    %625 = vmatpush1.msra.mxu0 0.0
    %626 = vmatprep.subr.mxu0 0.0
    %627 = vmatpush1.msra.mxu0 0.0
    %628 = vmatprep.subr.mxu0 0.0
    %629 = vmatpush1.msra.mxu0 0.0
    %630 = vmatprep.subr.mxu0 0.0
    %631 = vmatpush1.msra.mxu0 0.0
    %632 = vmatprep.subr.mxu0 0.0
    %633 = vmatpush1.msra.mxu0 0.0
    %634 = vmatprep.subr.mxu0 0.0
    %635 = vmatpush1.msra.mxu0 0.0
    %636 = vmatprep.subr.mxu0 0.0
    %637 = vmatpush1.msra.mxu0 0.0
    %638 = vmatprep.subr.mxu0 0.0
    %639 = vmatpush1.msra.mxu0 0.0
    %640 = vmatprep.subr.mxu0 0.0
    %641 = vmatpush1.msra.mxu0 0.0
    %642 = vmatprep.subr.mxu0 0.0
    %643 = vmatpush1.msra.mxu0 0.0
    %644 = vmatprep.subr.mxu0 0.0
    %645 = vmatpush1.msra.mxu0 0.0
    %646 = vmatprep.subr.mxu0 0.0
    %647 = vmatpush1.msra.mxu0 0.0
    %648 = vmatprep.subr.mxu0 0.0
    %649 = vmatpush1.msra.mxu0 0.0
    %650 = vmatprep.subr.mxu0 0.0
    %651 = vmatpush1.msra.mxu0 0.0
    %652 = vmatprep.subr.mxu0 0.0
    %653 = vmatpush1.msra.mxu0 0.0
    %654 = vmatprep.subr.mxu0 0.0
    %655 = vmatpush1.msra.mxu0 0.0
    %656 = vmatprep.subr.mxu0 0.0
    %657 = vmatpush1.msra.mxu0 0.0
    %658 = vmatprep.subr.mxu0 0.0
    %659 = vmatpush1.msra.mxu0 0.0
    %660 = vmatprep.subr.mxu0 0.0
    %661 = vmatpush1.msra.mxu0 0.0
    %662 = vmatprep.mubr.f32.mxu0 0.0
    %663 = vmatmul.mubr.f32.gmra.mrb[0].mxu0 %v596
    %v664 = vpop.f32.mrb[0].mxu0
    %v665 = vadd.f32 0.0, %v664
    %v666 = vpop.f32.mrb[0].mxu0
    %667 = vdwg.mxu0
    %v669 = vrot.slane %v665, 5
    %v670 = vrot.slane %v665, 6
    %v673 = vadd.f32 %v175, %v669
    %v674 = vadd.f32 %v180, %v670
    %v675 = vxor.u32 %v673, 2147483648
    %v676 = vxor.u32 %v674, 2147483648
    %v677 = vmul.f32 %v675, 1.442695
    %v678 = vpow.pop %v677
    %v679 = vmul.f32 %v676, 1.442695
    %v680 = vpow.pop %v679
    %v681 = vadd.f32 %v678, 1.0
    %v682 = vadd.f32 %v680, 1.0
    %v683 = vrcp.pop %v681
    %v684 = vmul.f32 1.0, %v683
    %v685 = vrcp.pop %v682
    %v686 = vmul.f32 1.0, %v685
    %v687 = vtanh.pop %v673
    %v688 = vtanh.pop %v674
    %v691 = vrot.slane %v575, 7
    %v692 = vrot.slane %v576, 7
    %v695 = vmul.f32 %v684, %v691
    %v696 = vmul.f32 %v686, %v692
    %699 = vrot.lane.b32.xlu0 %v687, 64
    %v700 = vpop.permute.xlu0 %699
    %701 = vrot.lane.b32.xlu0 %v688, 64
    %v702 = vpop.permute.xlu0 %701
    %v705 = vmul.f32 %v684, %v700
    %v706 = vmul.f32 %v686, %v702
    %709 = vrot.lane.b32.xlu0 %v705, 32
    %v710 = vpop.permute.xlu0 %709
    %711 = vrot.lane.b32.xlu0 %v706, 32
    %v712 = vpop.permute.xlu0 %711
    %v715 = vadd.f32 %v695, %v710
    %v716 = vadd.f32 %v696, %v712
    %v717 = vtanh.pop %v715
    %v718 = vtanh.pop %v716
    %721 = vrot.lane.b32.xlu0 %v717, 64
    %v722 = vpop.permute.xlu0 %721
    %723 = vrot.lane.b32.xlu0 %v718, 64
    %v724 = vpop.permute.xlu0 %723
    %v727 = vmul.f32 %v684, %v722
    %v728 = vmul.f32 %v686, %v724
    %v731 = vrot.slane %v727, 3
    %v732 = vrot.slane %v728, 2
    %v733 = vsel %vm314, %v732, %v731
    %734 = vrot.lane.b32.xlu0 %v733, 32
    %v735 = vpop.permute.xlu0 %734
    %v736 = vsel %vm183, %v735, 0
    %738 = vmatprep.subr.mxu0 0.0
    %739 = vmatpush1.msra.mxu0 %v90
    %740 = vmatprep.subr.mxu0 0.0
    %741 = vmatpush1.msra.mxu0 %v91
    %742 = vmatprep.subr.mxu0 0.0
    %743 = vmatpush1.msra.mxu0 %v92
    %744 = vmatprep.subr.mxu0 0.0
    %745 = vmatpush1.msra.mxu0 %v93
    %746 = vmatprep.subr.mxu0 0.0
    %747 = vmatpush1.msra.mxu0 0.0
    %748 = vmatprep.subr.mxu0 0.0
    %749 = vmatpush1.msra.mxu0 0.0
    %750 = vmatprep.subr.mxu0 0.0
    %751 = vmatpush1.msra.mxu0 0.0
    %752 = vmatprep.subr.mxu0 0.0
    %753 = vmatpush1.msra.mxu0 0.0
    %754 = vmatprep.subr.mxu0 0.0
    %755 = vmatpush1.msra.mxu0 0.0
    %756 = vmatprep.subr.mxu0 0.0
    %757 = vmatpush1.msra.mxu0 0.0
    %758 = vmatprep.subr.mxu0 0.0
    %759 = vmatpush1.msra.mxu0 0.0
    %760 = vmatprep.subr.mxu0 0.0
    %761 = vmatpush1.msra.mxu0 0.0
    %762 = vmatprep.subr.mxu0 0.0
    %763 = vmatpush1.msra.mxu0 0.0
    %764 = vmatprep.subr.mxu0 0.0
    %765 = vmatpush1.msra.mxu0 0.0
    %766 = vmatprep.subr.mxu0 0.0
    %767 = vmatpush1.msra.mxu0 0.0
    %768 = vmatprep.subr.mxu0 0.0
    %769 = vmatpush1.msra.mxu0 0.0
    %770 = vmatprep.subr.mxu0 0.0
    %771 = vmatpush1.msra.mxu0 0.0
    %772 = vmatprep.subr.mxu0 0.0
    %773 = vmatpush1.msra.mxu0 0.0
    %774 = vmatprep.subr.mxu0 0.0
    %775 = vmatpush1.msra.mxu0 0.0
    %776 = vmatprep.subr.mxu0 0.0
    %777 = vmatpush1.msra.mxu0 0.0
    %778 = vmatprep.subr.mxu0 0.0
    %779 = vmatpush1.msra.mxu0 0.0
    %780 = vmatprep.subr.mxu0 0.0
    %781 = vmatpush1.msra.mxu0 0.0
    %782 = vmatprep.subr.mxu0 0.0
    %783 = vmatpush1.msra.mxu0 0.0
    %784 = vmatprep.subr.mxu0 0.0
    %785 = vmatpush1.msra.mxu0 0.0
    %786 = vmatprep.subr.mxu0 0.0
    %787 = vmatpush1.msra.mxu0 0.0
    %788 = vmatprep.subr.mxu0 0.0
    %789 = vmatpush1.msra.mxu0 0.0
    %790 = vmatprep.subr.mxu0 0.0
    %791 = vmatpush1.msra.mxu0 0.0
    %792 = vmatprep.subr.mxu0 0.0
    %793 = vmatpush1.msra.mxu0 0.0
    %794 = vmatprep.subr.mxu0 0.0
    %795 = vmatpush1.msra.mxu0 0.0
    %796 = vmatprep.subr.mxu0 0.0
    %797 = vmatpush1.msra.mxu0 0.0
    %798 = vmatprep.subr.mxu0 0.0
    %799 = vmatpush1.msra.mxu0 0.0
    %800 = vmatprep.subr.mxu0 0.0
    %801 = vmatpush1.msra.mxu0 0.0
    %802 = vmatprep.mubr.f32.mxu0 0.0
    %803 = vmatmul.mubr.f32.gmra.mrb[0].mxu0 %v736
    %v804 = vpop.f32.mrb[0].mxu0
    %v805 = vadd.f32 0.0, %v804
    %v806 = vpop.f32.mrb[0].mxu0
    %807 = vdwg.mxu0
    %v809 = vrot.slane %v805, 4
    %v810 = vrot.slane %v805, 5
    %v813 = vadd.f32 %v175, %v809
    %v814 = vadd.f32 %v180, %v810
    %v815 = vxor.u32 %v813, 2147483648
    %v816 = vxor.u32 %v814, 2147483648
    %v817 = vmul.f32 %v815, 1.442695
    %v818 = vpow.pop %v817
    %v819 = vmul.f32 %v816, 1.442695
    %v820 = vpow.pop %v819
    %v821 = vadd.f32 %v818, 1.0
    %v822 = vadd.f32 %v820, 1.0
    %v823 = vrcp.pop %v821
    %v824 = vmul.f32 1.0, %v823
    %v825 = vrcp.pop %v822
    %v826 = vmul.f32 1.0, %v825
    %v827 = vtanh.pop %v813
    %v828 = vtanh.pop %v814
    %v831 = vrot.slane %v715, 7
    %v832 = vrot.slane %v716, 7
    %v835 = vmul.f32 %v824, %v831
    %v836 = vmul.f32 %v826, %v832
    %839 = vrot.lane.b32.xlu0 %v827, 64
    %v840 = vpop.permute.xlu0 %839
    %841 = vrot.lane.b32.xlu0 %v828, 64
    %v842 = vpop.permute.xlu0 %841
    %v845 = vmul.f32 %v824, %v840
    %v846 = vmul.f32 %v826, %v842
    %849 = vrot.lane.b32.xlu0 %v845, 32
    %v850 = vpop.permute.xlu0 %849
    %851 = vrot.lane.b32.xlu0 %v846, 32
    %v852 = vpop.permute.xlu0 %851
    %v855 = vadd.f32 %v835, %v850
    %v856 = vadd.f32 %v836, %v852
    %v857 = vtanh.pop %v855
    %v858 = vtanh.pop %v856
    %861 = vrot.lane.b32.xlu0 %v857, 64
    %v862 = vpop.permute.xlu0 %861
    %863 = vrot.lane.b32.xlu0 %v858, 64
    %v864 = vpop.permute.xlu0 %863
    %v867 = vmul.f32 %v824, %v862
    %v868 = vmul.f32 %v826, %v864
    %v871 = vrot.slane %v867, 4
    %v872 = vrot.slane %v868, 3
    %v873 = vsel %vm314, %v872, %v871
    %874 = vrot.lane.b32.xlu0 %v873, 32
    %v875 = vpop.permute.xlu0 %874
    %v876 = vsel %vm183, %v875, 0
    %878 = vmatprep.subr.mxu0 0.0
    %879 = vmatpush1.msra.mxu0 %v90
    %880 = vmatprep.subr.mxu0 0.0
    %881 = vmatpush1.msra.mxu0 %v91
    %882 = vmatprep.subr.mxu0 0.0
    %883 = vmatpush1.msra.mxu0 %v92
    %884 = vmatprep.subr.mxu0 0.0
    %885 = vmatpush1.msra.mxu0 %v93
    %886 = vmatprep.subr.mxu0 0.0
    %887 = vmatpush1.msra.mxu0 0.0
    %888 = vmatprep.subr.mxu0 0.0
    %889 = vmatpush1.msra.mxu0 0.0
    %890 = vmatprep.subr.mxu0 0.0
    %891 = vmatpush1.msra.mxu0 0.0
    %892 = vmatprep.subr.mxu0 0.0
    %893 = vmatpush1.msra.mxu0 0.0
    %894 = vmatprep.subr.mxu0 0.0
    %895 = vmatpush1.msra.mxu0 0.0
    %896 = vmatprep.subr.mxu0 0.0
    %897 = vmatpush1.msra.mxu0 0.0
    %898 = vmatprep.subr.mxu0 0.0
    %899 = vmatpush1.msra.mxu0 0.0
    %900 = vmatprep.subr.mxu0 0.0
    %901 = vmatpush1.msra.mxu0 0.0
    %902 = vmatprep.subr.mxu0 0.0
    %903 = vmatpush1.msra.mxu0 0.0
    %904 = vmatprep.subr.mxu0 0.0
    %905 = vmatpush1.msra.mxu0 0.0
    %906 = vmatprep.subr.mxu0 0.0
    %907 = vmatpush1.msra.mxu0 0.0
    %908 = vmatprep.subr.mxu0 0.0
    %909 = vmatpush1.msra.mxu0 0.0
    %910 = vmatprep.subr.mxu0 0.0
    %911 = vmatpush1.msra.mxu0 0.0
    %912 = vmatprep.subr.mxu0 0.0
    %913 = vmatpush1.msra.mxu0 0.0
    %914 = vmatprep.subr.mxu0 0.0
    %915 = vmatpush1.msra.mxu0 0.0
    %916 = vmatprep.subr.mxu0 0.0
    %917 = vmatpush1.msra.mxu0 0.0
    %918 = vmatprep.subr.mxu0 0.0
    %919 = vmatpush1.msra.mxu0 0.0
    %920 = vmatprep.subr.mxu0 0.0
    %921 = vmatpush1.msra.mxu0 0.0
    %922 = vmatprep.subr.mxu0 0.0
    %923 = vmatpush1.msra.mxu0 0.0
    %924 = vmatprep.subr.mxu0 0.0
    %925 = vmatpush1.msra.mxu0 0.0
    %926 = vmatprep.subr.mxu0 0.0
    %927 = vmatpush1.msra.mxu0 0.0
    %928 = vmatprep.subr.mxu0 0.0
    %929 = vmatpush1.msra.mxu0 0.0
    %930 = vmatprep.subr.mxu0 0.0
    %931 = vmatpush1.msra.mxu0 0.0
    %932 = vmatprep.subr.mxu0 0.0
    %933 = vmatpush1.msra.mxu0 0.0
    %934 = vmatprep.subr.mxu0 0.0
    %935 = vmatpush1.msra.mxu0 0.0
    %936 = vmatprep.subr.mxu0 0.0
    %937 = vmatpush1.msra.mxu0 0.0
    %938 = vmatprep.subr.mxu0 0.0
    %939 = vmatpush1.msra.mxu0 0.0
    %940 = vmatprep.subr.mxu0 0.0
    %941 = vmatpush1.msra.mxu0 0.0
    %942 = vmatprep.mubr.f32.mxu0 0.0
    %943 = vmatmul.mubr.f32.gmra.mrb[0].mxu0 %v876
    %v944 = vpop.f32.mrb[0].mxu0
    %v945 = vadd.f32 0.0, %v944
    %v946 = vpop.f32.mrb[0].mxu0
    %947 = vdwg.mxu0
    %v949 = vrot.slane %v945, 3
    %v950 = vrot.slane %v945, 4
    %v953 = vadd.f32 %v175, %v949
    %v954 = vadd.f32 %v180, %v950
    %v955 = vxor.u32 %v953, 2147483648
    %v956 = vxor.u32 %v954, 2147483648
    %v957 = vmul.f32 %v955, 1.442695
    %v958 = vpow.pop %v957
    %v959 = vmul.f32 %v956, 1.442695
    %v960 = vpow.pop %v959
    %v961 = vadd.f32 %v958, 1.0
    %v962 = vadd.f32 %v960, 1.0
    %v963 = vrcp.pop %v961
    %v964 = vmul.f32 1.0, %v963
    %v965 = vrcp.pop %v962
    %v966 = vmul.f32 1.0, %v965
    %v967 = vtanh.pop %v953
    %v968 = vtanh.pop %v954
    %v971 = vrot.slane %v855, 7
    %v972 = vrot.slane %v856, 7
    %v975 = vmul.f32 %v964, %v971
    %v976 = vmul.f32 %v966, %v972
    %979 = vrot.lane.b32.xlu0 %v967, 64
    %v980 = vpop.permute.xlu0 %979
    %981 = vrot.lane.b32.xlu0 %v968, 64
    %v982 = vpop.permute.xlu0 %981
    %v985 = vmul.f32 %v964, %v980
    %v986 = vmul.f32 %v966, %v982
    %989 = vrot.lane.b32.xlu0 %v985, 32
    %v990 = vpop.permute.xlu0 %989
    %991 = vrot.lane.b32.xlu0 %v986, 32
    %v992 = vpop.permute.xlu0 %991
    %v995 = vadd.f32 %v975, %v990
    %v996 = vadd.f32 %v976, %v992
    %v997 = vtanh.pop %v995
    %v998 = vtanh.pop %v996
    %1001 = vrot.lane.b32.xlu0 %v997, 64
    %v1002 = vpop.permute.xlu0 %1001
    %1003 = vrot.lane.b32.xlu0 %v998, 64
    %v1004 = vpop.permute.xlu0 %1003
    %v1007 = vmul.f32 %v964, %v1002
    %v1008 = vmul.f32 %v966, %v1004
    %v1011 = vrot.slane %v1007, 5
    %v1012 = vrot.slane %v1008, 4
    %v1013 = vsel %vm314, %v1012, %v1011
    %1014 = vrot.lane.b32.xlu0 %v1013, 32
    %v1015 = vpop.permute.xlu0 %1014
    %v1016 = vsel %vm183, %v1015, 0
    %1018 = vmatprep.subr.mxu0 0.0
    %1019 = vmatpush1.msra.mxu0 %v90
    %1020 = vmatprep.subr.mxu0 0.0
    %1021 = vmatpush1.msra.mxu0 %v91
    %1022 = vmatprep.subr.mxu0 0.0
    %1023 = vmatpush1.msra.mxu0 %v92
    %1024 = vmatprep.subr.mxu0 0.0
    %1025 = vmatpush1.msra.mxu0 %v93
    %1026 = vmatprep.subr.mxu0 0.0
    %1027 = vmatpush1.msra.mxu0 0.0
    %1028 = vmatprep.subr.mxu0 0.0
    %1029 = vmatpush1.msra.mxu0 0.0
    %1030 = vmatprep.subr.mxu0 0.0
    %1031 = vmatpush1.msra.mxu0 0.0
    %1032 = vmatprep.subr.mxu0 0.0
    %1033 = vmatpush1.msra.mxu0 0.0
    %1034 = vmatprep.subr.mxu0 0.0
    %1035 = vmatpush1.msra.mxu0 0.0
    %1036 = vmatprep.subr.mxu0 0.0
    %1037 = vmatpush1.msra.mxu0 0.0
    %1038 = vmatprep.subr.mxu0 0.0
    %1039 = vmatpush1.msra.mxu0 0.0
    %1040 = vmatprep.subr.mxu0 0.0
    %1041 = vmatpush1.msra.mxu0 0.0
    %1042 = vmatprep.subr.mxu0 0.0
    %1043 = vmatpush1.msra.mxu0 0.0
    %1044 = vmatprep.subr.mxu0 0.0
    %1045 = vmatpush1.msra.mxu0 0.0
    %1046 = vmatprep.subr.mxu0 0.0
    %1047 = vmatpush1.msra.mxu0 0.0
    %1048 = vmatprep.subr.mxu0 0.0
    %1049 = vmatpush1.msra.mxu0 0.0
    %1050 = vmatprep.subr.mxu0 0.0
    %1051 = vmatpush1.msra.mxu0 0.0
    %1052 = vmatprep.subr.mxu0 0.0
    %1053 = vmatpush1.msra.mxu0 0.0
    %1054 = vmatprep.subr.mxu0 0.0
    %1055 = vmatpush1.msra.mxu0 0.0
    %1056 = vmatprep.subr.mxu0 0.0
    %1057 = vmatpush1.msra.mxu0 0.0
    %1058 = vmatprep.subr.mxu0 0.0
    %1059 = vmatpush1.msra.mxu0 0.0
    %1060 = vmatprep.subr.mxu0 0.0
    %1061 = vmatpush1.msra.mxu0 0.0
    %1062 = vmatprep.subr.mxu0 0.0
    %1063 = vmatpush1.msra.mxu0 0.0
    %1064 = vmatprep.subr.mxu0 0.0
    %1065 = vmatpush1.msra.mxu0 0.0
    %1066 = vmatprep.subr.mxu0 0.0
    %1067 = vmatpush1.msra.mxu0 0.0
    %1068 = vmatprep.subr.mxu0 0.0
    %1069 = vmatpush1.msra.mxu0 0.0
    %1070 = vmatprep.subr.mxu0 0.0
    %1071 = vmatpush1.msra.mxu0 0.0
    %1072 = vmatprep.subr.mxu0 0.0
    %1073 = vmatpush1.msra.mxu0 0.0
    %1074 = vmatprep.subr.mxu0 0.0
    %1075 = vmatpush1.msra.mxu0 0.0
    %1076 = vmatprep.subr.mxu0 0.0
    %1077 = vmatpush1.msra.mxu0 0.0
    %1078 = vmatprep.subr.mxu0 0.0
    %1079 = vmatpush1.msra.mxu0 0.0
    %1080 = vmatprep.subr.mxu0 0.0
    %1081 = vmatpush1.msra.mxu0 0.0
    %1082 = vmatprep.mubr.f32.mxu0 0.0
    %1083 = vmatmul.mubr.f32.gmra.mrb[0].mxu0 %v1016
    %v1084 = vpop.f32.mrb[0].mxu0
    %v1085 = vadd.f32 0.0, %v1084
    %v1086 = vpop.f32.mrb[0].mxu0
    %1087 = vdwg.mxu0
    %v1089 = vrot.slane %v1085, 2
    %v1090 = vrot.slane %v1085, 3
    %v1093 = vadd.f32 %v175, %v1089
    %v1094 = vadd.f32 %v180, %v1090
    %v1095 = vxor.u32 %v1093, 2147483648
    %v1096 = vxor.u32 %v1094, 2147483648
    %v1097 = vmul.f32 %v1095, 1.442695
    %v1098 = vpow.pop %v1097
    %v1099 = vmul.f32 %v1096, 1.442695
    %v1100 = vpow.pop %v1099
    %v1101 = vadd.f32 %v1098, 1.0
    %v1102 = vadd.f32 %v1100, 1.0
    %v1103 = vrcp.pop %v1101
    %v1104 = vmul.f32 1.0, %v1103
    %v1105 = vrcp.pop %v1102
    %v1106 = vmul.f32 1.0, %v1105
    %v1107 = vtanh.pop %v1093
    %v1108 = vtanh.pop %v1094
    %v1111 = vrot.slane %v995, 7
    %v1112 = vrot.slane %v996, 7
    %v1115 = vmul.f32 %v1104, %v1111
    %v1116 = vmul.f32 %v1106, %v1112
    %1119 = vrot.lane.b32.xlu0 %v1107, 64
    %v1120 = vpop.permute.xlu0 %1119
    %1121 = vrot.lane.b32.xlu0 %v1108, 64
    %v1122 = vpop.permute.xlu0 %1121
    %v1125 = vmul.f32 %v1104, %v1120
    %v1126 = vmul.f32 %v1106, %v1122
    %1129 = vrot.lane.b32.xlu0 %v1125, 32
    %v1130 = vpop.permute.xlu0 %1129
    %1131 = vrot.lane.b32.xlu0 %v1126, 32
    %v1132 = vpop.permute.xlu0 %1131
    %v1135 = vadd.f32 %v1115, %v1130
    %v1136 = vadd.f32 %v1116, %v1132
    %v1137 = vtanh.pop %v1135
    %v1138 = vtanh.pop %v1136
    %1141 = vrot.lane.b32.xlu0 %v1137, 64
    %v1142 = vpop.permute.xlu0 %1141
    %1143 = vrot.lane.b32.xlu0 %v1138, 64
    %v1144 = vpop.permute.xlu0 %1143
    %v1147 = vmul.f32 %v1104, %v1142
    %v1148 = vmul.f32 %v1106, %v1144
    %v1151 = vrot.slane %v1147, 6
    %v1152 = vrot.slane %v1148, 5
    %v1153 = vsel %vm314, %v1152, %v1151
    %1154 = vrot.lane.b32.xlu0 %v1153, 32
    %v1155 = vpop.permute.xlu0 %1154
    %v1156 = vsel %vm183, %v1155, 0
    %1158 = vmatprep.subr.mxu0 0.0
    %1159 = vmatpush1.msra.mxu0 %v90
    %1160 = vmatprep.subr.mxu0 0.0
    %1161 = vmatpush1.msra.mxu0 %v91
    %1162 = vmatprep.subr.mxu0 0.0
    %1163 = vmatpush1.msra.mxu0 %v92
    %1164 = vmatprep.subr.mxu0 0.0
    %1165 = vmatpush1.msra.mxu0 %v93
    %1166 = vmatprep.subr.mxu0 0.0
    %1167 = vmatpush1.msra.mxu0 0.0
    %1168 = vmatprep.subr.mxu0 0.0
    %1169 = vmatpush1.msra.mxu0 0.0
    %1170 = vmatprep.subr.mxu0 0.0
    %1171 = vmatpush1.msra.mxu0 0.0
    %1172 = vmatprep.subr.mxu0 0.0
    %1173 = vmatpush1.msra.mxu0 0.0
    %1174 = vmatprep.subr.mxu0 0.0
    %1175 = vmatpush1.msra.mxu0 0.0
    %1176 = vmatprep.subr.mxu0 0.0
    %1177 = vmatpush1.msra.mxu0 0.0
    %1178 = vmatprep.subr.mxu0 0.0
    %1179 = vmatpush1.msra.mxu0 0.0
    %1180 = vmatprep.subr.mxu0 0.0
    %1181 = vmatpush1.msra.mxu0 0.0
    %1182 = vmatprep.subr.mxu0 0.0
    %1183 = vmatpush1.msra.mxu0 0.0
    %1184 = vmatprep.subr.mxu0 0.0
    %1185 = vmatpush1.msra.mxu0 0.0
    %1186 = vmatprep.subr.mxu0 0.0
    %1187 = vmatpush1.msra.mxu0 0.0
    %1188 = vmatprep.subr.mxu0 0.0
    %1189 = vmatpush1.msra.mxu0 0.0
    %1190 = vmatprep.subr.mxu0 0.0
    %1191 = vmatpush1.msra.mxu0 0.0
    %1192 = vmatprep.subr.mxu0 0.0
    %1193 = vmatpush1.msra.mxu0 0.0
    %1194 = vmatprep.subr.mxu0 0.0
    %1195 = vmatpush1.msra.mxu0 0.0
    %1196 = vmatprep.subr.mxu0 0.0
    %1197 = vmatpush1.msra.mxu0 0.0
    %1198 = vmatprep.subr.mxu0 0.0
    %1199 = vmatpush1.msra.mxu0 0.0
    %1200 = vmatprep.subr.mxu0 0.0
    %1201 = vmatpush1.msra.mxu0 0.0
    %1202 = vmatprep.subr.mxu0 0.0
    %1203 = vmatpush1.msra.mxu0 0.0
    %1204 = vmatprep.subr.mxu0 0.0
    %1205 = vmatpush1.msra.mxu0 0.0
    %1206 = vmatprep.subr.mxu0 0.0
    %1207 = vmatpush1.msra.mxu0 0.0
    %1208 = vmatprep.subr.mxu0 0.0
    %1209 = vmatpush1.msra.mxu0 0.0
    %1210 = vmatprep.subr.mxu0 0.0
    %1211 = vmatpush1.msra.mxu0 0.0
    %1212 = vmatprep.subr.mxu0 0.0
    %1213 = vmatpush1.msra.mxu0 0.0
    %1214 = vmatprep.subr.mxu0 0.0
    %1215 = vmatpush1.msra.mxu0 0.0
    %1216 = vmatprep.subr.mxu0 0.0
    %1217 = vmatpush1.msra.mxu0 0.0
    %1218 = vmatprep.subr.mxu0 0.0
    %1219 = vmatpush1.msra.mxu0 0.0
    %1220 = vmatprep.subr.mxu0 0.0
    %1221 = vmatpush1.msra.mxu0 0.0
    %1222 = vmatprep.mubr.f32.mxu0 0.0
    %1223 = vmatmul.mubr.f32.gmra.mrb[0].mxu0 %v1156
    %v1224 = vpop.f32.mrb[0].mxu0
    %v1225 = vadd.f32 0.0, %v1224
    %v1226 = vpop.f32.mrb[0].mxu0
    %1227 = vdwg.mxu0
    %v1229 = vrot.slane %v1225, 1
    %v1230 = vrot.slane %v1225, 2
    %v1233 = vadd.f32 %v175, %v1229
    %v1234 = vadd.f32 %v180, %v1230
    %v1235 = vxor.u32 %v1233, 2147483648
    %v1236 = vxor.u32 %v1234, 2147483648
    %v1237 = vmul.f32 %v1235, 1.442695
    %v1238 = vpow.pop %v1237
    %v1239 = vmul.f32 %v1236, 1.442695
    %v1240 = vpow.pop %v1239
    %v1241 = vadd.f32 %v1238, 1.0
    %v1242 = vadd.f32 %v1240, 1.0
    %v1243 = vrcp.pop %v1241
    %v1244 = vmul.f32 1.0, %v1243
    %v1245 = vrcp.pop %v1242
    %v1246 = vmul.f32 1.0, %v1245
    %v1247 = vtanh.pop %v1233
    %v1248 = vtanh.pop %v1234
    %v1251 = vrot.slane %v1135, 7
    %v1252 = vrot.slane %v1136, 7
    %v1255 = vmul.f32 %v1244, %v1251
    %v1256 = vmul.f32 %v1246, %v1252
    %1259 = vrot.lane.b32.xlu0 %v1247, 64
    %v1260 = vpop.permute.xlu0 %1259
    %1261 = vrot.lane.b32.xlu0 %v1248, 64
    %v1262 = vpop.permute.xlu0 %1261
    %v1265 = vmul.f32 %v1244, %v1260
    %v1266 = vmul.f32 %v1246, %v1262
    %1269 = vrot.lane.b32.xlu0 %v1265, 32
    %v1270 = vpop.permute.xlu0 %1269
    %1271 = vrot.lane.b32.xlu0 %v1266, 32
    %v1272 = vpop.permute.xlu0 %1271
    %v1275 = vadd.f32 %v1255, %v1270
    %v1276 = vadd.f32 %v1256, %v1272
    %v1277 = vtanh.pop %v1275
    %v1278 = vtanh.pop %v1276
    %1281 = vrot.lane.b32.xlu0 %v1277, 64
    %v1282 = vpop.permute.xlu0 %1281
    %1283 = vrot.lane.b32.xlu0 %v1278, 64
    %v1284 = vpop.permute.xlu0 %1283
    %v1287 = vmul.f32 %v1244, %v1282
    %v1288 = vmul.f32 %v1246, %v1284
    %vm1289 = vcmask 1040384
    %v1290 = vsel %vm1289, %v309, %v448
    %v1291 = vsel %vm1289, %v310, %v449
    %vm1292 = vcmask 1041408
    %v1293 = vsel %vm1292, %v1290, %v587
    %v1294 = vsel %vm1292, %v1291, %v588
    %vm1295 = vcmask 1042432
    %v1296 = vsel %vm1295, %v1293, %v727
    %v1297 = vsel %vm1295, %v1294, %v728
    %vm1298 = vcmask 1043456
    %v1299 = vsel %vm1298, %v1296, %v867
    %v1300 = vsel %vm1298, %v1297, %v868
    %vm1301 = vcmask 1044480
    %v1302 = vsel %vm1301, %v1299, %v1007
    %v1303 = vsel %vm1301, %v1300, %v1008
    %vm1304 = vcmask 1045504
    %v1305 = vsel %vm1304, %v1302, %v1147
    %v1306 = vsel %vm1304, %v1303, %v1148
    %vm1307 = vcmask 1046528
    %v1308 = vsel %vm1307, %v1305, %v1287
    %v1309 = vsel %vm1307, %v1306, %v1288
    %v1310 = vld [vmem:[%s4] sm:$0xff]
    %v1311 = vld [vmem:[%s4 + $0x8] sm:$0xff]
    %v1312 = vld [vmem:[%s4 + $0x10] sm:$0xff]
    %v1313 = vld [vmem:[%s4 + $0x18] sm:$0xff]
    %v1314 = vld [vmem:[#allocation7] sm:$0xff]
    %v1315 = vld [vmem:[#allocation7 + $0x8] sm:$0xff]
    %v1316 = vld [vmem:[#allocation7 + $0x10] sm:$0xff]
    %v1317 = vld [vmem:[#allocation7 + $0x18] sm:$0xff]
    %v1318 = vld [vmem:[%s6] sm:$0x1]
    %v1320 = vlaneseq
    %v1321 = vshrl.u32 %v1320, 7
    %v1322 = vsub.s32 0, %v1321
    %v1323 = vrot.slane %v1318, %v1322
    %1327 = vrot.lane.b32.xlu0 %v1308, 32
    %v1328 = vpop.permute.xlu0 %1327
    %1329 = vrot.lane.b32.xlu0 %v1309, 32
    %v1330 = vpop.permute.xlu0 %1329
    %v1331 = vsel %vm183, %v1328, 0
    %v1333 = vsel %vm183, %v1330, 0
    %1335 = vmatprep.subr.mxu0 0.0
    %1336 = vmatpush1.msra.mxu0 %v1310
    %1337 = vmatprep.subr.mxu0 0.0
    %1338 = vmatpush1.msra.mxu0 %v1311
    %1339 = vmatprep.subr.mxu0 0.0
    %1340 = vmatpush1.msra.mxu0 %v1312
    %1341 = vmatprep.subr.mxu0 0.0
    %1342 = vmatpush1.msra.mxu0 %v1313
    %1343 = vmatprep.subr.mxu0 0.0
    %1344 = vmatpush1.msra.mxu0 0.0
    %1345 = vmatprep.subr.mxu0 0.0
    %1346 = vmatpush1.msra.mxu0 0.0
    %1347 = vmatprep.subr.mxu0 0.0
    %1348 = vmatpush1.msra.mxu0 0.0
    %1349 = vmatprep.subr.mxu0 0.0
    %1350 = vmatpush1.msra.mxu0 0.0
    %1351 = vmatprep.subr.mxu0 0.0
    %1352 = vmatpush1.msra.mxu0 0.0
    %1353 = vmatprep.subr.mxu0 0.0
    %1354 = vmatpush1.msra.mxu0 0.0
    %1355 = vmatprep.subr.mxu0 0.0
    %1356 = vmatpush1.msra.mxu0 0.0
    %1357 = vmatprep.subr.mxu0 0.0
    %1358 = vmatpush1.msra.mxu0 0.0
    %1359 = vmatprep.subr.mxu0 0.0
    %1360 = vmatpush1.msra.mxu0 0.0
    %1361 = vmatprep.subr.mxu0 0.0
    %1362 = vmatpush1.msra.mxu0 0.0
    %1363 = vmatprep.subr.mxu0 0.0
    %1364 = vmatpush1.msra.mxu0 0.0
    %1365 = vmatprep.subr.mxu0 0.0
    %1366 = vmatpush1.msra.mxu0 0.0
    %1367 = vmatprep.subr.mxu0 0.0
    %1368 = vmatpush1.msra.mxu0 0.0
    %1369 = vmatprep.subr.mxu0 0.0
    %1370 = vmatpush1.msra.mxu0 0.0
    %1371 = vmatprep.subr.mxu0 0.0
    %1372 = vmatpush1.msra.mxu0 0.0
    %1373 = vmatprep.subr.mxu0 0.0
    %1374 = vmatpush1.msra.mxu0 0.0
    %1375 = vmatprep.subr.mxu0 0.0
    %1376 = vmatpush1.msra.mxu0 0.0
    %1377 = vmatprep.subr.mxu0 0.0
    %1378 = vmatpush1.msra.mxu0 0.0
    %1379 = vmatprep.subr.mxu0 0.0
    %1380 = vmatpush1.msra.mxu0 0.0
    %1381 = vmatprep.subr.mxu0 0.0
    %1382 = vmatpush1.msra.mxu0 0.0
    %1383 = vmatprep.subr.mxu0 0.0
    %1384 = vmatpush1.msra.mxu0 0.0
    %1385 = vmatprep.subr.mxu0 0.0
    %1386 = vmatpush1.msra.mxu0 0.0
    %1387 = vmatprep.subr.mxu0 0.0
    %1388 = vmatpush1.msra.mxu0 0.0
    %1389 = vmatprep.subr.mxu0 0.0
    %1390 = vmatpush1.msra.mxu0 0.0
    %1391 = vmatprep.subr.mxu0 0.0
    %1392 = vmatpush1.msra.mxu0 0.0
    %1393 = vmatprep.subr.mxu0 0.0
    %1394 = vmatpush1.msra.mxu0 0.0
    %1395 = vmatprep.subr.mxu0 0.0
    %1396 = vmatpush1.msra.mxu0 0.0
    %1397 = vmatprep.subr.mxu0 0.0
    %1398 = vmatpush1.msra.mxu0 0.0
    %1399 = vmatprep.mubr.f32.mxu0 0.0
    %1400 = vmatmul.mubr.f32.gmra.mrb[0].mxu0 %v1331
    %v1401 = vpop.f32.mrb[0].mxu0
    %v1402 = vadd.f32 %v1323, %v1401
    %v1403 = vpop.f32.mrb[0].mxu0
    %1404 = vmatprep.mubr.f32.mxu0 0.0
    %1405 = vmatmul.mubr.f32.gmra.mrb[0].mxu0 %v1333
    %v1406 = vpop.f32.mrb[0].mxu0
    %v1407 = vadd.f32 %v1323, %v1406
    %v1408 = vpop.f32.mrb[0].mxu0
    %1409 = vdwg.mxu0
    %1410 = vmatprep.subr.mxu0 0.0
    %1411 = vmatpush1.msra.mxu0 %v1314
    %1412 = vmatprep.subr.mxu0 0.0
    %1413 = vmatpush1.msra.mxu0 %v1315
    %1414 = vmatprep.subr.mxu0 0.0
    %1415 = vmatpush1.msra.mxu0 %v1316
    %1416 = vmatprep.subr.mxu0 0.0
    %1417 = vmatpush1.msra.mxu0 %v1317
    %1418 = vmatprep.subr.mxu0 0.0
    %1419 = vmatpush1.msra.mxu0 0.0
    %1420 = vmatprep.subr.mxu0 0.0
    %1421 = vmatpush1.msra.mxu0 0.0
    %1422 = vmatprep.subr.mxu0 0.0
    %1423 = vmatpush1.msra.mxu0 0.0
    %1424 = vmatprep.subr.mxu0 0.0
    %1425 = vmatpush1.msra.mxu0 0.0
    %1426 = vmatprep.subr.mxu0 0.0
    %1427 = vmatpush1.msra.mxu0 0.0
    %1428 = vmatprep.subr.mxu0 0.0
    %1429 = vmatpush1.msra.mxu0 0.0
    %1430 = vmatprep.subr.mxu0 0.0
    %1431 = vmatpush1.msra.mxu0 0.0
    %1432 = vmatprep.subr.mxu0 0.0
    %1433 = vmatpush1.msra.mxu0 0.0
    %1434 = vmatprep.subr.mxu0 0.0
    %1435 = vmatpush1.msra.mxu0 0.0
    %1436 = vmatprep.subr.mxu0 0.0
    %1437 = vmatpush1.msra.mxu0 0.0
    %1438 = vmatprep.subr.mxu0 0.0
    %1439 = vmatpush1.msra.mxu0 0.0
    %1440 = vmatprep.subr.mxu0 0.0
    %1441 = vmatpush1.msra.mxu0 0.0
    %1442 = vmatprep.subr.mxu0 0.0
    %1443 = vmatpush1.msra.mxu0 0.0
    %1444 = vmatprep.subr.mxu0 0.0
    %1445 = vmatpush1.msra.mxu0 0.0
    %1446 = vmatprep.subr.mxu0 0.0
    %1447 = vmatpush1.msra.mxu0 0.0
    %1448 = vmatprep.subr.mxu0 0.0
    %1449 = vmatpush1.msra.mxu0 0.0
    %1450 = vmatprep.subr.mxu0 0.0
    %1451 = vmatpush1.msra.mxu0 0.0
    %1452 = vmatprep.subr.mxu0 0.0
    %1453 = vmatpush1.msra.mxu0 0.0
    %1454 = vmatprep.subr.mxu0 0.0
    %1455 = vmatpush1.msra.mxu0 0.0
    %1456 = vmatprep.subr.mxu0 0.0
    %1457 = vmatpush1.msra.mxu0 0.0
    %1458 = vmatprep.subr.mxu0 0.0
    %1459 = vmatpush1.msra.mxu0 0.0
    %1460 = vmatprep.subr.mxu0 0.0
    %1461 = vmatpush1.msra.mxu0 0.0
    %1462 = vmatprep.subr.mxu0 0.0
    %1463 = vmatpush1.msra.mxu0 0.0
    %1464 = vmatprep.subr.mxu0 0.0
    %1465 = vmatpush1.msra.mxu0 0.0
    %1466 = vmatprep.subr.mxu0 0.0
    %1467 = vmatpush1.msra.mxu0 0.0
    %1468 = vmatprep.subr.mxu0 0.0
    %1469 = vmatpush1.msra.mxu0 0.0
    %1470 = vmatprep.subr.mxu0 0.0
    %1471 = vmatpush1.msra.mxu0 0.0
    %1472 = vmatprep.subr.mxu0 0.0
    %1473 = vmatpush1.msra.mxu0 0.0
    %1474 = vmatprep.mubr.f32.mxu0 0.0
    %1475 = vmatmul.mubr.f32.gmra.mrb[0].mxu0 %v185
    %v1476 = vpop.f32.mrb[0].mxu0
    %v1477 = vadd.f32 0.0, %v1476
    %v1478 = vpop.f32.mrb[0].mxu0
    %1479 = vdwg.mxu0
    %v1481 = vrot.slane %v1477, 1
    %v1484 = vadd.f32 %v1402, %v1477
    %v1485 = vadd.f32 %v1407, %v1481
    %v1486 = vxor.u32 %v1484, 2147483648
    %v1487 = vxor.u32 %v1485, 2147483648
    %v1488 = vmul.f32 %v1486, 1.442695
    %v1489 = vpow.pop %v1488
    %v1490 = vmul.f32 %v1487, 1.442695
    %v1491 = vpow.pop %v1490
    %v1492 = vadd.f32 %v1489, 1.0
    %v1493 = vadd.f32 %v1491, 1.0
    %v1494 = vrcp.pop %v1492
    %v1495 = vmul.f32 1.0, %v1494
    %v1496 = vrcp.pop %v1493
    %v1497 = vmul.f32 1.0, %v1496
    %v1498 = vtanh.pop %v1484
    %v1499 = vtanh.pop %v1485
    %v1500 = vmul.f32 %v1495, 0.0
    %v1501 = vmul.f32 %v1497, 0.0
    %1504 = vrot.lane.b32.xlu0 %v1498, 64
    %v1505 = vpop.permute.xlu0 %1504
    %1506 = vrot.lane.b32.xlu0 %v1499, 64
    %v1507 = vpop.permute.xlu0 %1506
    %v1510 = vmul.f32 %v1495, %v1505
    %v1511 = vmul.f32 %v1497, %v1507
    %1514 = vrot.lane.b32.xlu0 %v1510, 32
    %v1515 = vpop.permute.xlu0 %1514
    %1516 = vrot.lane.b32.xlu0 %v1511, 32
    %v1517 = vpop.permute.xlu0 %1516
    %v1520 = vadd.f32 %v1500, %v1515
    %v1521 = vadd.f32 %v1501, %v1517
    %v1522 = vtanh.pop %v1520
    %v1523 = vtanh.pop %v1521
    %1526 = vrot.lane.b32.xlu0 %v1522, 64
    %v1527 = vpop.permute.xlu0 %1526
    %1528 = vrot.lane.b32.xlu0 %v1523, 64
    %v1529 = vpop.permute.xlu0 %1528
    %v1532 = vmul.f32 %v1495, %v1527
    %v1533 = vmul.f32 %v1497, %v1529
    %v1536 = vrot.slane %v1533, 7
    %v1537 = vsel %vm314, %v1536, %v1532
    %1538 = vrot.lane.b32.xlu0 %v1537, 32
    %v1539 = vpop.permute.xlu0 %1538
    %v1540 = vsel %vm183, %v1539, 0
    %1542 = vmatprep.subr.mxu0 0.0
    %1543 = vmatpush1.msra.mxu0 %v1314
    %1544 = vmatprep.subr.mxu0 0.0
    %1545 = vmatpush1.msra.mxu0 %v1315
    %1546 = vmatprep.subr.mxu0 0.0
    %1547 = vmatpush1.msra.mxu0 %v1316
    %1548 = vmatprep.subr.mxu0 0.0
    %1549 = vmatpush1.msra.mxu0 %v1317
    %1550 = vmatprep.subr.mxu0 0.0
    %1551 = vmatpush1.msra.mxu0 0.0
    %1552 = vmatprep.subr.mxu0 0.0
    %1553 = vmatpush1.msra.mxu0 0.0
    %1554 = vmatprep.subr.mxu0 0.0
    %1555 = vmatpush1.msra.mxu0 0.0
    %1556 = vmatprep.subr.mxu0 0.0
    %1557 = vmatpush1.msra.mxu0 0.0
    %1558 = vmatprep.subr.mxu0 0.0
    %1559 = vmatpush1.msra.mxu0 0.0
    %1560 = vmatprep.subr.mxu0 0.0
    %1561 = vmatpush1.msra.mxu0 0.0
    %1562 = vmatprep.subr.mxu0 0.0
    %1563 = vmatpush1.msra.mxu0 0.0
    %1564 = vmatprep.subr.mxu0 0.0
    %1565 = vmatpush1.msra.mxu0 0.0
    %1566 = vmatprep.subr.mxu0 0.0
    %1567 = vmatpush1.msra.mxu0 0.0
    %1568 = vmatprep.subr.mxu0 0.0
    %1569 = vmatpush1.msra.mxu0 0.0
    %1570 = vmatprep.subr.mxu0 0.0
    %1571 = vmatpush1.msra.mxu0 0.0
    %1572 = vmatprep.subr.mxu0 0.0
    %1573 = vmatpush1.msra.mxu0 0.0
    %1574 = vmatprep.subr.mxu0 0.0
    %1575 = vmatpush1.msra.mxu0 0.0
    %1576 = vmatprep.subr.mxu0 0.0
    %1577 = vmatpush1.msra.mxu0 0.0
    %1578 = vmatprep.subr.mxu0 0.0
    %1579 = vmatpush1.msra.mxu0 0.0
    %1580 = vmatprep.subr.mxu0 0.0
    %1581 = vmatpush1.msra.mxu0 0.0
    %1582 = vmatprep.subr.mxu0 0.0
    %1583 = vmatpush1.msra.mxu0 0.0
    %1584 = vmatprep.subr.mxu0 0.0
    %1585 = vmatpush1.msra.mxu0 0.0
    %1586 = vmatprep.subr.mxu0 0.0
    %1587 = vmatpush1.msra.mxu0 0.0
    %1588 = vmatprep.subr.mxu0 0.0
    %1589 = vmatpush1.msra.mxu0 0.0
    %1590 = vmatprep.subr.mxu0 0.0
    %1591 = vmatpush1.msra.mxu0 0.0
    %1592 = vmatprep.subr.mxu0 0.0
    %1593 = vmatpush1.msra.mxu0 0.0
    %1594 = vmatprep.subr.mxu0 0.0
    %1595 = vmatpush1.msra.mxu0 0.0
    %1596 = vmatprep.subr.mxu0 0.0
    %1597 = vmatpush1.msra.mxu0 0.0
    %1598 = vmatprep.subr.mxu0 0.0
    %1599 = vmatpush1.msra.mxu0 0.0
    %1600 = vmatprep.subr.mxu0 0.0
    %1601 = vmatpush1.msra.mxu0 0.0
    %1602 = vmatprep.subr.mxu0 0.0
    %1603 = vmatpush1.msra.mxu0 0.0
    %1604 = vmatprep.subr.mxu0 0.0
    %1605 = vmatpush1.msra.mxu0 0.0
    %1606 = vmatprep.mubr.f32.mxu0 0.0
    %1607 = vmatmul.mubr.f32.gmra.mrb[0].mxu0 %v1540
    %v1608 = vpop.f32.mrb[0].mxu0
    %v1609 = vadd.f32 0.0, %v1608
    %v1610 = vpop.f32.mrb[0].mxu0
    %1611 = vdwg.mxu0
    %v1613 = vrot.slane %v1609, 7
    %v1616 = vadd.f32 %v1402, %v1613
    %v1617 = vadd.f32 %v1407, %v1609
    %v1618 = vxor.u32 %v1616, 2147483648
    %v1619 = vxor.u32 %v1617, 2147483648
    %v1620 = vmul.f32 %v1618, 1.442695
    %v1621 = vpow.pop %v1620
    %v1622 = vmul.f32 %v1619, 1.442695
    %v1623 = vpow.pop %v1622
    %v1624 = vadd.f32 %v1621, 1.0
    %v1625 = vadd.f32 %v1623, 1.0
    %v1626 = vrcp.pop %v1624
    %v1627 = vmul.f32 1.0, %v1626
    %v1628 = vrcp.pop %v1625
    %v1629 = vmul.f32 1.0, %v1628
    %v1630 = vtanh.pop %v1616
    %v1631 = vtanh.pop %v1617
    %v1634 = vrot.slane %v1520, 7
    %v1635 = vrot.slane %v1521, 7
    %v1638 = vmul.f32 %v1627, %v1634
    %v1639 = vmul.f32 %v1629, %v1635
    %1642 = vrot.lane.b32.xlu0 %v1630, 64
    %v1643 = vpop.permute.xlu0 %1642
    %1644 = vrot.lane.b32.xlu0 %v1631, 64
    %v1645 = vpop.permute.xlu0 %1644
    %v1648 = vmul.f32 %v1627, %v1643
    %v1649 = vmul.f32 %v1629, %v1645
    %1652 = vrot.lane.b32.xlu0 %v1648, 32
    %v1653 = vpop.permute.xlu0 %1652
    %1654 = vrot.lane.b32.xlu0 %v1649, 32
    %v1655 = vpop.permute.xlu0 %1654
    %v1658 = vadd.f32 %v1638, %v1653
    %v1659 = vadd.f32 %v1639, %v1655
    %v1660 = vtanh.pop %v1658
    %v1661 = vtanh.pop %v1659
    %1664 = vrot.lane.b32.xlu0 %v1660, 64
    %v1665 = vpop.permute.xlu0 %1664
    %1666 = vrot.lane.b32.xlu0 %v1661, 64
    %v1667 = vpop.permute.xlu0 %1666
    %v1670 = vmul.f32 %v1627, %v1665
    %v1671 = vmul.f32 %v1629, %v1667
    %v1674 = vrot.slane %v1670, 1
    %v1675 = vsel %vm314, %v1671, %v1674
    %1676 = vrot.lane.b32.xlu0 %v1675, 32
    %v1677 = vpop.permute.xlu0 %1676
    %v1678 = vsel %vm183, %v1677, 0
    %1680 = vmatprep.subr.mxu0 0.0
    %1681 = vmatpush1.msra.mxu0 %v1314
    %1682 = vmatprep.subr.mxu0 0.0
    %1683 = vmatpush1.msra.mxu0 %v1315
    %1684 = vmatprep.subr.mxu0 0.0
    %1685 = vmatpush1.msra.mxu0 %v1316
    %1686 = vmatprep.subr.mxu0 0.0
    %1687 = vmatpush1.msra.mxu0 %v1317
    %1688 = vmatprep.subr.mxu0 0.0
    %1689 = vmatpush1.msra.mxu0 0.0
    %1690 = vmatprep.subr.mxu0 0.0
    %1691 = vmatpush1.msra.mxu0 0.0
    %1692 = vmatprep.subr.mxu0 0.0
    %1693 = vmatpush1.msra.mxu0 0.0
    %1694 = vmatprep.subr.mxu0 0.0
    %1695 = vmatpush1.msra.mxu0 0.0
    %1696 = vmatprep.subr.mxu0 0.0
    %1697 = vmatpush1.msra.mxu0 0.0
    %1698 = vmatprep.subr.mxu0 0.0
    %1699 = vmatpush1.msra.mxu0 0.0
    %1700 = vmatprep.subr.mxu0 0.0
    %1701 = vmatpush1.msra.mxu0 0.0
    %1702 = vmatprep.subr.mxu0 0.0
    %1703 = vmatpush1.msra.mxu0 0.0
    %1704 = vmatprep.subr.mxu0 0.0
    %1705 = vmatpush1.msra.mxu0 0.0
    %1706 = vmatprep.subr.mxu0 0.0
    %1707 = vmatpush1.msra.mxu0 0.0
    %1708 = vmatprep.subr.mxu0 0.0
    %1709 = vmatpush1.msra.mxu0 0.0
    %1710 = vmatprep.subr.mxu0 0.0
    %1711 = vmatpush1.msra.mxu0 0.0
    %1712 = vmatprep.subr.mxu0 0.0
    %1713 = vmatpush1.msra.mxu0 0.0
    %1714 = vmatprep.subr.mxu0 0.0
    %1715 = vmatpush1.msra.mxu0 0.0
    %1716 = vmatprep.subr.mxu0 0.0
    %1717 = vmatpush1.msra.mxu0 0.0
    %1718 = vmatprep.subr.mxu0 0.0
    %1719 = vmatpush1.msra.mxu0 0.0
    %1720 = vmatprep.subr.mxu0 0.0
    %1721 = vmatpush1.msra.mxu0 0.0
    %1722 = vmatprep.subr.mxu0 0.0
    %1723 = vmatpush1.msra.mxu0 0.0
    %1724 = vmatprep.subr.mxu0 0.0
    %1725 = vmatpush1.msra.mxu0 0.0
    %1726 = vmatprep.subr.mxu0 0.0
    %1727 = vmatpush1.msra.mxu0 0.0
    %1728 = vmatprep.subr.mxu0 0.0
    %1729 = vmatpush1.msra.mxu0 0.0
    %1730 = vmatprep.subr.mxu0 0.0
    %1731 = vmatpush1.msra.mxu0 0.0
    %1732 = vmatprep.subr.mxu0 0.0
    %1733 = vmatpush1.msra.mxu0 0.0
    %1734 = vmatprep.subr.mxu0 0.0
    %1735 = vmatpush1.msra.mxu0 0.0
    %1736 = vmatprep.subr.mxu0 0.0
    %1737 = vmatpush1.msra.mxu0 0.0
    %1738 = vmatprep.subr.mxu0 0.0
    %1739 = vmatpush1.msra.mxu0 0.0
    %1740 = vmatprep.subr.mxu0 0.0
    %1741 = vmatpush1.msra.mxu0 0.0
    %1742 = vmatprep.subr.mxu0 0.0
    %1743 = vmatpush1.msra.mxu0 0.0
    %1744 = vmatprep.mubr.f32.mxu0 0.0
    %1745 = vmatmul.mubr.f32.gmra.mrb[0].mxu0 %v1678
    %v1746 = vpop.f32.mrb[0].mxu0
    %v1747 = vadd.f32 0.0, %v1746
    %v1748 = vpop.f32.mrb[0].mxu0
    %1749 = vdwg.mxu0
    %v1751 = vrot.slane %v1747, 6
    %v1752 = vrot.slane %v1747, 7
    %v1755 = vadd.f32 %v1402, %v1751
    %v1756 = vadd.f32 %v1407, %v1752
    %v1757 = vxor.u32 %v1755, 2147483648
    %v1758 = vxor.u32 %v1756, 2147483648
    %v1759 = vmul.f32 %v1757, 1.442695
    %v1760 = vpow.pop %v1759
    %v1761 = vmul.f32 %v1758, 1.442695
    %v1762 = vpow.pop %v1761
    %v1763 = vadd.f32 %v1760, 1.0
    %v1764 = vadd.f32 %v1762, 1.0
    %v1765 = vrcp.pop %v1763
    %v1766 = vmul.f32 1.0, %v1765
    %v1767 = vrcp.pop %v1764
    %v1768 = vmul.f32 1.0, %v1767
    %v1769 = vtanh.pop %v1755
    %v1770 = vtanh.pop %v1756
    %v1773 = vrot.slane %v1658, 7
    %v1774 = vrot.slane %v1659, 7
    %v1777 = vmul.f32 %v1766, %v1773
    %v1778 = vmul.f32 %v1768, %v1774
    %1781 = vrot.lane.b32.xlu0 %v1769, 64
    %v1782 = vpop.permute.xlu0 %1781
    %1783 = vrot.lane.b32.xlu0 %v1770, 64
    %v1784 = vpop.permute.xlu0 %1783
    %v1787 = vmul.f32 %v1766, %v1782
    %v1788 = vmul.f32 %v1768, %v1784
    %1791 = vrot.lane.b32.xlu0 %v1787, 32
    %v1792 = vpop.permute.xlu0 %1791
    %1793 = vrot.lane.b32.xlu0 %v1788, 32
    %v1794 = vpop.permute.xlu0 %1793
    %v1797 = vadd.f32 %v1777, %v1792
    %v1798 = vadd.f32 %v1778, %v1794
    %v1799 = vtanh.pop %v1797
    %v1800 = vtanh.pop %v1798
    %1803 = vrot.lane.b32.xlu0 %v1799, 64
    %v1804 = vpop.permute.xlu0 %1803
    %1805 = vrot.lane.b32.xlu0 %v1800, 64
    %v1806 = vpop.permute.xlu0 %1805
    %v1809 = vmul.f32 %v1766, %v1804
    %v1810 = vmul.f32 %v1768, %v1806
    %v1813 = vrot.slane %v1809, 2
    %v1814 = vrot.slane %v1810, 1
    %v1815 = vsel %vm314, %v1814, %v1813
    %1816 = vrot.lane.b32.xlu0 %v1815, 32
    %v1817 = vpop.permute.xlu0 %1816
    %v1818 = vsel %vm183, %v1817, 0
    %1820 = vmatprep.subr.mxu0 0.0
    %1821 = vmatpush1.msra.mxu0 %v1314
    %1822 = vmatprep.subr.mxu0 0.0
    %1823 = vmatpush1.msra.mxu0 %v1315
    %1824 = vmatprep.subr.mxu0 0.0
    %1825 = vmatpush1.msra.mxu0 %v1316
    %1826 = vmatprep.subr.mxu0 0.0
    %1827 = vmatpush1.msra.mxu0 %v1317
    %1828 = vmatprep.subr.mxu0 0.0
    %1829 = vmatpush1.msra.mxu0 0.0
    %1830 = vmatprep.subr.mxu0 0.0
    %1831 = vmatpush1.msra.mxu0 0.0
    %1832 = vmatprep.subr.mxu0 0.0
    %1833 = vmatpush1.msra.mxu0 0.0
    %1834 = vmatprep.subr.mxu0 0.0
    %1835 = vmatpush1.msra.mxu0 0.0
    %1836 = vmatprep.subr.mxu0 0.0
    %1837 = vmatpush1.msra.mxu0 0.0
    %1838 = vmatprep.subr.mxu0 0.0
    %1839 = vmatpush1.msra.mxu0 0.0
    %1840 = vmatprep.subr.mxu0 0.0
    %1841 = vmatpush1.msra.mxu0 0.0
    %1842 = vmatprep.subr.mxu0 0.0
    %1843 = vmatpush1.msra.mxu0 0.0
    %1844 = vmatprep.subr.mxu0 0.0
    %1845 = vmatpush1.msra.mxu0 0.0
    %1846 = vmatprep.subr.mxu0 0.0
    %1847 = vmatpush1.msra.mxu0 0.0
    %1848 = vmatprep.subr.mxu0 0.0
    %1849 = vmatpush1.msra.mxu0 0.0
    %1850 = vmatprep.subr.mxu0 0.0
    %1851 = vmatpush1.msra.mxu0 0.0
    %1852 = vmatprep.subr.mxu0 0.0
    %1853 = vmatpush1.msra.mxu0 0.0
    %1854 = vmatprep.subr.mxu0 0.0
    %1855 = vmatpush1.msra.mxu0 0.0
    %1856 = vmatprep.subr.mxu0 0.0
    %1857 = vmatpush1.msra.mxu0 0.0
    %1858 = vmatprep.subr.mxu0 0.0
    %1859 = vmatpush1.msra.mxu0 0.0
    %1860 = vmatprep.subr.mxu0 0.0
    %1861 = vmatpush1.msra.mxu0 0.0
    %1862 = vmatprep.subr.mxu0 0.0
    %1863 = vmatpush1.msra.mxu0 0.0
    %1864 = vmatprep.subr.mxu0 0.0
    %1865 = vmatpush1.msra.mxu0 0.0
    %1866 = vmatprep.subr.mxu0 0.0
    %1867 = vmatpush1.msra.mxu0 0.0
    %1868 = vmatprep.subr.mxu0 0.0
    %1869 = vmatpush1.msra.mxu0 0.0
    %1870 = vmatprep.subr.mxu0 0.0
    %1871 = vmatpush1.msra.mxu0 0.0
    %1872 = vmatprep.subr.mxu0 0.0
    %1873 = vmatpush1.msra.mxu0 0.0
    %1874 = vmatprep.subr.mxu0 0.0
    %1875 = vmatpush1.msra.mxu0 0.0
    %1876 = vmatprep.subr.mxu0 0.0
    %1877 = vmatpush1.msra.mxu0 0.0
    %1878 = vmatprep.subr.mxu0 0.0
    %1879 = vmatpush1.msra.mxu0 0.0
    %1880 = vmatprep.subr.mxu0 0.0
    %1881 = vmatpush1.msra.mxu0 0.0
    %1882 = vmatprep.subr.mxu0 0.0
    %1883 = vmatpush1.msra.mxu0 0.0
    %1884 = vmatprep.mubr.f32.mxu0 0.0
    %1885 = vmatmul.mubr.f32.gmra.mrb[0].mxu0 %v1818
    %v1886 = vpop.f32.mrb[0].mxu0
    %v1887 = vadd.f32 0.0, %v1886
    %v1888 = vpop.f32.mrb[0].mxu0
    %1889 = vdwg.mxu0
    %v1891 = vrot.slane %v1887, 5
    %v1892 = vrot.slane %v1887, 6
    %v1895 = vadd.f32 %v1402, %v1891
    %v1896 = vadd.f32 %v1407, %v1892
    %v1897 = vxor.u32 %v1895, 2147483648
    %v1898 = vxor.u32 %v1896, 2147483648
    %v1899 = vmul.f32 %v1897, 1.442695
    %v1900 = vpow.pop %v1899
    %v1901 = vmul.f32 %v1898, 1.442695
    %v1902 = vpow.pop %v1901
    %v1903 = vadd.f32 %v1900, 1.0
    %v1904 = vadd.f32 %v1902, 1.0
    %v1905 = vrcp.pop %v1903
    %v1906 = vmul.f32 1.0, %v1905
    %v1907 = vrcp.pop %v1904
    %v1908 = vmul.f32 1.0, %v1907
    %v1909 = vtanh.pop %v1895
    %v1910 = vtanh.pop %v1896
    %v1913 = vrot.slane %v1797, 7
    %v1914 = vrot.slane %v1798, 7
    %v1917 = vmul.f32 %v1906, %v1913
    %v1918 = vmul.f32 %v1908, %v1914
    %1921 = vrot.lane.b32.xlu0 %v1909, 64
    %v1922 = vpop.permute.xlu0 %1921
    %1923 = vrot.lane.b32.xlu0 %v1910, 64
    %v1924 = vpop.permute.xlu0 %1923
    %v1927 = vmul.f32 %v1906, %v1922
    %v1928 = vmul.f32 %v1908, %v1924
    %1931 = vrot.lane.b32.xlu0 %v1927, 32
    %v1932 = vpop.permute.xlu0 %1931
    %1933 = vrot.lane.b32.xlu0 %v1928, 32
    %v1934 = vpop.permute.xlu0 %1933
    %v1937 = vadd.f32 %v1917, %v1932
    %v1938 = vadd.f32 %v1918, %v1934
    %v1939 = vtanh.pop %v1937
    %v1940 = vtanh.pop %v1938
    %1943 = vrot.lane.b32.xlu0 %v1939, 64
    %v1944 = vpop.permute.xlu0 %1943
    %1945 = vrot.lane.b32.xlu0 %v1940, 64
    %v1946 = vpop.permute.xlu0 %1945
    %v1949 = vmul.f32 %v1906, %v1944
    %v1950 = vmul.f32 %v1908, %v1946
    %v1953 = vrot.slane %v1949, 3
    %v1954 = vrot.slane %v1950, 2
    %v1955 = vsel %vm314, %v1954, %v1953
    %1956 = vrot.lane.b32.xlu0 %v1955, 32
    %v1957 = vpop.permute.xlu0 %1956
    %v1958 = vsel %vm183, %v1957, 0
    %1960 = vmatprep.subr.mxu0 0.0
    %1961 = vmatpush1.msra.mxu0 %v1314
    %1962 = vmatprep.subr.mxu0 0.0
    %1963 = vmatpush1.msra.mxu0 %v1315
    %1964 = vmatprep.subr.mxu0 0.0
    %1965 = vmatpush1.msra.mxu0 %v1316
    %1966 = vmatprep.subr.mxu0 0.0
    %1967 = vmatpush1.msra.mxu0 %v1317
    %1968 = vmatprep.subr.mxu0 0.0
    %1969 = vmatpush1.msra.mxu0 0.0
    %1970 = vmatprep.subr.mxu0 0.0
    %1971 = vmatpush1.msra.mxu0 0.0
    %1972 = vmatprep.subr.mxu0 0.0
    %1973 = vmatpush1.msra.mxu0 0.0
    %1974 = vmatprep.subr.mxu0 0.0
    %1975 = vmatpush1.msra.mxu0 0.0
    %1976 = vmatprep.subr.mxu0 0.0
    %1977 = vmatpush1.msra.mxu0 0.0
    %1978 = vmatprep.subr.mxu0 0.0
    %1979 = vmatpush1.msra.mxu0 0.0
    %1980 = vmatprep.subr.mxu0 0.0
    %1981 = vmatpush1.msra.mxu0 0.0
    %1982 = vmatprep.subr.mxu0 0.0
    %1983 = vmatpush1.msra.mxu0 0.0
    %1984 = vmatprep.subr.mxu0 0.0
    %1985 = vmatpush1.msra.mxu0 0.0
    %1986 = vmatprep.subr.mxu0 0.0
    %1987 = vmatpush1.msra.mxu0 0.0
    %1988 = vmatprep.subr.mxu0 0.0
    %1989 = vmatpush1.msra.mxu0 0.0
    %1990 = vmatprep.subr.mxu0 0.0
    %1991 = vmatpush1.msra.mxu0 0.0
    %1992 = vmatprep.subr.mxu0 0.0
    %1993 = vmatpush1.msra.mxu0 0.0
    %1994 = vmatprep.subr.mxu0 0.0
    %1995 = vmatpush1.msra.mxu0 0.0
    %1996 = vmatprep.subr.mxu0 0.0
    %1997 = vmatpush1.msra.mxu0 0.0
    %1998 = vmatprep.subr.mxu0 0.0
    %1999 = vmatpush1.msra.mxu0 0.0
    %2000 = vmatprep.subr.mxu0 0.0
    %2001 = vmatpush1.msra.mxu0 0.0
    %2002 = vmatprep.subr.mxu0 0.0
    %2003 = vmatpush1.msra.mxu0 0.0
    %2004 = vmatprep.subr.mxu0 0.0
    %2005 = vmatpush1.msra.mxu0 0.0
    %2006 = vmatprep.subr.mxu0 0.0
    %2007 = vmatpush1.msra.mxu0 0.0
    %2008 = vmatprep.subr.mxu0 0.0
    %2009 = vmatpush1.msra.mxu0 0.0
    %2010 = vmatprep.subr.mxu0 0.0
    %2011 = vmatpush1.msra.mxu0 0.0
    %2012 = vmatprep.subr.mxu0 0.0
    %2013 = vmatpush1.msra.mxu0 0.0
    %2014 = vmatprep.subr.mxu0 0.0
    %2015 = vmatpush1.msra.mxu0 0.0
    %2016 = vmatprep.subr.mxu0 0.0
    %2017 = vmatpush1.msra.mxu0 0.0
    %2018 = vmatprep.subr.mxu0 0.0
    %2019 = vmatpush1.msra.mxu0 0.0
    %2020 = vmatprep.subr.mxu0 0.0
    %2021 = vmatpush1.msra.mxu0 0.0
    %2022 = vmatprep.subr.mxu0 0.0
    %2023 = vmatpush1.msra.mxu0 0.0
    %2024 = vmatprep.mubr.f32.mxu0 0.0
    %2025 = vmatmul.mubr.f32.gmra.mrb[0].mxu0 %v1958
    %v2026 = vpop.f32.mrb[0].mxu0
    %v2027 = vadd.f32 0.0, %v2026
    %v2028 = vpop.f32.mrb[0].mxu0
    %2029 = vdwg.mxu0
    %v2031 = vrot.slane %v2027, 4
    %v2032 = vrot.slane %v2027, 5
    %v2035 = vadd.f32 %v1402, %v2031
    %v2036 = vadd.f32 %v1407, %v2032
    %v2037 = vxor.u32 %v2035, 2147483648
    %v2038 = vxor.u32 %v2036, 2147483648
    %v2039 = vmul.f32 %v2037, 1.442695
    %v2040 = vpow.pop %v2039
    %v2041 = vmul.f32 %v2038, 1.442695
    %v2042 = vpow.pop %v2041
    %v2043 = vadd.f32 %v2040, 1.0
    %v2044 = vadd.f32 %v2042, 1.0
    %v2045 = vrcp.pop %v2043
    %v2046 = vmul.f32 1.0, %v2045
    %v2047 = vrcp.pop %v2044
    %v2048 = vmul.f32 1.0, %v2047
    %v2049 = vtanh.pop %v2035
    %v2050 = vtanh.pop %v2036
    %v2053 = vrot.slane %v1937, 7
    %v2054 = vrot.slane %v1938, 7
    %v2057 = vmul.f32 %v2046, %v2053
    %v2058 = vmul.f32 %v2048, %v2054
    %2061 = vrot.lane.b32.xlu0 %v2049, 64
    %v2062 = vpop.permute.xlu0 %2061
    %2063 = vrot.lane.b32.xlu0 %v2050, 64
    %v2064 = vpop.permute.xlu0 %2063
    %v2067 = vmul.f32 %v2046, %v2062
    %v2068 = vmul.f32 %v2048, %v2064
    %2071 = vrot.lane.b32.xlu0 %v2067, 32
    %v2072 = vpop.permute.xlu0 %2071
    %2073 = vrot.lane.b32.xlu0 %v2068, 32
    %v2074 = vpop.permute.xlu0 %2073
    %v2077 = vadd.f32 %v2057, %v2072
    %v2078 = vadd.f32 %v2058, %v2074
    %v2079 = vtanh.pop %v2077
    %v2080 = vtanh.pop %v2078
    %2083 = vrot.lane.b32.xlu0 %v2079, 64
    %v2084 = vpop.permute.xlu0 %2083
    %2085 = vrot.lane.b32.xlu0 %v2080, 64
    %v2086 = vpop.permute.xlu0 %2085
    %v2089 = vmul.f32 %v2046, %v2084
    %v2090 = vmul.f32 %v2048, %v2086
    %v2093 = vrot.slane %v2089, 4
    %v2094 = vrot.slane %v2090, 3
    %v2095 = vsel %vm314, %v2094, %v2093
    %2096 = vrot.lane.b32.xlu0 %v2095, 32
    %v2097 = vpop.permute.xlu0 %2096
    %v2098 = vsel %vm183, %v2097, 0
    %2100 = vmatprep.subr.mxu0 0.0
    %2101 = vmatpush1.msra.mxu0 %v1314
    %2102 = vmatprep.subr.mxu0 0.0
    %2103 = vmatpush1.msra.mxu0 %v1315
    %2104 = vmatprep.subr.mxu0 0.0
    %2105 = vmatpush1.msra.mxu0 %v1316
    %2106 = vmatprep.subr.mxu0 0.0
    %2107 = vmatpush1.msra.mxu0 %v1317
    %2108 = vmatprep.subr.mxu0 0.0
    %2109 = vmatpush1.msra.mxu0 0.0
    %2110 = vmatprep.subr.mxu0 0.0
    %2111 = vmatpush1.msra.mxu0 0.0
    %2112 = vmatprep.subr.mxu0 0.0
    %2113 = vmatpush1.msra.mxu0 0.0
    %2114 = vmatprep.subr.mxu0 0.0
    %2115 = vmatpush1.msra.mxu0 0.0
    %2116 = vmatprep.subr.mxu0 0.0
    %2117 = vmatpush1.msra.mxu0 0.0
    %2118 = vmatprep.subr.mxu0 0.0
    %2119 = vmatpush1.msra.mxu0 0.0
    %2120 = vmatprep.subr.mxu0 0.0
    %2121 = vmatpush1.msra.mxu0 0.0
    %2122 = vmatprep.subr.mxu0 0.0
    %2123 = vmatpush1.msra.mxu0 0.0
    %2124 = vmatprep.subr.mxu0 0.0
    %2125 = vmatpush1.msra.mxu0 0.0
    %2126 = vmatprep.subr.mxu0 0.0
    %2127 = vmatpush1.msra.mxu0 0.0
    %2128 = vmatprep.subr.mxu0 0.0
    %2129 = vmatpush1.msra.mxu0 0.0
    %2130 = vmatprep.subr.mxu0 0.0
    %2131 = vmatpush1.msra.mxu0 0.0
    %2132 = vmatprep.subr.mxu0 0.0
    %2133 = vmatpush1.msra.mxu0 0.0
    %2134 = vmatprep.subr.mxu0 0.0
    %2135 = vmatpush1.msra.mxu0 0.0
    %2136 = vmatprep.subr.mxu0 0.0
    %2137 = vmatpush1.msra.mxu0 0.0
    %2138 = vmatprep.subr.mxu0 0.0
    %2139 = vmatpush1.msra.mxu0 0.0
    %2140 = vmatprep.subr.mxu0 0.0
    %2141 = vmatpush1.msra.mxu0 0.0
    %2142 = vmatprep.subr.mxu0 0.0
    %2143 = vmatpush1.msra.mxu0 0.0
    %2144 = vmatprep.subr.mxu0 0.0
    %2145 = vmatpush1.msra.mxu0 0.0
    %2146 = vmatprep.subr.mxu0 0.0
    %2147 = vmatpush1.msra.mxu0 0.0
    %2148 = vmatprep.subr.mxu0 0.0
    %2149 = vmatpush1.msra.mxu0 0.0
    %2150 = vmatprep.subr.mxu0 0.0
    %2151 = vmatpush1.msra.mxu0 0.0
    %2152 = vmatprep.subr.mxu0 0.0
    %2153 = vmatpush1.msra.mxu0 0.0
    %2154 = vmatprep.subr.mxu0 0.0
    %2155 = vmatpush1.msra.mxu0 0.0
    %2156 = vmatprep.subr.mxu0 0.0
    %2157 = vmatpush1.msra.mxu0 0.0
    %2158 = vmatprep.subr.mxu0 0.0
    %2159 = vmatpush1.msra.mxu0 0.0
    %2160 = vmatprep.subr.mxu0 0.0
    %2161 = vmatpush1.msra.mxu0 0.0
    %2162 = vmatprep.subr.mxu0 0.0
    %2163 = vmatpush1.msra.mxu0 0.0
    %2164 = vmatprep.mubr.f32.mxu0 0.0
    %2165 = vmatmul.mubr.f32.gmra.mrb[0].mxu0 %v2098
    %v2166 = vpop.f32.mrb[0].mxu0
    %v2167 = vadd.f32 0.0, %v2166
    %v2168 = vpop.f32.mrb[0].mxu0
    %2169 = vdwg.mxu0
    %v2171 = vrot.slane %v2167, 3
    %v2172 = vrot.slane %v2167, 4
    %v2175 = vadd.f32 %v1402, %v2171
    %v2176 = vadd.f32 %v1407, %v2172
    %v2177 = vxor.u32 %v2175, 2147483648
    %v2178 = vxor.u32 %v2176, 2147483648
    %v2179 = vmul.f32 %v2177, 1.442695
    %v2180 = vpow.pop %v2179
    %v2181 = vmul.f32 %v2178, 1.442695
    %v2182 = vpow.pop %v2181
    %v2183 = vadd.f32 %v2180, 1.0
    %v2184 = vadd.f32 %v2182, 1.0
    %v2185 = vrcp.pop %v2183
    %v2186 = vmul.f32 1.0, %v2185
    %v2187 = vrcp.pop %v2184
    %v2188 = vmul.f32 1.0, %v2187
    %v2189 = vtanh.pop %v2175
    %v2190 = vtanh.pop %v2176
    %v2193 = vrot.slane %v2077, 7
    %v2194 = vrot.slane %v2078, 7
    %v2197 = vmul.f32 %v2186, %v2193
    %v2198 = vmul.f32 %v2188, %v2194
    %2201 = vrot.lane.b32.xlu0 %v2189, 64
    %v2202 = vpop.permute.xlu0 %2201
    %2203 = vrot.lane.b32.xlu0 %v2190, 64
    %v2204 = vpop.permute.xlu0 %2203
    %v2207 = vmul.f32 %v2186, %v2202
    %v2208 = vmul.f32 %v2188, %v2204
    %2211 = vrot.lane.b32.xlu0 %v2207, 32
    %v2212 = vpop.permute.xlu0 %2211
    %2213 = vrot.lane.b32.xlu0 %v2208, 32
    %v2214 = vpop.permute.xlu0 %2213
    %v2217 = vadd.f32 %v2197, %v2212
    %v2218 = vadd.f32 %v2198, %v2214
    %v2219 = vtanh.pop %v2217
    %v2220 = vtanh.pop %v2218
    %2223 = vrot.lane.b32.xlu0 %v2219, 64
    %v2224 = vpop.permute.xlu0 %2223
    %2225 = vrot.lane.b32.xlu0 %v2220, 64
    %v2226 = vpop.permute.xlu0 %2225
    %v2229 = vmul.f32 %v2186, %v2224
    %v2230 = vmul.f32 %v2188, %v2226
    %v2233 = vrot.slane %v2229, 5
    %v2234 = vrot.slane %v2230, 4
    %v2235 = vsel %vm314, %v2234, %v2233
    %2236 = vrot.lane.b32.xlu0 %v2235, 32
    %v2237 = vpop.permute.xlu0 %2236
    %v2238 = vsel %vm183, %v2237, 0
    %2240 = vmatprep.subr.mxu0 0.0
    %2241 = vmatpush1.msra.mxu0 %v1314
    %2242 = vmatprep.subr.mxu0 0.0
    %2243 = vmatpush1.msra.mxu0 %v1315
    %2244 = vmatprep.subr.mxu0 0.0
    %2245 = vmatpush1.msra.mxu0 %v1316
    %2246 = vmatprep.subr.mxu0 0.0
    %2247 = vmatpush1.msra.mxu0 %v1317
    %2248 = vmatprep.subr.mxu0 0.0
    %2249 = vmatpush1.msra.mxu0 0.0
    %2250 = vmatprep.subr.mxu0 0.0
    %2251 = vmatpush1.msra.mxu0 0.0
    %2252 = vmatprep.subr.mxu0 0.0
    %2253 = vmatpush1.msra.mxu0 0.0
    %2254 = vmatprep.subr.mxu0 0.0
    %2255 = vmatpush1.msra.mxu0 0.0
    %2256 = vmatprep.subr.mxu0 0.0
    %2257 = vmatpush1.msra.mxu0 0.0
    %2258 = vmatprep.subr.mxu0 0.0
    %2259 = vmatpush1.msra.mxu0 0.0
    %2260 = vmatprep.subr.mxu0 0.0
    %2261 = vmatpush1.msra.mxu0 0.0
    %2262 = vmatprep.subr.mxu0 0.0
    %2263 = vmatpush1.msra.mxu0 0.0
    %2264 = vmatprep.subr.mxu0 0.0
    %2265 = vmatpush1.msra.mxu0 0.0
    %2266 = vmatprep.subr.mxu0 0.0
    %2267 = vmatpush1.msra.mxu0 0.0
    %2268 = vmatprep.subr.mxu0 0.0
    %2269 = vmatpush1.msra.mxu0 0.0
    %2270 = vmatprep.subr.mxu0 0.0
    %2271 = vmatpush1.msra.mxu0 0.0
    %2272 = vmatprep.subr.mxu0 0.0
    %2273 = vmatpush1.msra.mxu0 0.0
    %2274 = vmatprep.subr.mxu0 0.0
    %2275 = vmatpush1.msra.mxu0 0.0
    %2276 = vmatprep.subr.mxu0 0.0
    %2277 = vmatpush1.msra.mxu0 0.0
    %2278 = vmatprep.subr.mxu0 0.0
    %2279 = vmatpush1.msra.mxu0 0.0
    %2280 = vmatprep.subr.mxu0 0.0
    %2281 = vmatpush1.msra.mxu0 0.0
    %2282 = vmatprep.subr.mxu0 0.0
    %2283 = vmatpush1.msra.mxu0 0.0
    %2284 = vmatprep.subr.mxu0 0.0
    %2285 = vmatpush1.msra.mxu0 0.0
    %2286 = vmatprep.subr.mxu0 0.0
    %2287 = vmatpush1.msra.mxu0 0.0
    %2288 = vmatprep.subr.mxu0 0.0
    %2289 = vmatpush1.msra.mxu0 0.0
    %2290 = vmatprep.subr.mxu0 0.0
    %2291 = vmatpush1.msra.mxu0 0.0
    %2292 = vmatprep.subr.mxu0 0.0
    %2293 = vmatpush1.msra.mxu0 0.0
    %2294 = vmatprep.subr.mxu0 0.0
    %2295 = vmatpush1.msra.mxu0 0.0
    %2296 = vmatprep.subr.mxu0 0.0
    %2297 = vmatpush1.msra.mxu0 0.0
    %2298 = vmatprep.subr.mxu0 0.0
    %2299 = vmatpush1.msra.mxu0 0.0
    %2300 = vmatprep.subr.mxu0 0.0
    %2301 = vmatpush1.msra.mxu0 0.0
    %2302 = vmatprep.subr.mxu0 0.0
    %2303 = vmatpush1.msra.mxu0 0.0
    %2304 = vmatprep.mubr.f32.mxu0 0.0
    %2305 = vmatmul.mubr.f32.gmra.mrb[0].mxu0 %v2238
    %v2306 = vpop.f32.mrb[0].mxu0
    %v2307 = vadd.f32 0.0, %v2306
    %v2308 = vpop.f32.mrb[0].mxu0
    %2309 = vdwg.mxu0
    %v2311 = vrot.slane %v2307, 2
    %v2312 = vrot.slane %v2307, 3
    %v2315 = vadd.f32 %v1402, %v2311
    %v2316 = vadd.f32 %v1407, %v2312
    %v2317 = vxor.u32 %v2315, 2147483648
    %v2318 = vxor.u32 %v2316, 2147483648
    %v2319 = vmul.f32 %v2317, 1.442695
    %v2320 = vpow.pop %v2319
    %v2321 = vmul.f32 %v2318, 1.442695
    %v2322 = vpow.pop %v2321
    %v2323 = vadd.f32 %v2320, 1.0
    %v2324 = vadd.f32 %v2322, 1.0
    %v2325 = vrcp.pop %v2323
    %v2326 = vmul.f32 1.0, %v2325
    %v2327 = vrcp.pop %v2324
    %v2328 = vmul.f32 1.0, %v2327
    %v2329 = vtanh.pop %v2315
    %v2330 = vtanh.pop %v2316
    %v2333 = vrot.slane %v2217, 7
    %v2334 = vrot.slane %v2218, 7
    %v2337 = vmul.f32 %v2326, %v2333
    %v2338 = vmul.f32 %v2328, %v2334
    %2341 = vrot.lane.b32.xlu0 %v2329, 64
    %v2342 = vpop.permute.xlu0 %2341
    %2343 = vrot.lane.b32.xlu0 %v2330, 64
    %v2344 = vpop.permute.xlu0 %2343
    %v2347 = vmul.f32 %v2326, %v2342
    %v2348 = vmul.f32 %v2328, %v2344
    %2351 = vrot.lane.b32.xlu0 %v2347, 32
    %v2352 = vpop.permute.xlu0 %2351
    %2353 = vrot.lane.b32.xlu0 %v2348, 32
    %v2354 = vpop.permute.xlu0 %2353
    %v2357 = vadd.f32 %v2337, %v2352
    %v2358 = vadd.f32 %v2338, %v2354
    %v2359 = vtanh.pop %v2357
    %v2360 = vtanh.pop %v2358
    %2363 = vrot.lane.b32.xlu0 %v2359, 64
    %v2364 = vpop.permute.xlu0 %2363
    %2365 = vrot.lane.b32.xlu0 %v2360, 64
    %v2366 = vpop.permute.xlu0 %2365
    %v2369 = vmul.f32 %v2326, %v2364
    %v2370 = vmul.f32 %v2328, %v2366
    %v2373 = vrot.slane %v2369, 6
    %v2374 = vrot.slane %v2370, 5
    %v2375 = vsel %vm314, %v2374, %v2373
    %2376 = vrot.lane.b32.xlu0 %v2375, 32
    %v2377 = vpop.permute.xlu0 %2376
    %v2378 = vsel %vm183, %v2377, 0
    %2380 = vmatprep.subr.mxu0 0.0
    %2381 = vmatpush1.msra.mxu0 %v1314
    %2382 = vmatprep.subr.mxu0 0.0
    %2383 = vmatpush1.msra.mxu0 %v1315
    %2384 = vmatprep.subr.mxu0 0.0
    %2385 = vmatpush1.msra.mxu0 %v1316
    %2386 = vmatprep.subr.mxu0 0.0
    %2387 = vmatpush1.msra.mxu0 %v1317
    %2388 = vmatprep.subr.mxu0 0.0
    %2389 = vmatpush1.msra.mxu0 0.0
    %2390 = vmatprep.subr.mxu0 0.0
    %2391 = vmatpush1.msra.mxu0 0.0
    %2392 = vmatprep.subr.mxu0 0.0
    %2393 = vmatpush1.msra.mxu0 0.0
    %2394 = vmatprep.subr.mxu0 0.0
    %2395 = vmatpush1.msra.mxu0 0.0
    %2396 = vmatprep.subr.mxu0 0.0
    %2397 = vmatpush1.msra.mxu0 0.0
    %2398 = vmatprep.subr.mxu0 0.0
    %2399 = vmatpush1.msra.mxu0 0.0
    %2400 = vmatprep.subr.mxu0 0.0
    %2401 = vmatpush1.msra.mxu0 0.0
    %2402 = vmatprep.subr.mxu0 0.0
    %2403 = vmatpush1.msra.mxu0 0.0
    %2404 = vmatprep.subr.mxu0 0.0
    %2405 = vmatpush1.msra.mxu0 0.0
    %2406 = vmatprep.subr.mxu0 0.0
    %2407 = vmatpush1.msra.mxu0 0.0
    %2408 = vmatprep.subr.mxu0 0.0
    %2409 = vmatpush1.msra.mxu0 0.0
    %2410 = vmatprep.subr.mxu0 0.0
    %2411 = vmatpush1.msra.mxu0 0.0
    %2412 = vmatprep.subr.mxu0 0.0
    %2413 = vmatpush1.msra.mxu0 0.0
    %2414 = vmatprep.subr.mxu0 0.0
    %2415 = vmatpush1.msra.mxu0 0.0
    %2416 = vmatprep.subr.mxu0 0.0
    %2417 = vmatpush1.msra.mxu0 0.0
    %2418 = vmatprep.subr.mxu0 0.0
    %2419 = vmatpush1.msra.mxu0 0.0
    %2420 = vmatprep.subr.mxu0 0.0
    %2421 = vmatpush1.msra.mxu0 0.0
    %2422 = vmatprep.subr.mxu0 0.0
    %2423 = vmatpush1.msra.mxu0 0.0
    %2424 = vmatprep.subr.mxu0 0.0
    %2425 = vmatpush1.msra.mxu0 0.0
    %2426 = vmatprep.subr.mxu0 0.0
    %2427 = vmatpush1.msra.mxu0 0.0
    %2428 = vmatprep.subr.mxu0 0.0
    %2429 = vmatpush1.msra.mxu0 0.0
    %2430 = vmatprep.subr.mxu0 0.0
    %2431 = vmatpush1.msra.mxu0 0.0
    %2432 = vmatprep.subr.mxu0 0.0
    %2433 = vmatpush1.msra.mxu0 0.0
    %2434 = vmatprep.subr.mxu0 0.0
    %2435 = vmatpush1.msra.mxu0 0.0
    %2436 = vmatprep.subr.mxu0 0.0
    %2437 = vmatpush1.msra.mxu0 0.0
    %2438 = vmatprep.subr.mxu0 0.0
    %2439 = vmatpush1.msra.mxu0 0.0
    %2440 = vmatprep.subr.mxu0 0.0
    %2441 = vmatpush1.msra.mxu0 0.0
    %2442 = vmatprep.subr.mxu0 0.0
    %2443 = vmatpush1.msra.mxu0 0.0
    %2444 = vmatprep.mubr.f32.mxu0 0.0
    %2445 = vmatmul.mubr.f32.gmra.mrb[0].mxu0 %v2378
    %v2446 = vpop.f32.mrb[0].mxu0
    %v2447 = vadd.f32 0.0, %v2446
    %v2448 = vpop.f32.mrb[0].mxu0
    %2449 = vdwg.mxu0
    %v2451 = vrot.slane %v2447, 1
    %v2452 = vrot.slane %v2447, 2
    %v2455 = vadd.f32 %v1402, %v2451
    %v2456 = vadd.f32 %v1407, %v2452
    %v2457 = vxor.u32 %v2455, 2147483648
    %v2458 = vxor.u32 %v2456, 2147483648
    %v2459 = vmul.f32 %v2457, 1.442695
    %v2460 = vpow.pop %v2459
    %v2461 = vmul.f32 %v2458, 1.442695
    %v2462 = vpow.pop %v2461
    %v2463 = vadd.f32 %v2460, 1.0
    %v2464 = vadd.f32 %v2462, 1.0
    %v2465 = vrcp.pop %v2463
    %v2466 = vmul.f32 1.0, %v2465
    %v2467 = vrcp.pop %v2464
    %v2468 = vmul.f32 1.0, %v2467
    %v2469 = vtanh.pop %v2455
    %v2470 = vtanh.pop %v2456
    %v2473 = vrot.slane %v2357, 7
    %v2474 = vrot.slane %v2358, 7
    %v2477 = vmul.f32 %v2466, %v2473
    %v2478 = vmul.f32 %v2468, %v2474
    %2481 = vrot.lane.b32.xlu0 %v2469, 64
    %v2482 = vpop.permute.xlu0 %2481
    %2483 = vrot.lane.b32.xlu0 %v2470, 64
    %v2484 = vpop.permute.xlu0 %2483
    %v2487 = vmul.f32 %v2466, %v2482
    %v2488 = vmul.f32 %v2468, %v2484
    %2491 = vrot.lane.b32.xlu0 %v2487, 32
    %v2492 = vpop.permute.xlu0 %2491
    %2493 = vrot.lane.b32.xlu0 %v2488, 32
    %v2494 = vpop.permute.xlu0 %2493
    %v2497 = vadd.f32 %v2477, %v2492
    %v2498 = vadd.f32 %v2478, %v2494
    %v2499 = vtanh.pop %v2497
    %v2500 = vtanh.pop %v2498
    %2503 = vrot.lane.b32.xlu0 %v2499, 64
    %v2504 = vpop.permute.xlu0 %2503
    %2505 = vrot.lane.b32.xlu0 %v2500, 64
    %v2506 = vpop.permute.xlu0 %2505
    %v2509 = vmul.f32 %v2466, %v2504
    %v2510 = vmul.f32 %v2468, %v2506
    %v2511 = vsel %vm1289, %v1532, %v1670
    %v2512 = vsel %vm1289, %v1533, %v1671
    %v2513 = vsel %vm1292, %v2511, %v1809
    %v2514 = vsel %vm1292, %v2512, %v1810
    %v2515 = vsel %vm1295, %v2513, %v1949
    %v2516 = vsel %vm1295, %v2514, %v1950
    %v2517 = vsel %vm1298, %v2515, %v2089
    %v2518 = vsel %vm1298, %v2516, %v2090
    %v2519 = vsel %vm1301, %v2517, %v2229
    %v2520 = vsel %vm1301, %v2518, %v2230
    %v2521 = vsel %vm1304, %v2519, %v2369
    %v2522 = vsel %vm1304, %v2520, %v2370
    %v2523 = vsel %vm1307, %v2521, %v2509
    %v2524 = vsel %vm1307, %v2522, %v2510
    %v2525 = vld [vmem:[%s7] sm:$0xff]
    %v2526 = vld [vmem:[%s7 + $0x8] sm:$0xff]
    %v2527 = vld [vmem:[%s7 + $0x10] sm:$0xff]
    %v2528 = vld [vmem:[%s7 + $0x18] sm:$0xff]
    %v2529 = vld [vmem:[#allocation8] sm:$0x1]
    %v2531 = vlaneseq
    %v2532 = vshrl.u32 %v2531, 7
    %v2533 = vsub.s32 0, %v2532
    %v2534 = vrot.slane %v2529, %v2533
    %2538 = vrot.lane.b32.xlu0 %v2523, 32
    %v2539 = vpop.permute.xlu0 %2538
    %2540 = vrot.lane.b32.xlu0 %v2524, 32
    %v2541 = vpop.permute.xlu0 %2540
    %v2542 = vsel %vm183, %v2539, 0
    %v2544 = vsel %vm183, %v2541, 0
    %2546 = vmatprep.subr.mxu0 0.0
    %2547 = vmatpush1.msra.mxu0 %v2525
    %2548 = vmatprep.subr.mxu0 0.0
    %2549 = vmatpush1.msra.mxu0 %v2526
    %2550 = vmatprep.subr.mxu0 0.0
    %2551 = vmatpush1.msra.mxu0 %v2527
    %2552 = vmatprep.subr.mxu0 0.0
    %2553 = vmatpush1.msra.mxu0 %v2528
    %2554 = vmatprep.subr.mxu0 0.0
    %2555 = vmatpush1.msra.mxu0 0.0
    %2556 = vmatprep.subr.mxu0 0.0
    %2557 = vmatpush1.msra.mxu0 0.0
    %2558 = vmatprep.subr.mxu0 0.0
    %2559 = vmatpush1.msra.mxu0 0.0
    %2560 = vmatprep.subr.mxu0 0.0
    %2561 = vmatpush1.msra.mxu0 0.0
    %2562 = vmatprep.subr.mxu0 0.0
    %2563 = vmatpush1.msra.mxu0 0.0
    %2564 = vmatprep.subr.mxu0 0.0
    %2565 = vmatpush1.msra.mxu0 0.0
    %2566 = vmatprep.subr.mxu0 0.0
    %2567 = vmatpush1.msra.mxu0 0.0
    %2568 = vmatprep.subr.mxu0 0.0
    %2569 = vmatpush1.msra.mxu0 0.0
    %2570 = vmatprep.subr.mxu0 0.0
    %2571 = vmatpush1.msra.mxu0 0.0
    %2572 = vmatprep.subr.mxu0 0.0
    %2573 = vmatpush1.msra.mxu0 0.0
    %2574 = vmatprep.subr.mxu0 0.0
    %2575 = vmatpush1.msra.mxu0 0.0
    %2576 = vmatprep.subr.mxu0 0.0
    %2577 = vmatpush1.msra.mxu0 0.0
    %2578 = vmatprep.subr.mxu0 0.0
    %2579 = vmatpush1.msra.mxu0 0.0
    %2580 = vmatprep.subr.mxu0 0.0
    %2581 = vmatpush1.msra.mxu0 0.0
    %2582 = vmatprep.subr.mxu0 0.0
    %2583 = vmatpush1.msra.mxu0 0.0
    %2584 = vmatprep.subr.mxu0 0.0
    %2585 = vmatpush1.msra.mxu0 0.0
    %2586 = vmatprep.subr.mxu0 0.0
    %2587 = vmatpush1.msra.mxu0 0.0
    %2588 = vmatprep.subr.mxu0 0.0
    %2589 = vmatpush1.msra.mxu0 0.0
    %2590 = vmatprep.subr.mxu0 0.0
    %2591 = vmatpush1.msra.mxu0 0.0
    %2592 = vmatprep.subr.mxu0 0.0
    %2593 = vmatpush1.msra.mxu0 0.0
    %2594 = vmatprep.subr.mxu0 0.0
    %2595 = vmatpush1.msra.mxu0 0.0
    %2596 = vmatprep.subr.mxu0 0.0
    %2597 = vmatpush1.msra.mxu0 0.0
    %2598 = vmatprep.subr.mxu0 0.0
    %2599 = vmatpush1.msra.mxu0 0.0
    %2600 = vmatprep.subr.mxu0 0.0
    %2601 = vmatpush1.msra.mxu0 0.0
    %2602 = vmatprep.subr.mxu0 0.0
    %2603 = vmatpush1.msra.mxu0 0.0
    %2604 = vmatprep.subr.mxu0 0.0
    %2605 = vmatpush1.msra.mxu0 0.0
    %2606 = vmatprep.subr.mxu0 0.0
    %2607 = vmatpush1.msra.mxu0 0.0
    %2608 = vmatprep.subr.mxu0 0.0
    %2609 = vmatpush1.msra.mxu0 0.0
    %2610 = vmatprep.mubr.f32.mxu0 0.0
    %2611 = vmatmul.mubr.f32.gmra.mrb[0].mxu0 %v2542
    %v2612 = vpop.f32.mrb[0].mxu0
    %v2613 = vadd.f32 %v2534, %v2612
    %v2614 = vpop.f32.mrb[0].mxu0
    %2615 = vmatprep.mubr.f32.mxu0 0.0
    %2616 = vmatmul.mubr.f32.gmra.mrb[0].mxu0 %v2544
    %v2617 = vpop.f32.mrb[0].mxu0
    %v2618 = vadd.f32 %v2534, %v2617
    %v2619 = vpop.f32.mrb[0].mxu0
    %2620 = vdwg.mxu0
    %2621 = vst.msk [vmem:[#allocation10] sm:$0xff] %vm101, %v2613
    %2622 = vst.msk [vmem:[#allocation10 + $0x8] sm:$0xff] %vm101, %v2618
    // Predicated region
    $region54: #{rnn_forward.1} parent=1 // pred_check
      _
    $region55: #{rnn_forward.1} parent=1 // pred_check_branch
      %2624 = sbr.rel (0) target = $region57
    $region56: #{rnn_forward.1} parent=1 // pred_region
      %s2626 = ssub.s32 256, 256
      %2627 = vsyncadd [#allocation4], %s2626
      %s2628 = sshll.u32 [#allocation10], 4
      %s2629 = int_to_ptr.vmem [resolvable:$true] %s2628
      %2634 = dma.vmem_to_hbm [thread:$0]  %s2629, 256, %s9, [#allocation4], 128, 128, 8
    $region57: #{rnn_forward.1} parent=1 // pred_fallthru
      _
    // Predicated region
    $region58: #{rnn_forward.1} parent=1 // pred_check
      _
    $region59: #{rnn_forward.1} parent=1 // pred_check_branch
      %2636 = sbr.rel (0) target = $region61
    $region60: #{rnn_forward.1} parent=1 // pred_region
      %2637 = dma.done [#allocation4], 256
    $region61: #{rnn_forward.1} parent=1 // pred_fallthru
      _
    %2638 = vsyncpa [#allocation3], 1
    %2639 = vsyncpa [#allocation6], 1
    %2640 = vsyncpa [#allocation9], 1
    %2641 = vsyncpa [#allocation4], 1

</llo_original>
